<compile_context>
chip_gen: v5e
topology: v5e:2x2
jax: 0.10.0
libtpu: 0.0.40
codegen_flags: <defaults>
</compile_context>

<pallas_src>
import functools

import jax
import jax.numpy as jnp
from jax.experimental import pallas as pl
from jax.experimental.pallas import tpu as pltpu


# ----------------------------------------------------------------------------
# Fused CARAFE kernel (per batch element)
# ----------------------------------------------------------------------------
def _carafe_kernel(x_ref, wc_ref, bc_ref, we_ref, be_ref, menc_ref, mup_ref,
                   o_ref, taps_ref, *, h, w, k_up, k_enc, scale, kk_pad):
    hw = h * w
    kk = k_up * k_up
    s2 = scale * scale
    c = x_ref.shape[1]
    c_mid = wc_ref.shape[0]

    def rolled(arr, sy, sx):
        # result[:, y*w+x] = arr[:, (y+sy)*w+(x+sx)] (lane roll of the flattened map;
        # wrapped lanes are exactly the out-of-bounds ones and get zeroed by the 0/1 masks).
        delta = sy * w + sx
        return arr if delta == 0 else pltpu.roll(arr, shift=(-delta) % hw, axis=1)

    x = x_ref[0]                                               # (c, hw) f32

    # ---- comp: 1x1 conv (BN folded) + SiLU.  bf16 MXU inputs, f32 accumulation.
    y1 = jnp.dot(wc_ref[...], x.astype(jnp.bfloat16),
                 preferred_element_type=jnp.float32)           # (c_mid, hw)
    y1 = y1 + bc_ref[...]
    y1 = y1 * jax.nn.sigmoid(y1)

    # ---- enc: k_enc x k_enc conv (BN folded, no act) as ONE fused matmul.
    #      Stack the shifted+masked taps into a lane-dense bf16 VMEM scratch and issue a
    #      single MXU call with K = k_enc^2 * c_mid (better systolic fill, 9x fewer pushes).
    r_enc = k_enc // 2
    for t in range(k_enc * k_enc):
        ty, tx = t // k_enc, t % k_enc
        tap = rolled(y1, ty - r_enc, tx - r_enc) * menc_ref[t:t + 1, :]
        taps_ref[t * c_mid:(t + 1) * c_mid, :] = tap.astype(jnp.bfloat16)

    logits = jnp.dot(we_ref[...], taps_ref[...],
                     preferred_element_type=jnp.float32)       # (s2*kk_pad, hw)
    logits = logits + be_ref[...]     # padded rows carry a -1e9 bias -> exp underflows to 0

    # ---- softmax per sub-pixel on 8-sublane-aligned 32-row blocks; the reassembly boundary
    #      mask is folded into the softmax rows here, once, before the hot loop.
    smm = []
    for s in range(s2):
        lg = logits[s * kk_pad:(s + 1) * kk_pad, :]            # aligned (kk_pad, hw) view
        e = jnp.exp(lg - jnp.max(lg, axis=0, keepdims=True))
        sm = e / jnp.sum(e, axis=0, keepdims=True)
        smm.append(sm * mup_ref[...])                          # (kk_pad, hw)

    # ---- reassembly: tap loop OUTER so each shifted x is computed once and reused by all
    #      s2 sub-pixels; per (k, s) only one (1,hw)-broadcast mul + one add (no mask work).
    r_up = k_up // 2
    accs = [jnp.zeros((c, hw), jnp.float32) for _ in range(s2)]
    for k in range(kk):
        ki, kj = k // k_up, k % k_up
        xs = rolled(x, ki - r_up, kj - r_up)                   # (c, hw), unmasked
        for s in range(s2):
            accs[s] = accs[s] + xs * smm[s][k:k + 1, :]
    # TODO(synk): for large C / hw tiles switch the accumulators to VMEM scratch (or o_ref
    # read-modify-write) to bound live ranges and avoid vreg spills.
    for s in range(s2):
        o_ref[0, s, :, :] = accs[s].astype(o_ref.dtype)


# ----------------------------------------------------------------------------
# Wrapper: parameter re-layout (one-time) + pallas_call + sub-pixel interleave
# ----------------------------------------------------------------------------
def _shift_mask_rows(h, w, shifts):
    """0/1 boundary masks for the flattened (h, w) map for the given (sy, sx) shifts."""
    ys = jnp.arange(h, dtype=jnp.int32)
    xs = jnp.arange(w, dtype=jnp.int32)
    rows = []
    for sy, sx in shifts:
        my = ((ys + sy >= 0) & (ys + sy < h)).astype(jnp.float32)
        mx = ((xs + sx >= 0) & (xs + sx < w)).astype(jnp.float32)
        rows.append((my[:, None] * mx[None, :]).reshape(h * w))
    return jnp.stack(rows, axis=0)                             # (len(shifts), h*w)


def carafe_forward(x, params, *, scale=2, k_up=5, k_enc=3):
    N, c, h, w = x.shape
    hw = h * w
    kk = k_up * k_up
    kk_pad = -(-kk // 8) * 8                                   # 8-sublane aligned per sub-pixel
    s2 = scale * scale
    ke2 = k_enc * k_enc
    c_mid = params["wc"].shape[0]
    assert params["we"].shape == (s2 * kk, c_mid, k_enc, k_enc)

    # comp weights (BN folded) -> bf16 for the MXU.
    wc = params["wc"].astype(jnp.bfloat16)                     # (c_mid, c)
    bc = params["bc"].reshape(c_mid, 1).astype(jnp.float32)

    # enc weights: sub-pixel-major rows (s*kk_pad + k), fused-K columns (t*c_mid + i).
    # kk rows padded to kk_pad: weight rows zero, bias rows -1e9 (softmax ignores them).
    we = params["we"].reshape(kk, s2, c_mid, k_enc, k_enc)      # [k, s, i, ty, tx]
    we = we.transpose(1, 0, 3, 4, 2).reshape(s2, kk, ke2 * c_mid)
    we_f = jnp.zeros((s2, kk_pad, ke2 * c_mid), jnp.float32).at[:, :kk, :].set(we)
    we_f = we_f.reshape(s2 * kk_pad, ke2 * c_mid).astype(jnp.bfloat16)
    be = params["be"].reshape(kk, s2).T.astype(jnp.float32)     # (s2, kk)
    be_f = jnp.full((s2, kk_pad), -1e9, jnp.float32).at[:, :kk].set(be)
    be_f = be_f.reshape(s2 * kk_pad, 1)

    # 0/1 boundary masks for the flattened map: 9 enc-tap masks + kk_pad reassembly masks
    # (the latter are folded into the softmax rows inside the kernel).
    r_enc, r_up = k_enc // 2, k_up // 2
    mask_enc = _shift_mask_rows(h, w, [(t // k_enc - r_enc, t % k_enc - r_enc)
                                       for t in range(ke2)])                 # (ke2, hw)
    mask_up = _shift_mask_rows(h, w, [(k // k_up - r_up, k % k_up - r_up)
                                      for k in range(kk)])                   # (kk, hw)
    mask_up = jnp.zeros((kk_pad, hw), jnp.float32).at[:kk, :].set(mask_up)

    kern = functools.partial(_carafe_kernel, h=h, w=w, k_up=k_up, k_enc=k_enc,
                             scale=scale, kk_pad=kk_pad)
    x_flat = x.reshape(N, c, hw)                                # free metadata reshape

    # TODO(synk): for production-size maps add an h-tiled grid axis with +/- max(r_up, r_enc)
    # halo rows so blocks stay inside v7x's 32/64 MiB VMEM budget and >=2 parallel grid steps
    # exist even at N=1.
    out = pl.pallas_call(
        kern,
        out_shape=jax.ShapeDtypeStruct((N, s2, c, hw), x.dtype),
        grid=(N,),
        in_specs=[
            pl.BlockSpec((1, c, hw), lambda n: (n, 0, 0)),
            pl.BlockSpec((c_mid, c), lambda n: (0, 0)),
            pl.BlockSpec((c_mid, 1), lambda n: (0, 0)),
            pl.BlockSpec((s2 * kk_pad, ke2 * c_mid), lambda n: (0, 0)),
            pl.BlockSpec((s2 * kk_pad, 1), lambda n: (0, 0)),
            pl.BlockSpec((ke2, hw), lambda n: (0, 0)),
            pl.BlockSpec((kk_pad, hw), lambda n: (0, 0)),
        ],
        out_specs=pl.BlockSpec((1, s2, c, hw), lambda n: (n, 0, 0, 0)),
        scratch_shapes=[pltpu.VMEM((ke2 * c_mid, hw), jnp.bfloat16)],
        compiler_params=pltpu.CompilerParams(dimension_semantics=("parallel",)),
    )(x_flat, wc, bc, we_f, be_f, mask_enc, mask_up)

    # Sub-pixel-major kernel output -> (N, c, h*scale, w*scale) (pure layout transpose).
    # TODO(synk): downstream consumers that accept the (N, s2, c, h*w) layout can skip this
    # extra HBM pass entirely.
    out = out.reshape(N, scale, scale, c, h, w)
    out = out.transpose(0, 3, 4, 1, 5, 2).reshape(N, c, h * scale, w * scale)
    return out


# ----------------------------------------------------------------------------
# Parameter init (deterministic; Conv+BN folded to per-out-channel scale/bias, eval mode)
# ----------------------------------------------------------------------------
def _fold_conv_bn(key, cin, cout, k):
    ks = jax.random.split(key, 5)
    wt = 0.1 * jax.random.normal(ks[0], (cout, cin, k, k), jnp.float32)
    gamma = 1.0 + 0.1 * jax.random.normal(ks[1], (cout,), jnp.float32)
    beta = 0.1 * jax.random.normal(ks[2], (cout,), jnp.float32)
    mean = 0.1 * jax.random.normal(ks[3], (cout,), jnp.float32)
    var = 1.0 + 0.5 * jnp.abs(jax.random.normal(ks[4], (cout,), jnp.float32))
    scl = gamma / jnp.sqrt(var + 1e-3)          # ultralytics BN eps = 1e-3
    return wt * scl[:, None, None, None], beta - mean * scl


def init_carafe(key, c, c_mid=64, k_up=5, k_enc=3, scale=2):
    k1, k2 = jax.random.split(key)
    wc, bc = _fold_conv_bn(k1, c, c_mid, 1)
    we, be = _fold_conv_bn(k2, c_mid, (scale * k_up) ** 2, k_enc)
    return {"wc": wc.reshape(c_mid, c), "bc": bc, "we": we, "be": be}


# ----------------------------------------------------------------------------
# Pure-JAX reference mirroring the PyTorch ops (pixel-shuffle / upsample / unfold)
# ----------------------------------------------------------------------------
def carafe_reference(x, params, *, scale=2, k_up=5, k_enc=3):
    N, C, H, W = x.shape
    Ho, Wo = H * scale, W * scale
    kk = k_up * k_up
    # comp (1x1 + folded BN + SiLU), same bf16-in / f32-acc numerics as the kernel.
    y1 = jnp.einsum("oc,nchw->nohw", params["wc"].astype(jnp.bfloat16),
                    x.astype(jnp.bfloat16), preferred_element_type=jnp.float32)
    y1 = y1 + params["bc"][None, :, None, None]
    y1 = y1 * jax.nn.sigmoid(y1)
    # enc (k_enc x k_enc + folded BN, no act)
    pad = k_enc // 2
    logits = jax.lax.conv_general_dilated(
        y1.astype(jnp.bfloat16), params["we"].astype(jnp.bfloat16),
        window_strides=(1, 1), padding=[(pad, pad), (pad, pad)],
        dimension_numbers=("NCHW", "OIHW", "NCHW"),
        preferred_element_type=jnp.float32)
    logits = logits + params["be"][None, :, None, None]
    # PixelShuffle(scale) + softmax over the kk kernel weights
    Wps = logits.reshape(N, kk, scale, scale, H, W)
    Wps = Wps.transpose(0, 1, 4, 2, 5, 3).reshape(N, kk, Ho, Wo)
    Wsm = jax.nn.softmax(Wps, axis=1)
    # nearest upsample + Unfold(k_up, dilation=scale, padding=k_up//2*scale)
    Xup = jnp.repeat(jnp.repeat(x, scale, axis=2), scale, axis=3)
    pu = (k_up // 2) * scale
    Xp = jnp.pad(Xup, ((0, 0), (0, 0), (pu, pu), (pu, pu)))
    cols = [Xp[:, :, ki * scale:ki * scale + Ho, kj * scale:kj * scale + Wo]
            for ki in range(k_up) for kj in range(k_up)]
    Xun = jnp.stack(cols, axis=2)                              # (N, C, kk, Ho, Wo)
    return jnp.einsum("nkhw,nckhw->nchw", Wsm, Xun,
                      precision=jax.lax.Precision.HIGHEST)


# ----------------------------------------------------------------------------
if __name__ == "__main__":
    key = jax.random.PRNGKey(0)
    kx, kp = jax.random.split(key)

    N, C, H, W = 2, 16, 16, 16
    c_mid, scale, k_up, k_enc = 64, 2, 5, 3
    x = jax.random.normal(kx, (N, C, H, W), jnp.float32)
    params = init_carafe(kp, C, c_mid=c_mid, k_up=k_up, k_enc=k_enc, scale=scale)

    fwd = jax.jit(functools.partial(carafe_forward, scale=scale, k_up=k_up, k_enc=k_enc))
    out = jax.block_until_ready(fwd(x, params))

    ref = carafe_reference(x, params, scale=scale, k_up=k_up, k_enc=k_enc)
    err = float(jnp.max(jnp.abs(out - ref)))
    assert out.shape == (N, C, H * scale, W * scale), out.shape
    assert err < 5e-3, f"max abs err vs reference: {err}"

    print("KERNEL_OK")
</pallas_src>

<mosaic_0001>
module attributes {stable_mosaic.version = 11 : i64} {
  func.func @_carafe_kernel(%arg0: i32, %arg1: memref<1x16x256xf32, #tpu.memory_space<vmem>>, %arg2: memref<64x16xbf16, #tpu.memory_space<vmem>>, %arg3: memref<64x1xf32, #tpu.memory_space<vmem>>, %arg4: memref<128x576xbf16, #tpu.memory_space<vmem>>, %arg5: memref<128x1xf32, #tpu.memory_space<vmem>>, %arg6: memref<9x256xf32, #tpu.memory_space<vmem>>, %arg7: memref<32x256xf32, #tpu.memory_space<vmem>>, %arg8: memref<1x4x16x256xf32, #tpu.memory_space<vmem>>, %arg9: memref<576x256xbf16, #tpu.memory_space<vmem>>) attributes {dimension_semantics = [#tpu.dimension_semantics<parallel>], iteration_bounds = array<i64: 2>, scalar_prefetch = 0 : i64, scratch_operands = 1 : i64, tpu.core_type = #tpu.core_type<tc>, window_params = [{transform_indices = @transform_0, window_bounds = array<i64: 1, 16, 256>}, {pipeline_mode = #tpu.pipeline_mode<synchronous>, transform_indices = @transform_1, window_bounds = array<i64: 64, 16>}, {pipeline_mode = #tpu.pipeline_mode<synchronous>, transform_indices = @transform_2, window_bounds = array<i64: 64, 1>}, {pipeline_mode = #tpu.pipeline_mode<synchronous>, transform_indices = @transform_3, window_bounds = array<i64: 128, 576>}, {pipeline_mode = #tpu.pipeline_mode<synchronous>, transform_indices = @transform_4, window_bounds = array<i64: 128, 1>}, {pipeline_mode = #tpu.pipeline_mode<synchronous>, transform_indices = @transform_5, window_bounds = array<i64: 9, 256>}, {pipeline_mode = #tpu.pipeline_mode<synchronous>, transform_indices = @transform_6, window_bounds = array<i64: 32, 256>}, {transform_indices = @transform_7, window_bounds = array<i64: 1, 4, 16, 256>}]} {
    %c0 = arith.constant 0 : index
    %c0_0 = arith.constant 0 : index
    %c0_1 = arith.constant 0 : index
    %0 = vector.load %arg1[%c0, %c0_0, %c0_1] : memref<1x16x256xf32, #tpu.memory_space<vmem>>, vector<1x16x256xf32>
    %1 = vector.shape_cast %0 : vector<1x16x256xf32> to vector<16x256xf32>
    %c0_2 = arith.constant 0 : index
    %c0_3 = arith.constant 0 : index
    %2 = vector.load %arg2[%c0_2, %c0_3] : memref<64x16xbf16, #tpu.memory_space<vmem>>, vector<64x16xbf16>
    %3 = arith.truncf %1 : vector<16x256xf32> to vector<16x256xbf16>
    %cst = arith.constant dense<0.000000e+00> : vector<64x256xf32>
    %4 = tpu.matmul %2, %3, %cst {dimension_numbers = #tpu.dot_dimension_numbers<[1], [0], [0], [1], [0, 0, 1, 1], [], []>} : vector<64x16xbf16>, vector<16x256xbf16>, vector<64x256xf32> -> vector<64x256xf32>
    %c0_4 = arith.constant 0 : index
    %c0_5 = arith.constant 0 : index
    %5 = vector.load %arg3[%c0_4, %c0_5] : memref<64x1xf32, #tpu.memory_space<vmem>>, vector<64x1xf32>
    %6 = vector.broadcast %5 : vector<64x1xf32> to vector<64x256xf32>
    %7 = arith.addf %4, %6 : vector<64x256xf32>
    %8 = arith.negf %7 : vector<64x256xf32>
    %9 = math.exp %8 : vector<64x256xf32>
    %cst_6 = arith.constant 1.000000e+00 : f32
    %10 = vector.broadcast %cst_6 : f32 to vector<64x256xf32>
    %11 = arith.addf %10, %9 : vector<64x256xf32>
    %12 = arith.divf %10, %11 : vector<64x256xf32>
    %13 = arith.mulf %7, %12 : vector<64x256xf32>
    %c17_i32 = arith.constant 17 : i32
    %14 = tpu.dynamic_rotate %13 by %c17_i32 dim 1 : vector<64x256xf32>, i32 -> vector<64x256xf32>
    %c0_7 = arith.constant 0 : index
    %c0_8 = arith.constant 0 : index
    %15 = vector.load %arg6[%c0_7, %c0_8] : memref<9x256xf32, #tpu.memory_space<vmem>>, vector<1x256xf32>
    %16 = vector.broadcast %15 : vector<1x256xf32> to vector<64x256xf32>
    %17 = arith.mulf %14, %16 : vector<64x256xf32>
    %18 = arith.truncf %17 : vector<64x256xf32> to vector<64x256xbf16>
    %c0_9 = arith.constant 0 : index
    %c0_10 = arith.constant 0 : index
    %19 = vector.load %arg9[%c0_9, %c0_10] : memref<576x256xbf16, #tpu.memory_space<vmem>>, vector<64x256xbf16>
    tpu.vector_store %arg9[%c0_9, %c0_10], %18 {strides = array<i32>} : memref<576x256xbf16, #tpu.memory_space<vmem>>, vector<64x256xbf16>,
    %c16_i32 = arith.constant 16 : i32
    %20 = tpu.dynamic_rotate %13 by %c16_i32 dim 1 : vector<64x256xf32>, i32 -> vector<64x256xf32>
    %c1 = arith.constant 1 : index
    %c0_11 = arith.constant 0 : index
    %21 = vector.load %arg6[%c1, %c0_11] : memref<9x256xf32, #tpu.memory_space<vmem>>, vector<1x256xf32>
    %22 = vector.broadcast %21 : vector<1x256xf32> to vector<64x256xf32>
    %23 = arith.mulf %20, %22 : vector<64x256xf32>
    %24 = arith.truncf %23 : vector<64x256xf32> to vector<64x256xbf16>
    %c64 = arith.constant 64 : index
    %c0_12 = arith.constant 0 : index
    %25 = vector.load %arg9[%c64, %c0_12] : memref<576x256xbf16, #tpu.memory_space<vmem>>, vector<64x256xbf16>
    tpu.vector_store %arg9[%c64, %c0_12], %24 {strides = array<i32>} : memref<576x256xbf16, #tpu.memory_space<vmem>>, vector<64x256xbf16>,
    %c15_i32 = arith.constant 15 : i32
    %26 = tpu.dynamic_rotate %13 by %c15_i32 dim 1 : vector<64x256xf32>, i32 -> vector<64x256xf32>
    %c2 = arith.constant 2 : index
    %c0_13 = arith.constant 0 : index
    %27 = vector.load %arg6[%c2, %c0_13] : memref<9x256xf32, #tpu.memory_space<vmem>>, vector<1x256xf32>
    %28 = vector.broadcast %27 : vector<1x256xf32> to vector<64x256xf32>
    %29 = arith.mulf %26, %28 : vector<64x256xf32>
    %30 = arith.truncf %29 : vector<64x256xf32> to vector<64x256xbf16>
    %c128 = arith.constant 128 : index
    %c0_14 = arith.constant 0 : index
    %31 = vector.load %arg9[%c128, %c0_14] : memref<576x256xbf16, #tpu.memory_space<vmem>>, vector<64x256xbf16>
    tpu.vector_store %arg9[%c128, %c0_14], %30 {strides = array<i32>} : memref<576x256xbf16, #tpu.memory_space<vmem>>, vector<64x256xbf16>,
    %c1_i32 = arith.constant 1 : i32
    %32 = tpu.dynamic_rotate %13 by %c1_i32 dim 1 : vector<64x256xf32>, i32 -> vector<64x256xf32>
    %c3 = arith.constant 3 : index
    %c0_15 = arith.constant 0 : index
    %33 = vector.load %arg6[%c3, %c0_15] : memref<9x256xf32, #tpu.memory_space<vmem>>, vector<1x256xf32>
    %34 = vector.broadcast %33 : vector<1x256xf32> to vector<64x256xf32>
    %35 = arith.mulf %32, %34 : vector<64x256xf32>
    %36 = arith.truncf %35 : vector<64x256xf32> to vector<64x256xbf16>
    %c192 = arith.constant 192 : index
    %c0_16 = arith.constant 0 : index
    %37 = vector.load %arg9[%c192, %c0_16] : memref<576x256xbf16, #tpu.memory_space<vmem>>, vector<64x256xbf16>
    tpu.vector_store %arg9[%c192, %c0_16], %36 {strides = array<i32>} : memref<576x256xbf16, #tpu.memory_space<vmem>>, vector<64x256xbf16>,
    %c4 = arith.constant 4 : index
    %c0_17 = arith.constant 0 : index
    %38 = vector.load %arg6[%c4, %c0_17] : memref<9x256xf32, #tpu.memory_space<vmem>>, vector<1x256xf32>
    %39 = vector.broadcast %38 : vector<1x256xf32> to vector<64x256xf32>
    %40 = arith.mulf %13, %39 : vector<64x256xf32>
    %41 = arith.truncf %40 : vector<64x256xf32> to vector<64x256xbf16>
    %c256 = arith.constant 256 : index
    %c0_18 = arith.constant 0 : index
    %42 = vector.load %arg9[%c256, %c0_18] : memref<576x256xbf16, #tpu.memory_space<vmem>>, vector<64x256xbf16>
    tpu.vector_store %arg9[%c256, %c0_18], %41 {strides = array<i32>} : memref<576x256xbf16, #tpu.memory_space<vmem>>, vector<64x256xbf16>,
    %c255_i32 = arith.constant 255 : i32
    %43 = tpu.dynamic_rotate %13 by %c255_i32 dim 1 : vector<64x256xf32>, i32 -> vector<64x256xf32>
    %c5 = arith.constant 5 : index
    %c0_19 = arith.constant 0 : index
    %44 = vector.load %arg6[%c5, %c0_19] : memref<9x256xf32, #tpu.memory_space<vmem>>, vector<1x256xf32>
    %45 = vector.broadcast %44 : vector<1x256xf32> to vector<64x256xf32>
    %46 = arith.mulf %43, %45 : vector<64x256xf32>
    %47 = arith.truncf %46 : vector<64x256xf32> to vector<64x256xbf16>
    %c320 = arith.constant 320 : index
    %c0_20 = arith.constant 0 : index
    %48 = vector.load %arg9[%c320, %c0_20] : memref<576x256xbf16, #tpu.memory_space<vmem>>, vector<64x256xbf16>
    tpu.vector_store %arg9[%c320, %c0_20], %47 {strides = array<i32>} : memref<576x256xbf16, #tpu.memory_space<vmem>>, vector<64x256xbf16>,
    %c241_i32 = arith.constant 241 : i32
    %49 = tpu.dynamic_rotate %13 by %c241_i32 dim 1 : vector<64x256xf32>, i32 -> vector<64x256xf32>
    %c6 = arith.constant 6 : index
    %c0_21 = arith.constant 0 : index
    %50 = vector.load %arg6[%c6, %c0_21] : memref<9x256xf32, #tpu.memory_space<vmem>>, vector<1x256xf32>
    %51 = vector.broadcast %50 : vector<1x256xf32> to vector<64x256xf32>
    %52 = arith.mulf %49, %51 : vector<64x256xf32>
    %53 = arith.truncf %52 : vector<64x256xf32> to vector<64x256xbf16>
    %c384 = arith.constant 384 : index
    %c0_22 = arith.constant 0 : index
    %54 = vector.load %arg9[%c384, %c0_22] : memref<576x256xbf16, #tpu.memory_space<vmem>>, vector<64x256xbf16>
    tpu.vector_store %arg9[%c384, %c0_22], %53 {strides = array<i32>} : memref<576x256xbf16, #tpu.memory_space<vmem>>, vector<64x256xbf16>,
    %c240_i32 = arith.constant 240 : i32
    %55 = tpu.dynamic_rotate %13 by %c240_i32 dim 1 : vector<64x256xf32>, i32 -> vector<64x256xf32>
    %c7 = arith.constant 7 : index
    %c0_23 = arith.constant 0 : index
    %56 = vector.load %arg6[%c7, %c0_23] : memref<9x256xf32, #tpu.memory_space<vmem>>, vector<1x256xf32>
    %57 = vector.broadcast %56 : vector<1x256xf32> to vector<64x256xf32>
    %58 = arith.mulf %55, %57 : vector<64x256xf32>
    %59 = arith.truncf %58 : vector<64x256xf32> to vector<64x256xbf16>
    %c448 = arith.constant 448 : index
    %c0_24 = arith.constant 0 : index
    %60 = vector.load %arg9[%c448, %c0_24] : memref<576x256xbf16, #tpu.memory_space<vmem>>, vector<64x256xbf16>
    tpu.vector_store %arg9[%c448, %c0_24], %59 {strides = array<i32>} : memref<576x256xbf16, #tpu.memory_space<vmem>>, vector<64x256xbf16>,
    %c239_i32 = arith.constant 239 : i32
    %61 = tpu.dynamic_rotate %13 by %c239_i32 dim 1 : vector<64x256xf32>, i32 -> vector<64x256xf32>
    %c8 = arith.constant 8 : index
    %c0_25 = arith.constant 0 : index
    %62 = vector.load %arg6[%c8, %c0_25] : memref<9x256xf32, #tpu.memory_space<vmem>>, vector<1x256xf32>
    %63 = vector.broadcast %62 : vector<1x256xf32> to vector<64x256xf32>
    %64 = arith.mulf %61, %63 : vector<64x256xf32>
    %65 = arith.truncf %64 : vector<64x256xf32> to vector<64x256xbf16>
    %c512 = arith.constant 512 : index
    %c0_26 = arith.constant 0 : index
    %66 = vector.load %arg9[%c512, %c0_26] : memref<576x256xbf16, #tpu.memory_space<vmem>>, vector<64x256xbf16>
    tpu.vector_store %arg9[%c512, %c0_26], %65 {strides = array<i32>} : memref<576x256xbf16, #tpu.memory_space<vmem>>, vector<64x256xbf16>,
    %c0_27 = arith.constant 0 : index
    %c0_28 = arith.constant 0 : index
    %67 = vector.load %arg4[%c0_27, %c0_28] : memref<128x576xbf16, #tpu.memory_space<vmem>>, vector<128x576xbf16>
    %c0_29 = arith.constant 0 : index
    %c0_30 = arith.constant 0 : index
    %68 = vector.load %arg9[%c0_29, %c0_30] : memref<576x256xbf16, #tpu.memory_space<vmem>>, vector<576x256xbf16>
    %cst_31 = arith.constant dense<0.000000e+00> : vector<128x256xf32>
    %69 = tpu.matmul %67, %68, %cst_31 {dimension_numbers = #tpu.dot_dimension_numbers<[1], [0], [0], [1], [0, 0, 1, 1], [], []>} : vector<128x576xbf16>, vector<576x256xbf16>, vector<128x256xf32> -> vector<128x256xf32>
    %c0_32 = arith.constant 0 : index
    %c0_33 = arith.constant 0 : index
    %70 = vector.load %arg5[%c0_32, %c0_33] : memref<128x1xf32, #tpu.memory_space<vmem>>, vector<128x1xf32>
    %71 = vector.broadcast %70 : vector<128x1xf32> to vector<128x256xf32>
    %72 = arith.addf %69, %71 : vector<128x256xf32>
    %73 = vector.extract_strided_slice %72 {offsets = [0, 0], sizes = [32, 256], strides = [1, 1]} : vector<128x256xf32> to vector<32x256xf32>
    %cst_34 = arith.constant dense<0xFF800000> : vector<256xf32>
    %74 = vector.multi_reduction <maximumf>, %73, %cst_34 [0] : vector<32x256xf32> to vector<256xf32>
    %75 = vector.shape_cast %74 : vector<256xf32> to vector<1x256xf32>
    %76 = vector.broadcast %75 : vector<1x256xf32> to vector<32x256xf32>
    %77 = arith.subf %73, %76 : vector<32x256xf32>
    %78 = math.exp %77 : vector<32x256xf32>
    %cst_35 = arith.constant dense<0.000000e+00> : vector<256xf32>
    %79 = vector.multi_reduction <add>, %78, %cst_35 [0] : vector<32x256xf32> to vector<256xf32>
    %80 = vector.shape_cast %79 : vector<256xf32> to vector<1x256xf32>
    %81 = vector.broadcast %80 : vector<1x256xf32> to vector<32x256xf32>
    %82 = arith.divf %78, %81 : vector<32x256xf32>
    %c0_36 = arith.constant 0 : index
    %c0_37 = arith.constant 0 : index
    %83 = vector.load %arg7[%c0_36, %c0_37] : memref<32x256xf32, #tpu.memory_space<vmem>>, vector<32x256xf32>
    %84 = arith.mulf %82, %83 : vector<32x256xf32>
    %85 = vector.extract_strided_slice %72 {offsets = [32, 0], sizes = [32, 256], strides = [1, 1]} : vector<128x256xf32> to vector<32x256xf32>
    %cst_38 = arith.constant dense<0xFF800000> : vector<256xf32>
    %86 = vector.multi_reduction <maximumf>, %85, %cst_38 [0] : vector<32x256xf32> to vector<256xf32>
    %87 = vector.shape_cast %86 : vector<256xf32> to vector<1x256xf32>
    %88 = vector.broadcast %87 : vector<1x256xf32> to vector<32x256xf32>
    %89 = arith.subf %85, %88 : vector<32x256xf32>
    %90 = math.exp %89 : vector<32x256xf32>
    %cst_39 = arith.constant dense<0.000000e+00> : vector<256xf32>
    %91 = vector.multi_reduction <add>, %90, %cst_39 [0] : vector<32x256xf32> to vector<256xf32>
    %92 = vector.shape_cast %91 : vector<256xf32> to vector<1x256xf32>
    %93 = vector.broadcast %92 : vector<1x256xf32> to vector<32x256xf32>
    %94 = arith.divf %90, %93 : vector<32x256xf32>
    %c0_40 = arith.constant 0 : index
    %c0_41 = arith.constant 0 : index
    %95 = vector.load %arg7[%c0_40, %c0_41] : memref<32x256xf32, #tpu.memory_space<vmem>>, vector<32x256xf32>
    %96 = arith.mulf %94, %95 : vector<32x256xf32>
    %97 = vector.extract_strided_slice %72 {offsets = [64, 0], sizes = [32, 256], strides = [1, 1]} : vector<128x256xf32> to vector<32x256xf32>
    %cst_42 = arith.constant dense<0xFF800000> : vector<256xf32>
    %98 = vector.multi_reduction <maximumf>, %97, %cst_42 [0] : vector<32x256xf32> to vector<256xf32>
    %99 = vector.shape_cast %98 : vector<256xf32> to vector<1x256xf32>
    %100 = vector.broadcast %99 : vector<1x256xf32> to vector<32x256xf32>
    %101 = arith.subf %97, %100 : vector<32x256xf32>
    %102 = math.exp %101 : vector<32x256xf32>
    %cst_43 = arith.constant dense<0.000000e+00> : vector<256xf32>
    %103 = vector.multi_reduction <add>, %102, %cst_43 [0] : vector<32x256xf32> to vector<256xf32>
    %104 = vector.shape_cast %103 : vector<256xf32> to vector<1x256xf32>
    %105 = vector.broadcast %104 : vector<1x256xf32> to vector<32x256xf32>
    %106 = arith.divf %102, %105 : vector<32x256xf32>
    %c0_44 = arith.constant 0 : index
    %c0_45 = arith.constant 0 : index
    %107 = vector.load %arg7[%c0_44, %c0_45] : memref<32x256xf32, #tpu.memory_space<vmem>>, vector<32x256xf32>
    %108 = arith.mulf %106, %107 : vector<32x256xf32>
    %109 = vector.extract_strided_slice %72 {offsets = [96, 0], sizes = [32, 256], strides = [1, 1]} : vector<128x256xf32> to vector<32x256xf32>
    %cst_46 = arith.constant dense<0xFF800000> : vector<256xf32>
    %110 = vector.multi_reduction <maximumf>, %109, %cst_46 [0] : vector<32x256xf32> to vector<256xf32>
    %111 = vector.shape_cast %110 : vector<256xf32> to vector<1x256xf32>
    %112 = vector.broadcast %111 : vector<1x256xf32> to vector<32x256xf32>
    %113 = arith.subf %109, %112 : vector<32x256xf32>
    %114 = math.exp %113 : vector<32x256xf32>
    %cst_47 = arith.constant dense<0.000000e+00> : vector<256xf32>
    %115 = vector.multi_reduction <add>, %114, %cst_47 [0] : vector<32x256xf32> to vector<256xf32>
    %116 = vector.shape_cast %115 : vector<256xf32> to vector<1x256xf32>
    %117 = vector.broadcast %116 : vector<1x256xf32> to vector<32x256xf32>
    %118 = arith.divf %114, %117 : vector<32x256xf32>
    %c0_48 = arith.constant 0 : index
    %c0_49 = arith.constant 0 : index
    %119 = vector.load %arg7[%c0_48, %c0_49] : memref<32x256xf32, #tpu.memory_space<vmem>>, vector<32x256xf32>
    %120 = arith.mulf %118, %119 : vector<32x256xf32>
    %cst_50 = arith.constant 0.000000e+00 : f32
    %121 = vector.broadcast %cst_50 : f32 to vector<16x256xf32>
    %cst_51 = arith.constant 0.000000e+00 : f32
    %122 = vector.broadcast %cst_51 : f32 to vector<16x256xf32>
    %cst_52 = arith.constant 0.000000e+00 : f32
    %123 = vector.broadcast %cst_52 : f32 to vector<16x256xf32>
    %cst_53 = arith.constant 0.000000e+00 : f32
    %124 = vector.broadcast %cst_53 : f32 to vector<16x256xf32>
    %c34_i32 = arith.constant 34 : i32
    %125 = tpu.dynamic_rotate %1 by %c34_i32 dim 1 : vector<16x256xf32>, i32 -> vector<16x256xf32>
    %126 = vector.extract_strided_slice %84 {offsets = [0, 0], sizes = [1, 256], strides = [1, 1]} : vector<32x256xf32> to vector<1x256xf32>
    %127 = vector.broadcast %126 : vector<1x256xf32> to vector<16x256xf32>
    %128 = arith.mulf %125, %127 : vector<16x256xf32>
    %129 = arith.addf %121, %128 : vector<16x256xf32>
    %130 = vector.extract_strided_slice %96 {offsets = [0, 0], sizes = [1, 256], strides = [1, 1]} : vector<32x256xf32> to vector<1x256xf32>
    %131 = vector.broadcast %130 : vector<1x256xf32> to vector<16x256xf32>
    %132 = arith.mulf %125, %131 : vector<16x256xf32>
    %133 = arith.addf %122, %132 : vector<16x256xf32>
    %134 = vector.extract_strided_slice %108 {offsets = [0, 0], sizes = [1, 256], strides = [1, 1]} : vector<32x256xf32> to vector<1x256xf32>
    %135 = vector.broadcast %134 : vector<1x256xf32> to vector<16x256xf32>
    %136 = arith.mulf %125, %135 : vector<16x256xf32>
    %137 = arith.addf %123, %136 : vector<16x256xf32>
    %138 = vector.extract_strided_slice %120 {offsets = [0, 0], sizes = [1, 256], strides = [1, 1]} : vector<32x256xf32> to vector<1x256xf32>
    %139 = vector.broadcast %138 : vector<1x256xf32> to vector<16x256xf32>
    %140 = arith.mulf %125, %139 : vector<16x256xf32>
    %141 = arith.addf %124, %140 : vector<16x256xf32>
    %c33_i32 = arith.constant 33 : i32
    %142 = tpu.dynamic_rotate %1 by %c33_i32 dim 1 : vector<16x256xf32>, i32 -> vector<16x256xf32>
    %143 = vector.extract_strided_slice %84 {offsets = [1, 0], sizes = [1, 256], strides = [1, 1]} : vector<32x256xf32> to vector<1x256xf32>
    %144 = vector.broadcast %143 : vector<1x256xf32> to vector<16x256xf32>
    %145 = arith.mulf %142, %144 : vector<16x256xf32>
    %146 = arith.addf %129, %145 : vector<16x256xf32>
    %147 = vector.extract_strided_slice %96 {offsets = [1, 0], sizes = [1, 256], strides = [1, 1]} : vector<32x256xf32> to vector<1x256xf32>
    %148 = vector.broadcast %147 : vector<1x256xf32> to vector<16x256xf32>
    %149 = arith.mulf %142, %148 : vector<16x256xf32>
    %150 = arith.addf %133, %149 : vector<16x256xf32>
    %151 = vector.extract_strided_slice %108 {offsets = [1, 0], sizes = [1, 256], strides = [1, 1]} : vector<32x256xf32> to vector<1x256xf32>
    %152 = vector.broadcast %151 : vector<1x256xf32> to vector<16x256xf32>
    %153 = arith.mulf %142, %152 : vector<16x256xf32>
    %154 = arith.addf %137, %153 : vector<16x256xf32>
    %155 = vector.extract_strided_slice %120 {offsets = [1, 0], sizes = [1, 256], strides = [1, 1]} : vector<32x256xf32> to vector<1x256xf32>
    %156 = vector.broadcast %155 : vector<1x256xf32> to vector<16x256xf32>
    %157 = arith.mulf %142, %156 : vector<16x256xf32>
    %158 = arith.addf %141, %157 : vector<16x256xf32>
    %c32_i32 = arith.constant 32 : i32
    %159 = tpu.dynamic_rotate %1 by %c32_i32 dim 1 : vector<16x256xf32>, i32 -> vector<16x256xf32>
    %160 = vector.extract_strided_slice %84 {offsets = [2, 0], sizes = [1, 256], strides = [1, 1]} : vector<32x256xf32> to vector<1x256xf32>
    %161 = vector.broadcast %160 : vector<1x256xf32> to vector<16x256xf32>
    %162 = arith.mulf %159, %161 : vector<16x256xf32>
    %163 = arith.addf %146, %162 : vector<16x256xf32>
    %164 = vector.extract_strided_slice %96 {offsets = [2, 0], sizes = [1, 256], strides = [1, 1]} : vector<32x256xf32> to vector<1x256xf32>
    %165 = vector.broadcast %164 : vector<1x256xf32> to vector<16x256xf32>
    %166 = arith.mulf %159, %165 : vector<16x256xf32>
    %167 = arith.addf %150, %166 : vector<16x256xf32>
    %168 = vector.extract_strided_slice %108 {offsets = [2, 0], sizes = [1, 256], strides = [1, 1]} : vector<32x256xf32> to vector<1x256xf32>
    %169 = vector.broadcast %168 : vector<1x256xf32> to vector<16x256xf32>
    %170 = arith.mulf %159, %169 : vector<16x256xf32>
    %171 = arith.addf %154, %170 : vector<16x256xf32>
    %172 = vector.extract_strided_slice %120 {offsets = [2, 0], sizes = [1, 256], strides = [1, 1]} : vector<32x256xf32> to vector<1x256xf32>
    %173 = vector.broadcast %172 : vector<1x256xf32> to vector<16x256xf32>
    %174 = arith.mulf %159, %173 : vector<16x256xf32>
    %175 = arith.addf %158, %174 : vector<16x256xf32>
    %c31_i32 = arith.constant 31 : i32
    %176 = tpu.dynamic_rotate %1 by %c31_i32 dim 1 : vector<16x256xf32>, i32 -> vector<16x256xf32>
    %177 = vector.extract_strided_slice %84 {offsets = [3, 0], sizes = [1, 256], strides = [1, 1]} : vector<32x256xf32> to vector<1x256xf32>
    %178 = vector.broadcast %177 : vector<1x256xf32> to vector<16x256xf32>
    %179 = arith.mulf %176, %178 : vector<16x256xf32>
    %180 = arith.addf %163, %179 : vector<16x256xf32>
    %181 = vector.extract_strided_slice %96 {offsets = [3, 0], sizes = [1, 256], strides = [1, 1]} : vector<32x256xf32> to vector<1x256xf32>
    %182 = vector.broadcast %181 : vector<1x256xf32> to vector<16x256xf32>
    %183 = arith.mulf %176, %182 : vector<16x256xf32>
    %184 = arith.addf %167, %183 : vector<16x256xf32>
    %185 = vector.extract_strided_slice %108 {offsets = [3, 0], sizes = [1, 256], strides = [1, 1]} : vector<32x256xf32> to vector<1x256xf32>
    %186 = vector.broadcast %185 : vector<1x256xf32> to vector<16x256xf32>
    %187 = arith.mulf %176, %186 : vector<16x256xf32>
    %188 = arith.addf %171, %187 : vector<16x256xf32>
    %189 = vector.extract_strided_slice %120 {offsets = [3, 0], sizes = [1, 256], strides = [1, 1]} : vector<32x256xf32> to vector<1x256xf32>
    %190 = vector.broadcast %189 : vector<1x256xf32> to vector<16x256xf32>
    %191 = arith.mulf %176, %190 : vector<16x256xf32>
    %192 = arith.addf %175, %191 : vector<16x256xf32>
    %c30_i32 = arith.constant 30 : i32
    %193 = tpu.dynamic_rotate %1 by %c30_i32 dim 1 : vector<16x256xf32>, i32 -> vector<16x256xf32>
    %194 = vector.extract_strided_slice %84 {offsets = [4, 0], sizes = [1, 256], strides = [1, 1]} : vector<32x256xf32> to vector<1x256xf32>
    %195 = vector.broadcast %194 : vector<1x256xf32> to vector<16x256xf32>
    %196 = arith.mulf %193, %195 : vector<16x256xf32>
    %197 = arith.addf %180, %196 : vector<16x256xf32>
    %198 = vector.extract_strided_slice %96 {offsets = [4, 0], sizes = [1, 256], strides = [1, 1]} : vector<32x256xf32> to vector<1x256xf32>
    %199 = vector.broadcast %198 : vector<1x256xf32> to vector<16x256xf32>
    %200 = arith.mulf %193, %199 : vector<16x256xf32>
    %201 = arith.addf %184, %200 : vector<16x256xf32>
    %202 = vector.extract_strided_slice %108 {offsets = [4, 0], sizes = [1, 256], strides = [1, 1]} : vector<32x256xf32> to vector<1x256xf32>
    %203 = vector.broadcast %202 : vector<1x256xf32> to vector<16x256xf32>
    %204 = arith.mulf %193, %203 : vector<16x256xf32>
    %205 = arith.addf %188, %204 : vector<16x256xf32>
    %206 = vector.extract_strided_slice %120 {offsets = [4, 0], sizes = [1, 256], strides = [1, 1]} : vector<32x256xf32> to vector<1x256xf32>
    %207 = vector.broadcast %206 : vector<1x256xf32> to vector<16x256xf32>
    %208 = arith.mulf %193, %207 : vector<16x256xf32>
    %209 = arith.addf %192, %208 : vector<16x256xf32>
    %c18_i32 = arith.constant 18 : i32
    %210 = tpu.dynamic_rotate %1 by %c18_i32 dim 1 : vector<16x256xf32>, i32 -> vector<16x256xf32>
    %211 = vector.extract_strided_slice %84 {offsets = [5, 0], sizes = [1, 256], strides = [1, 1]} : vector<32x256xf32> to vector<1x256xf32>
    %212 = vector.broadcast %211 : vector<1x256xf32> to vector<16x256xf32>
    %213 = arith.mulf %210, %212 : vector<16x256xf32>
    %214 = arith.addf %197, %213 : vector<16x256xf32>
    %215 = vector.extract_strided_slice %96 {offsets = [5, 0], sizes = [1, 256], strides = [1, 1]} : vector<32x256xf32> to vector<1x256xf32>
    %216 = vector.broadcast %215 : vector<1x256xf32> to vector<16x256xf32>
    %217 = arith.mulf %210, %216 : vector<16x256xf32>
    %218 = arith.addf %201, %217 : vector<16x256xf32>
    %219 = vector.extract_strided_slice %108 {offsets = [5, 0], sizes = [1, 256], strides = [1, 1]} : vector<32x256xf32> to vector<1x256xf32>
    %220 = vector.broadcast %219 : vector<1x256xf32> to vector<16x256xf32>
    %221 = arith.mulf %210, %220 : vector<16x256xf32>
    %222 = arith.addf %205, %221 : vector<16x256xf32>
    %223 = vector.extract_strided_slice %120 {offsets = [5, 0], sizes = [1, 256], strides = [1, 1]} : vector<32x256xf32> to vector<1x256xf32>
    %224 = vector.broadcast %223 : vector<1x256xf32> to vector<16x256xf32>
    %225 = arith.mulf %210, %224 : vector<16x256xf32>
    %226 = arith.addf %209, %225 : vector<16x256xf32>
    %c17_i32_54 = arith.constant 17 : i32
    %227 = tpu.dynamic_rotate %1 by %c17_i32_54 dim 1 : vector<16x256xf32>, i32 -> vector<16x256xf32>
    %228 = vector.extract_strided_slice %84 {offsets = [6, 0], sizes = [1, 256], strides = [1, 1]} : vector<32x256xf32> to vector<1x256xf32>
    %229 = vector.broadcast %228 : vector<1x256xf32> to vector<16x256xf32>
    %230 = arith.mulf %227, %229 : vector<16x256xf32>
    %231 = arith.addf %214, %230 : vector<16x256xf32>
    %232 = vector.extract_strided_slice %96 {offsets = [6, 0], sizes = [1, 256], strides = [1, 1]} : vector<32x256xf32> to vector<1x256xf32>
    %233 = vector.broadcast %232 : vector<1x256xf32> to vector<16x256xf32>
    %234 = arith.mulf %227, %233 : vector<16x256xf32>
    %235 = arith.addf %218, %234 : vector<16x256xf32>
    %236 = vector.extract_strided_slice %108 {offsets = [6, 0], sizes = [1, 256], strides = [1, 1]} : vector<32x256xf32> to vector<1x256xf32>
    %237 = vector.broadcast %236 : vector<1x256xf32> to vector<16x256xf32>
    %238 = arith.mulf %227, %237 : vector<16x256xf32>
    %239 = arith.addf %222, %238 : vector<16x256xf32>
    %240 = vector.extract_strided_slice %120 {offsets = [6, 0], sizes = [1, 256], strides = [1, 1]} : vector<32x256xf32> to vector<1x256xf32>
    %241 = vector.broadcast %240 : vector<1x256xf32> to vector<16x256xf32>
    %242 = arith.mulf %227, %241 : vector<16x256xf32>
    %243 = arith.addf %226, %242 : vector<16x256xf32>
    %c16_i32_55 = arith.constant 16 : i32
    %244 = tpu.dynamic_rotate %1 by %c16_i32_55 dim 1 : vector<16x256xf32>, i32 -> vector<16x256xf32>
    %245 = vector.extract_strided_slice %84 {offsets = [7, 0], sizes = [1, 256], strides = [1, 1]} : vector<32x256xf32> to vector<1x256xf32>
    %246 = vector.broadcast %245 : vector<1x256xf32> to vector<16x256xf32>
    %247 = arith.mulf %244, %246 : vector<16x256xf32>
    %248 = arith.addf %231, %247 : vector<16x256xf32>
    %249 = vector.extract_strided_slice %96 {offsets = [7, 0], sizes = [1, 256], strides = [1, 1]} : vector<32x256xf32> to vector<1x256xf32>
    %250 = vector.broadcast %249 : vector<1x256xf32> to vector<16x256xf32>
    %251 = arith.mulf %244, %250 : vector<16x256xf32>
    %252 = arith.addf %235, %251 : vector<16x256xf32>
    %253 = vector.extract_strided_slice %108 {offsets = [7, 0], sizes = [1, 256], strides = [1, 1]} : vector<32x256xf32> to vector<1x256xf32>
    %254 = vector.broadcast %253 : vector<1x256xf32> to vector<16x256xf32>
    %255 = arith.mulf %244, %254 : vector<16x256xf32>
    %256 = arith.addf %239, %255 : vector<16x256xf32>
    %257 = vector.extract_strided_slice %120 {offsets = [7, 0], sizes = [1, 256], strides = [1, 1]} : vector<32x256xf32> to vector<1x256xf32>
    %258 = vector.broadcast %257 : vector<1x256xf32> to vector<16x256xf32>
    %259 = arith.mulf %244, %258 : vector<16x256xf32>
    %260 = arith.addf %243, %259 : vector<16x256xf32>
    %c15_i32_56 = arith.constant 15 : i32
    %261 = tpu.dynamic_rotate %1 by %c15_i32_56 dim 1 : vector<16x256xf32>, i32 -> vector<16x256xf32>
    %262 = vector.extract_strided_slice %84 {offsets = [8, 0], sizes = [1, 256], strides = [1, 1]} : vector<32x256xf32> to vector<1x256xf32>
    %263 = vector.broadcast %262 : vector<1x256xf32> to vector<16x256xf32>
    %264 = arith.mulf %261, %263 : vector<16x256xf32>
    %265 = arith.addf %248, %264 : vector<16x256xf32>
    %266 = vector.extract_strided_slice %96 {offsets = [8, 0], sizes = [1, 256], strides = [1, 1]} : vector<32x256xf32> to vector<1x256xf32>
    %267 = vector.broadcast %266 : vector<1x256xf32> to vector<16x256xf32>
    %268 = arith.mulf %261, %267 : vector<16x256xf32>
    %269 = arith.addf %252, %268 : vector<16x256xf32>
    %270 = vector.extract_strided_slice %108 {offsets = [8, 0], sizes = [1, 256], strides = [1, 1]} : vector<32x256xf32> to vector<1x256xf32>
    %271 = vector.broadcast %270 : vector<1x256xf32> to vector<16x256xf32>
    %272 = arith.mulf %261, %271 : vector<16x256xf32>
    %273 = arith.addf %256, %272 : vector<16x256xf32>
    %274 = vector.extract_strided_slice %120 {offsets = [8, 0], sizes = [1, 256], strides = [1, 1]} : vector<32x256xf32> to vector<1x256xf32>
    %275 = vector.broadcast %274 : vector<1x256xf32> to vector<16x256xf32>
    %276 = arith.mulf %261, %275 : vector<16x256xf32>
    %277 = arith.addf %260, %276 : vector<16x256xf32>
    %c14_i32 = arith.constant 14 : i32
    %278 = tpu.dynamic_rotate %1 by %c14_i32 dim 1 : vector<16x256xf32>, i32 -> vector<16x256xf32>
    %279 = vector.extract_strided_slice %84 {offsets = [9, 0], sizes = [1, 256], strides = [1, 1]} : vector<32x256xf32> to vector<1x256xf32>
    %280 = vector.broadcast %279 : vector<1x256xf32> to vector<16x256xf32>
    %281 = arith.mulf %278, %280 : vector<16x256xf32>
    %282 = arith.addf %265, %281 : vector<16x256xf32>
    %283 = vector.extract_strided_slice %96 {offsets = [9, 0], sizes = [1, 256], strides = [1, 1]} : vector<32x256xf32> to vector<1x256xf32>
    %284 = vector.broadcast %283 : vector<1x256xf32> to vector<16x256xf32>
    %285 = arith.mulf %278, %284 : vector<16x256xf32>
    %286 = arith.addf %269, %285 : vector<16x256xf32>
    %287 = vector.extract_strided_slice %108 {offsets = [9, 0], sizes = [1, 256], strides = [1, 1]} : vector<32x256xf32> to vector<1x256xf32>
    %288 = vector.broadcast %287 : vector<1x256xf32> to vector<16x256xf32>
    %289 = arith.mulf %278, %288 : vector<16x256xf32>
    %290 = arith.addf %273, %289 : vector<16x256xf32>
    %291 = vector.extract_strided_slice %120 {offsets = [9, 0], sizes = [1, 256], strides = [1, 1]} : vector<32x256xf32> to vector<1x256xf32>
    %292 = vector.broadcast %291 : vector<1x256xf32> to vector<16x256xf32>
    %293 = arith.mulf %278, %292 : vector<16x256xf32>
    %294 = arith.addf %277, %293 : vector<16x256xf32>
    %c2_i32 = arith.constant 2 : i32
    %295 = tpu.dynamic_rotate %1 by %c2_i32 dim 1 : vector<16x256xf32>, i32 -> vector<16x256xf32>
    %296 = vector.extract_strided_slice %84 {offsets = [10, 0], sizes = [1, 256], strides = [1, 1]} : vector<32x256xf32> to vector<1x256xf32>
    %297 = vector.broadcast %296 : vector<1x256xf32> to vector<16x256xf32>
    %298 = arith.mulf %295, %297 : vector<16x256xf32>
    %299 = arith.addf %282, %298 : vector<16x256xf32>
    %300 = vector.extract_strided_slice %96 {offsets = [10, 0], sizes = [1, 256], strides = [1, 1]} : vector<32x256xf32> to vector<1x256xf32>
    %301 = vector.broadcast %300 : vector<1x256xf32> to vector<16x256xf32>
    %302 = arith.mulf %295, %301 : vector<16x256xf32>
    %303 = arith.addf %286, %302 : vector<16x256xf32>
    %304 = vector.extract_strided_slice %108 {offsets = [10, 0], sizes = [1, 256], strides = [1, 1]} : vector<32x256xf32> to vector<1x256xf32>
    %305 = vector.broadcast %304 : vector<1x256xf32> to vector<16x256xf32>
    %306 = arith.mulf %295, %305 : vector<16x256xf32>
    %307 = arith.addf %290, %306 : vector<16x256xf32>
    %308 = vector.extract_strided_slice %120 {offsets = [10, 0], sizes = [1, 256], strides = [1, 1]} : vector<32x256xf32> to vector<1x256xf32>
    %309 = vector.broadcast %308 : vector<1x256xf32> to vector<16x256xf32>
    %310 = arith.mulf %295, %309 : vector<16x256xf32>
    %311 = arith.addf %294, %310 : vector<16x256xf32>
    %c1_i32_57 = arith.constant 1 : i32
    %312 = tpu.dynamic_rotate %1 by %c1_i32_57 dim 1 : vector<16x256xf32>, i32 -> vector<16x256xf32>
    %313 = vector.extract_strided_slice %84 {offsets = [11, 0], sizes = [1, 256], strides = [1, 1]} : vector<32x256xf32> to vector<1x256xf32>
    %314 = vector.broadcast %313 : vector<1x256xf32> to vector<16x256xf32>
    %315 = arith.mulf %312, %314 : vector<16x256xf32>
    %316 = arith.addf %299, %315 : vector<16x256xf32>
    %317 = vector.extract_strided_slice %96 {offsets = [11, 0], sizes = [1, 256], strides = [1, 1]} : vector<32x256xf32> to vector<1x256xf32>
    %318 = vector.broadcast %317 : vector<1x256xf32> to vector<16x256xf32>
    %319 = arith.mulf %312, %318 : vector<16x256xf32>
    %320 = arith.addf %303, %319 : vector<16x256xf32>
    %321 = vector.extract_strided_slice %108 {offsets = [11, 0], sizes = [1, 256], strides = [1, 1]} : vector<32x256xf32> to vector<1x256xf32>
    %322 = vector.broadcast %321 : vector<1x256xf32> to vector<16x256xf32>
    %323 = arith.mulf %312, %322 : vector<16x256xf32>
    %324 = arith.addf %307, %323 : vector<16x256xf32>
    %325 = vector.extract_strided_slice %120 {offsets = [11, 0], sizes = [1, 256], strides = [1, 1]} : vector<32x256xf32> to vector<1x256xf32>
    %326 = vector.broadcast %325 : vector<1x256xf32> to vector<16x256xf32>
    %327 = arith.mulf %312, %326 : vector<16x256xf32>
    %328 = arith.addf %311, %327 : vector<16x256xf32>
    %329 = vector.extract_strided_slice %84 {offsets = [12, 0], sizes = [1, 256], strides = [1, 1]} : vector<32x256xf32> to vector<1x256xf32>
    %330 = vector.broadcast %329 : vector<1x256xf32> to vector<16x256xf32>
    %331 = arith.mulf %1, %330 : vector<16x256xf32>
    %332 = arith.addf %316, %331 : vector<16x256xf32>
    %333 = vector.extract_strided_slice %96 {offsets = [12, 0], sizes = [1, 256], strides = [1, 1]} : vector<32x256xf32> to vector<1x256xf32>
    %334 = vector.broadcast %333 : vector<1x256xf32> to vector<16x256xf32>
    %335 = arith.mulf %1, %334 : vector<16x256xf32>
    %336 = arith.addf %320, %335 : vector<16x256xf32>
    %337 = vector.extract_strided_slice %108 {offsets = [12, 0], sizes = [1, 256], strides = [1, 1]} : vector<32x256xf32> to vector<1x256xf32>
    %338 = vector.broadcast %337 : vector<1x256xf32> to vector<16x256xf32>
    %339 = arith.mulf %1, %338 : vector<16x256xf32>
    %340 = arith.addf %324, %339 : vector<16x256xf32>
    %341 = vector.extract_strided_slice %120 {offsets = [12, 0], sizes = [1, 256], strides = [1, 1]} : vector<32x256xf32> to vector<1x256xf32>
    %342 = vector.broadcast %341 : vector<1x256xf32> to vector<16x256xf32>
    %343 = arith.mulf %1, %342 : vector<16x256xf32>
    %344 = arith.addf %328, %343 : vector<16x256xf32>
    %c255_i32_58 = arith.constant 255 : i32
    %345 = tpu.dynamic_rotate %1 by %c255_i32_58 dim 1 : vector<16x256xf32>, i32 -> vector<16x256xf32>
    %346 = vector.extract_strided_slice %84 {offsets = [13, 0], sizes = [1, 256], strides = [1, 1]} : vector<32x256xf32> to vector<1x256xf32>
    %347 = vector.broadcast %346 : vector<1x256xf32> to vector<16x256xf32>
    %348 = arith.mulf %345, %347 : vector<16x256xf32>
    %349 = arith.addf %332, %348 : vector<16x256xf32>
    %350 = vector.extract_strided_slice %96 {offsets = [13, 0], sizes = [1, 256], strides = [1, 1]} : vector<32x256xf32> to vector<1x256xf32>
    %351 = vector.broadcast %350 : vector<1x256xf32> to vector<16x256xf32>
    %352 = arith.mulf %345, %351 : vector<16x256xf32>
    %353 = arith.addf %336, %352 : vector<16x256xf32>
    %354 = vector.extract_strided_slice %108 {offsets = [13, 0], sizes = [1, 256], strides = [1, 1]} : vector<32x256xf32> to vector<1x256xf32>
    %355 = vector.broadcast %354 : vector<1x256xf32> to vector<16x256xf32>
    %356 = arith.mulf %345, %355 : vector<16x256xf32>
    %357 = arith.addf %340, %356 : vector<16x256xf32>
    %358 = vector.extract_strided_slice %120 {offsets = [13, 0], sizes = [1, 256], strides = [1, 1]} : vector<32x256xf32> to vector<1x256xf32>
    %359 = vector.broadcast %358 : vector<1x256xf32> to vector<16x256xf32>
    %360 = arith.mulf %345, %359 : vector<16x256xf32>
    %361 = arith.addf %344, %360 : vector<16x256xf32>
    %c254_i32 = arith.constant 254 : i32
    %362 = tpu.dynamic_rotate %1 by %c254_i32 dim 1 : vector<16x256xf32>, i32 -> vector<16x256xf32>
    %363 = vector.extract_strided_slice %84 {offsets = [14, 0], sizes = [1, 256], strides = [1, 1]} : vector<32x256xf32> to vector<1x256xf32>
    %364 = vector.broadcast %363 : vector<1x256xf32> to vector<16x256xf32>
    %365 = arith.mulf %362, %364 : vector<16x256xf32>
    %366 = arith.addf %349, %365 : vector<16x256xf32>
    %367 = vector.extract_strided_slice %96 {offsets = [14, 0], sizes = [1, 256], strides = [1, 1]} : vector<32x256xf32> to vector<1x256xf32>
    %368 = vector.broadcast %367 : vector<1x256xf32> to vector<16x256xf32>
    %369 = arith.mulf %362, %368 : vector<16x256xf32>
    %370 = arith.addf %353, %369 : vector<16x256xf32>
    %371 = vector.extract_strided_slice %108 {offsets = [14, 0], sizes = [1, 256], strides = [1, 1]} : vector<32x256xf32> to vector<1x256xf32>
    %372 = vector.broadcast %371 : vector<1x256xf32> to vector<16x256xf32>
    %373 = arith.mulf %362, %372 : vector<16x256xf32>
    %374 = arith.addf %357, %373 : vector<16x256xf32>
    %375 = vector.extract_strided_slice %120 {offsets = [14, 0], sizes = [1, 256], strides = [1, 1]} : vector<32x256xf32> to vector<1x256xf32>
    %376 = vector.broadcast %375 : vector<1x256xf32> to vector<16x256xf32>
    %377 = arith.mulf %362, %376 : vector<16x256xf32>
    %378 = arith.addf %361, %377 : vector<16x256xf32>
    %c242_i32 = arith.constant 242 : i32
    %379 = tpu.dynamic_rotate %1 by %c242_i32 dim 1 : vector<16x256xf32>, i32 -> vector<16x256xf32>
    %380 = vector.extract_strided_slice %84 {offsets = [15, 0], sizes = [1, 256], strides = [1, 1]} : vector<32x256xf32> to vector<1x256xf32>
    %381 = vector.broadcast %380 : vector<1x256xf32> to vector<16x256xf32>
    %382 = arith.mulf %379, %381 : vector<16x256xf32>
    %383 = arith.addf %366, %382 : vector<16x256xf32>
    %384 = vector.extract_strided_slice %96 {offsets = [15, 0], sizes = [1, 256], strides = [1, 1]} : vector<32x256xf32> to vector<1x256xf32>
    %385 = vector.broadcast %384 : vector<1x256xf32> to vector<16x256xf32>
    %386 = arith.mulf %379, %385 : vector<16x256xf32>
    %387 = arith.addf %370, %386 : vector<16x256xf32>
    %388 = vector.extract_strided_slice %108 {offsets = [15, 0], sizes = [1, 256], strides = [1, 1]} : vector<32x256xf32> to vector<1x256xf32>
    %389 = vector.broadcast %388 : vector<1x256xf32> to vector<16x256xf32>
    %390 = arith.mulf %379, %389 : vector<16x256xf32>
    %391 = arith.addf %374, %390 : vector<16x256xf32>
    %392 = vector.extract_strided_slice %120 {offsets = [15, 0], sizes = [1, 256], strides = [1, 1]} : vector<32x256xf32> to vector<1x256xf32>
    %393 = vector.broadcast %392 : vector<1x256xf32> to vector<16x256xf32>
    %394 = arith.mulf %379, %393 : vector<16x256xf32>
    %395 = arith.addf %378, %394 : vector<16x256xf32>
    %c241_i32_59 = arith.constant 241 : i32
    %396 = tpu.dynamic_rotate %1 by %c241_i32_59 dim 1 : vector<16x256xf32>, i32 -> vector<16x256xf32>
    %397 = vector.extract_strided_slice %84 {offsets = [16, 0], sizes = [1, 256], strides = [1, 1]} : vector<32x256xf32> to vector<1x256xf32>
    %398 = vector.broadcast %397 : vector<1x256xf32> to vector<16x256xf32>
    %399 = arith.mulf %396, %398 : vector<16x256xf32>
    %400 = arith.addf %383, %399 : vector<16x256xf32>
    %401 = vector.extract_strided_slice %96 {offsets = [16, 0], sizes = [1, 256], strides = [1, 1]} : vector<32x256xf32> to vector<1x256xf32>
    %402 = vector.broadcast %401 : vector<1x256xf32> to vector<16x256xf32>
    %403 = arith.mulf %396, %402 : vector<16x256xf32>
    %404 = arith.addf %387, %403 : vector<16x256xf32>
    %405 = vector.extract_strided_slice %108 {offsets = [16, 0], sizes = [1, 256], strides = [1, 1]} : vector<32x256xf32> to vector<1x256xf32>
    %406 = vector.broadcast %405 : vector<1x256xf32> to vector<16x256xf32>
    %407 = arith.mulf %396, %406 : vector<16x256xf32>
    %408 = arith.addf %391, %407 : vector<16x256xf32>
    %409 = vector.extract_strided_slice %120 {offsets = [16, 0], sizes = [1, 256], strides = [1, 1]} : vector<32x256xf32> to vector<1x256xf32>
    %410 = vector.broadcast %409 : vector<1x256xf32> to vector<16x256xf32>
    %411 = arith.mulf %396, %410 : vector<16x256xf32>
    %412 = arith.addf %395, %411 : vector<16x256xf32>
    %c240_i32_60 = arith.constant 240 : i32
    %413 = tpu.dynamic_rotate %1 by %c240_i32_60 dim 1 : vector<16x256xf32>, i32 -> vector<16x256xf32>
    %414 = vector.extract_strided_slice %84 {offsets = [17, 0], sizes = [1, 256], strides = [1, 1]} : vector<32x256xf32> to vector<1x256xf32>
    %415 = vector.broadcast %414 : vector<1x256xf32> to vector<16x256xf32>
    %416 = arith.mulf %413, %415 : vector<16x256xf32>
    %417 = arith.addf %400, %416 : vector<16x256xf32>
    %418 = vector.extract_strided_slice %96 {offsets = [17, 0], sizes = [1, 256], strides = [1, 1]} : vector<32x256xf32> to vector<1x256xf32>
    %419 = vector.broadcast %418 : vector<1x256xf32> to vector<16x256xf32>
    %420 = arith.mulf %413, %419 : vector<16x256xf32>
    %421 = arith.addf %404, %420 : vector<16x256xf32>
    %422 = vector.extract_strided_slice %108 {offsets = [17, 0], sizes = [1, 256], strides = [1, 1]} : vector<32x256xf32> to vector<1x256xf32>
    %423 = vector.broadcast %422 : vector<1x256xf32> to vector<16x256xf32>
    %424 = arith.mulf %413, %423 : vector<16x256xf32>
    %425 = arith.addf %408, %424 : vector<16x256xf32>
    %426 = vector.extract_strided_slice %120 {offsets = [17, 0], sizes = [1, 256], strides = [1, 1]} : vector<32x256xf32> to vector<1x256xf32>
    %427 = vector.broadcast %426 : vector<1x256xf32> to vector<16x256xf32>
    %428 = arith.mulf %413, %427 : vector<16x256xf32>
    %429 = arith.addf %412, %428 : vector<16x256xf32>
    %c239_i32_61 = arith.constant 239 : i32
    %430 = tpu.dynamic_rotate %1 by %c239_i32_61 dim 1 : vector<16x256xf32>, i32 -> vector<16x256xf32>
    %431 = vector.extract_strided_slice %84 {offsets = [18, 0], sizes = [1, 256], strides = [1, 1]} : vector<32x256xf32> to vector<1x256xf32>
    %432 = vector.broadcast %431 : vector<1x256xf32> to vector<16x256xf32>
    %433 = arith.mulf %430, %432 : vector<16x256xf32>
    %434 = arith.addf %417, %433 : vector<16x256xf32>
    %435 = vector.extract_strided_slice %96 {offsets = [18, 0], sizes = [1, 256], strides = [1, 1]} : vector<32x256xf32> to vector<1x256xf32>
    %436 = vector.broadcast %435 : vector<1x256xf32> to vector<16x256xf32>
    %437 = arith.mulf %430, %436 : vector<16x256xf32>
    %438 = arith.addf %421, %437 : vector<16x256xf32>
    %439 = vector.extract_strided_slice %108 {offsets = [18, 0], sizes = [1, 256], strides = [1, 1]} : vector<32x256xf32> to vector<1x256xf32>
    %440 = vector.broadcast %439 : vector<1x256xf32> to vector<16x256xf32>
    %441 = arith.mulf %430, %440 : vector<16x256xf32>
    %442 = arith.addf %425, %441 : vector<16x256xf32>
    %443 = vector.extract_strided_slice %120 {offsets = [18, 0], sizes = [1, 256], strides = [1, 1]} : vector<32x256xf32> to vector<1x256xf32>
    %444 = vector.broadcast %443 : vector<1x256xf32> to vector<16x256xf32>
    %445 = arith.mulf %430, %444 : vector<16x256xf32>
    %446 = arith.addf %429, %445 : vector<16x256xf32>
    %c238_i32 = arith.constant 238 : i32
    %447 = tpu.dynamic_rotate %1 by %c238_i32 dim 1 : vector<16x256xf32>, i32 -> vector<16x256xf32>
    %448 = vector.extract_strided_slice %84 {offsets = [19, 0], sizes = [1, 256], strides = [1, 1]} : vector<32x256xf32> to vector<1x256xf32>
    %449 = vector.broadcast %448 : vector<1x256xf32> to vector<16x256xf32>
    %450 = arith.mulf %447, %449 : vector<16x256xf32>
    %451 = arith.addf %434, %450 : vector<16x256xf32>
    %452 = vector.extract_strided_slice %96 {offsets = [19, 0], sizes = [1, 256], strides = [1, 1]} : vector<32x256xf32> to vector<1x256xf32>
    %453 = vector.broadcast %452 : vector<1x256xf32> to vector<16x256xf32>
    %454 = arith.mulf %447, %453 : vector<16x256xf32>
    %455 = arith.addf %438, %454 : vector<16x256xf32>
    %456 = vector.extract_strided_slice %108 {offsets = [19, 0], sizes = [1, 256], strides = [1, 1]} : vector<32x256xf32> to vector<1x256xf32>
    %457 = vector.broadcast %456 : vector<1x256xf32> to vector<16x256xf32>
    %458 = arith.mulf %447, %457 : vector<16x256xf32>
    %459 = arith.addf %442, %458 : vector<16x256xf32>
    %460 = vector.extract_strided_slice %120 {offsets = [19, 0], sizes = [1, 256], strides = [1, 1]} : vector<32x256xf32> to vector<1x256xf32>
    %461 = vector.broadcast %460 : vector<1x256xf32> to vector<16x256xf32>
    %462 = arith.mulf %447, %461 : vector<16x256xf32>
    %463 = arith.addf %446, %462 : vector<16x256xf32>
    %c226_i32 = arith.constant 226 : i32
    %464 = tpu.dynamic_rotate %1 by %c226_i32 dim 1 : vector<16x256xf32>, i32 -> vector<16x256xf32>
    %465 = vector.extract_strided_slice %84 {offsets = [20, 0], sizes = [1, 256], strides = [1, 1]} : vector<32x256xf32> to vector<1x256xf32>
    %466 = vector.broadcast %465 : vector<1x256xf32> to vector<16x256xf32>
    %467 = arith.mulf %464, %466 : vector<16x256xf32>
    %468 = arith.addf %451, %467 : vector<16x256xf32>
    %469 = vector.extract_strided_slice %96 {offsets = [20, 0], sizes = [1, 256], strides = [1, 1]} : vector<32x256xf32> to vector<1x256xf32>
    %470 = vector.broadcast %469 : vector<1x256xf32> to vector<16x256xf32>
    %471 = arith.mulf %464, %470 : vector<16x256xf32>
    %472 = arith.addf %455, %471 : vector<16x256xf32>
    %473 = vector.extract_strided_slice %108 {offsets = [20, 0], sizes = [1, 256], strides = [1, 1]} : vector<32x256xf32> to vector<1x256xf32>
    %474 = vector.broadcast %473 : vector<1x256xf32> to vector<16x256xf32>
    %475 = arith.mulf %464, %474 : vector<16x256xf32>
    %476 = arith.addf %459, %475 : vector<16x256xf32>
    %477 = vector.extract_strided_slice %120 {offsets = [20, 0], sizes = [1, 256], strides = [1, 1]} : vector<32x256xf32> to vector<1x256xf32>
    %478 = vector.broadcast %477 : vector<1x256xf32> to vector<16x256xf32>
    %479 = arith.mulf %464, %478 : vector<16x256xf32>
    %480 = arith.addf %463, %479 : vector<16x256xf32>
    %c225_i32 = arith.constant 225 : i32
    %481 = tpu.dynamic_rotate %1 by %c225_i32 dim 1 : vector<16x256xf32>, i32 -> vector<16x256xf32>
    %482 = vector.extract_strided_slice %84 {offsets = [21, 0], sizes = [1, 256], strides = [1, 1]} : vector<32x256xf32> to vector<1x256xf32>
    %483 = vector.broadcast %482 : vector<1x256xf32> to vector<16x256xf32>
    %484 = arith.mulf %481, %483 : vector<16x256xf32>
    %485 = arith.addf %468, %484 : vector<16x256xf32>
    %486 = vector.extract_strided_slice %96 {offsets = [21, 0], sizes = [1, 256], strides = [1, 1]} : vector<32x256xf32> to vector<1x256xf32>
    %487 = vector.broadcast %486 : vector<1x256xf32> to vector<16x256xf32>
    %488 = arith.mulf %481, %487 : vector<16x256xf32>
    %489 = arith.addf %472, %488 : vector<16x256xf32>
    %490 = vector.extract_strided_slice %108 {offsets = [21, 0], sizes = [1, 256], strides = [1, 1]} : vector<32x256xf32> to vector<1x256xf32>
    %491 = vector.broadcast %490 : vector<1x256xf32> to vector<16x256xf32>
    %492 = arith.mulf %481, %491 : vector<16x256xf32>
    %493 = arith.addf %476, %492 : vector<16x256xf32>
    %494 = vector.extract_strided_slice %120 {offsets = [21, 0], sizes = [1, 256], strides = [1, 1]} : vector<32x256xf32> to vector<1x256xf32>
    %495 = vector.broadcast %494 : vector<1x256xf32> to vector<16x256xf32>
    %496 = arith.mulf %481, %495 : vector<16x256xf32>
    %497 = arith.addf %480, %496 : vector<16x256xf32>
    %c224_i32 = arith.constant 224 : i32
    %498 = tpu.dynamic_rotate %1 by %c224_i32 dim 1 : vector<16x256xf32>, i32 -> vector<16x256xf32>
    %499 = vector.extract_strided_slice %84 {offsets = [22, 0], sizes = [1, 256], strides = [1, 1]} : vector<32x256xf32> to vector<1x256xf32>
    %500 = vector.broadcast %499 : vector<1x256xf32> to vector<16x256xf32>
    %501 = arith.mulf %498, %500 : vector<16x256xf32>
    %502 = arith.addf %485, %501 : vector<16x256xf32>
    %503 = vector.extract_strided_slice %96 {offsets = [22, 0], sizes = [1, 256], strides = [1, 1]} : vector<32x256xf32> to vector<1x256xf32>
    %504 = vector.broadcast %503 : vector<1x256xf32> to vector<16x256xf32>
    %505 = arith.mulf %498, %504 : vector<16x256xf32>
    %506 = arith.addf %489, %505 : vector<16x256xf32>
    %507 = vector.extract_strided_slice %108 {offsets = [22, 0], sizes = [1, 256], strides = [1, 1]} : vector<32x256xf32> to vector<1x256xf32>
    %508 = vector.broadcast %507 : vector<1x256xf32> to vector<16x256xf32>
    %509 = arith.mulf %498, %508 : vector<16x256xf32>
    %510 = arith.addf %493, %509 : vector<16x256xf32>
    %511 = vector.extract_strided_slice %120 {offsets = [22, 0], sizes = [1, 256], strides = [1, 1]} : vector<32x256xf32> to vector<1x256xf32>
    %512 = vector.broadcast %511 : vector<1x256xf32> to vector<16x256xf32>
    %513 = arith.mulf %498, %512 : vector<16x256xf32>
    %514 = arith.addf %497, %513 : vector<16x256xf32>
    %c223_i32 = arith.constant 223 : i32
    %515 = tpu.dynamic_rotate %1 by %c223_i32 dim 1 : vector<16x256xf32>, i32 -> vector<16x256xf32>
    %516 = vector.extract_strided_slice %84 {offsets = [23, 0], sizes = [1, 256], strides = [1, 1]} : vector<32x256xf32> to vector<1x256xf32>
    %517 = vector.broadcast %516 : vector<1x256xf32> to vector<16x256xf32>
    %518 = arith.mulf %515, %517 : vector<16x256xf32>
    %519 = arith.addf %502, %518 : vector<16x256xf32>
    %520 = vector.extract_strided_slice %96 {offsets = [23, 0], sizes = [1, 256], strides = [1, 1]} : vector<32x256xf32> to vector<1x256xf32>
    %521 = vector.broadcast %520 : vector<1x256xf32> to vector<16x256xf32>
    %522 = arith.mulf %515, %521 : vector<16x256xf32>
    %523 = arith.addf %506, %522 : vector<16x256xf32>
    %524 = vector.extract_strided_slice %108 {offsets = [23, 0], sizes = [1, 256], strides = [1, 1]} : vector<32x256xf32> to vector<1x256xf32>
    %525 = vector.broadcast %524 : vector<1x256xf32> to vector<16x256xf32>
    %526 = arith.mulf %515, %525 : vector<16x256xf32>
    %527 = arith.addf %510, %526 : vector<16x256xf32>
    %528 = vector.extract_strided_slice %120 {offsets = [23, 0], sizes = [1, 256], strides = [1, 1]} : vector<32x256xf32> to vector<1x256xf32>
    %529 = vector.broadcast %528 : vector<1x256xf32> to vector<16x256xf32>
    %530 = arith.mulf %515, %529 : vector<16x256xf32>
    %531 = arith.addf %514, %530 : vector<16x256xf32>
    %c222_i32 = arith.constant 222 : i32
    %532 = tpu.dynamic_rotate %1 by %c222_i32 dim 1 : vector<16x256xf32>, i32 -> vector<16x256xf32>
    %533 = vector.extract_strided_slice %84 {offsets = [24, 0], sizes = [1, 256], strides = [1, 1]} : vector<32x256xf32> to vector<1x256xf32>
    %534 = vector.broadcast %533 : vector<1x256xf32> to vector<16x256xf32>
    %535 = arith.mulf %532, %534 : vector<16x256xf32>
    %536 = arith.addf %519, %535 : vector<16x256xf32>
    %537 = vector.extract_strided_slice %96 {offsets = [24, 0], sizes = [1, 256], strides = [1, 1]} : vector<32x256xf32> to vector<1x256xf32>
    %538 = vector.broadcast %537 : vector<1x256xf32> to vector<16x256xf32>
    %539 = arith.mulf %532, %538 : vector<16x256xf32>
    %540 = arith.addf %523, %539 : vector<16x256xf32>
    %541 = vector.extract_strided_slice %108 {offsets = [24, 0], sizes = [1, 256], strides = [1, 1]} : vector<32x256xf32> to vector<1x256xf32>
    %542 = vector.broadcast %541 : vector<1x256xf32> to vector<16x256xf32>
    %543 = arith.mulf %532, %542 : vector<16x256xf32>
    %544 = arith.addf %527, %543 : vector<16x256xf32>
    %545 = vector.extract_strided_slice %120 {offsets = [24, 0], sizes = [1, 256], strides = [1, 1]} : vector<32x256xf32> to vector<1x256xf32>
    %546 = vector.broadcast %545 : vector<1x256xf32> to vector<16x256xf32>
    %547 = arith.mulf %532, %546 : vector<16x256xf32>
    %548 = arith.addf %531, %547 : vector<16x256xf32>
    %c0_62 = arith.constant 0 : index
    %c0_63 = arith.constant 0 : index
    %c0_64 = arith.constant 0 : index
    %c0_65 = arith.constant 0 : index
    %549 = vector.load %arg8[%c0_62, %c0_63, %c0_64, %c0_65] : memref<1x4x16x256xf32, #tpu.memory_space<vmem>>, vector<1x1x16x256xf32>
    %550 = vector.shape_cast %549 : vector<1x1x16x256xf32> to vector<16x256xf32>
    %551 = vector.shape_cast %536 : vector<16x256xf32> to vector<1x1x16x256xf32>
    tpu.vector_store %arg8[%c0_62, %c0_63, %c0_64, %c0_65], %551 {strides = array<i32>} : memref<1x4x16x256xf32, #tpu.memory_space<vmem>>, vector<1x1x16x256xf32>,
    %c0_66 = arith.constant 0 : index
    %c1_67 = arith.constant 1 : index
    %c0_68 = arith.constant 0 : index
    %c0_69 = arith.constant 0 : index
    %552 = vector.load %arg8[%c0_66, %c1_67, %c0_68, %c0_69] : memref<1x4x16x256xf32, #tpu.memory_space<vmem>>, vector<1x1x16x256xf32>
    %553 = vector.shape_cast %552 : vector<1x1x16x256xf32> to vector<16x256xf32>
    %554 = vector.shape_cast %540 : vector<16x256xf32> to vector<1x1x16x256xf32>
    tpu.vector_store %arg8[%c0_66, %c1_67, %c0_68, %c0_69], %554 {strides = array<i32>} : memref<1x4x16x256xf32, #tpu.memory_space<vmem>>, vector<1x1x16x256xf32>,
    %c0_70 = arith.constant 0 : index
    %c2_71 = arith.constant 2 : index
    %c0_72 = arith.constant 0 : index
    %c0_73 = arith.constant 0 : index
    %555 = vector.load %arg8[%c0_70, %c2_71, %c0_72, %c0_73] : memref<1x4x16x256xf32, #tpu.memory_space<vmem>>, vector<1x1x16x256xf32>
    %556 = vector.shape_cast %555 : vector<1x1x16x256xf32> to vector<16x256xf32>
    %557 = vector.shape_cast %544 : vector<16x256xf32> to vector<1x1x16x256xf32>
    tpu.vector_store %arg8[%c0_70, %c2_71, %c0_72, %c0_73], %557 {strides = array<i32>} : memref<1x4x16x256xf32, #tpu.memory_space<vmem>>, vector<1x1x16x256xf32>,
    %c0_74 = arith.constant 0 : index
    %c3_75 = arith.constant 3 : index
    %c0_76 = arith.constant 0 : index
    %c0_77 = arith.constant 0 : index
    %558 = vector.load %arg8[%c0_74, %c3_75, %c0_76, %c0_77] : memref<1x4x16x256xf32, #tpu.memory_space<vmem>>, vector<1x1x16x256xf32>
    %559 = vector.shape_cast %558 : vector<1x1x16x256xf32> to vector<16x256xf32>
    %560 = vector.shape_cast %548 : vector<16x256xf32> to vector<1x1x16x256xf32>
    tpu.vector_store %arg8[%c0_74, %c3_75, %c0_76, %c0_77], %560 {strides = array<i32>} : memref<1x4x16x256xf32, #tpu.memory_space<vmem>>, vector<1x1x16x256xf32>,
    return
  }
  func.func @transform_0(%arg0: i32) -> (i32, i32, i32) {
    %c0_i32 = arith.constant 0 : i32
    %c0_i32_0 = arith.constant 0 : i32
    %c0_i32_1 = arith.constant 0 : i32
    return %arg0, %c0_i32, %c0_i32_0 : i32, i32, i32
  }
  func.func @transform_1(%arg0: i32) -> (i32, i32) {
    %c0_i32 = arith.constant 0 : i32
    %c0_i32_0 = arith.constant 0 : i32
    %c0_i32_1 = arith.constant 0 : i32
    return %c0_i32, %c0_i32_0 : i32, i32
  }
  func.func @transform_2(%arg0: i32) -> (i32, i32) {
    %c0_i32 = arith.constant 0 : i32
    %c0_i32_0 = arith.constant 0 : i32
    %c0_i32_1 = arith.constant 0 : i32
    return %c0_i32, %c0_i32_0 : i32, i32
  }
  func.func @transform_3(%arg0: i32) -> (i32, i32) {
    %c0_i32 = arith.constant 0 : i32
    %c0_i32_0 = arith.constant 0 : i32
    %c0_i32_1 = arith.constant 0 : i32
    return %c0_i32, %c0_i32_0 : i32, i32
  }
  func.func @transform_4(%arg0: i32) -> (i32, i32) {
    %c0_i32 = arith.constant 0 : i32
    %c0_i32_0 = arith.constant 0 : i32
    %c0_i32_1 = arith.constant 0 : i32
    return %c0_i32, %c0_i32_0 : i32, i32
  }
  func.func @transform_5(%arg0: i32) -> (i32, i32) {
    %c0_i32 = arith.constant 0 : i32
    %c0_i32_0 = arith.constant 0 : i32
    %c0_i32_1 = arith.constant 0 : i32
    return %c0_i32, %c0_i32_0 : i32, i32
  }
  func.func @transform_6(%arg0: i32) -> (i32, i32) {
    %c0_i32 = arith.constant 0 : i32
    %c0_i32_0 = arith.constant 0 : i32
    %c0_i32_1 = arith.constant 0 : i32
    return %c0_i32, %c0_i32_0 : i32, i32
  }
  func.func @transform_7(%arg0: i32) -> (i32, i32, i32, i32) {
    %c0_i32 = arith.constant 0 : i32
    %c0_i32_0 = arith.constant 0 : i32
    %c0_i32_1 = arith.constant 0 : i32
    %c0_i32_2 = arith.constant 0 : i32
    return %arg0, %c0_i32, %c0_i32_0, %c0_i32_1 : i32, i32, i32, i32
  }
}

</mosaic_0001>

<llo_original>
// kernel: carafe_forward.1
$region0: #{carafe_forward.1}
  #allocation0 [shape = 'u32[]', space=smem, size = 0x4, offset = 0x4, fixed_abs, tag = 'smem constant byte address 0x4 - core index']
  #allocation1 [shape = 'u32[72,128]{1,0:T(1,128)}', space=vmem, size = 0x9000, scoped, tag = 'internal scratch']
  #allocation2 [shape = 'bf16[576,256]{1,0:T(8,128)(2,1)}', space=vmem, size = 0x48000, scoped, tag = 'scratch operand']
  %s0 = inlined_call_operand.vmem [shape: f32[2,16,256], index: 0, kind: input, shape index: {}]
  %s1 = inlined_call_operand.vmem [shape: bf16[64,16], index: 1, kind: input, shape index: {}]
  %s2 = inlined_call_operand.vmem [shape: f32[64,1], index: 2, kind: input, shape index: {}]
  %s3 = inlined_call_operand.vmem [shape: bf16[128,576], index: 3, kind: input, shape index: {}]
  %s4 = inlined_call_operand.vmem [shape: f32[128,1], index: 4, kind: input, shape index: {}]
  %s5 = inlined_call_operand.vmem [shape: f32[9,256], index: 5, kind: input, shape index: {}]
  %s6 = inlined_call_operand.vmem [shape: f32[32,256], index: 6, kind: input, shape index: {}]
  %s7 = inlined_call_operand.vmem [shape: f32[2,4,16,256], index: 7, kind: output, shape index: {}]
  %s8 = sld [smem:[#allocation0]]
  $region61: #{carafe_forward.1} parent=0
    _
  %s10 = ssub.s32 1, %s8
  %s11 = scalar_select 0, %s10, %s8
  loop: start=0, step=1, limit=4
  $region2: #{carafe_forward.1} parent=0 // loop_pre_header
    _
  $region3: #{carafe_forward.1} parent=0 // loop_header
    %s13 = sphi 0, %s17
    %p14 = scmp.ge.s32.totalorder %s13, 4
    %s23 = sphi 0, %s25
    %s26 = sphi 0, %s23
    %s27 = sphi 0, %s26
    %s43 = sphi 0, %s27
    %s47 = sphi 0, %s47
    %s49 = sphi 0, %s47
    %s50 = sphi 0, %s49
    %s64 = sphi 0, %s50
    %s68 = sphi 0, %s68
    %s70 = sphi 0, %s68
    %s71 = sphi 0, %s70
    %s85 = sphi 0, %s71
    %s89 = sphi 0, %s89
    %s91 = sphi 0, %s89
    %s92 = sphi 0, %s91
    %s106 = sphi 0, %s92
    %s110 = sphi 0, %s110
    %s112 = sphi 0, %s110
    %s113 = sphi 0, %s112
    %s127 = sphi 0, %s113
    %s131 = sphi 0, %s131
    %s133 = sphi 0, %s131
    %s134 = sphi 0, %s133
    %s148 = sphi 0, %s134
    %s152 = sphi 0, %s152
    %s154 = sphi 0, %s152
    %s155 = sphi 0, %s154
    %s169 = sphi 0, %s155
    %s175 = sphi 0, %s177
    %s178 = sphi 0, %s175
    %s179 = sphi 0, %s178
    %s195 = sphi 0, %s179
  $region4: #{carafe_forward.1} parent=0 // loop_header_branch
    %16 = sbr.rel (%p14) target = $region8
  $region5: #{carafe_forward.1} parent=0 // loop_body
    %s18 = ssub.s32 %s13, 1
    %s19 = ssub.s32 %s13, 2
    %s20 = sadd.s32 %s13, 1
    %s21 = ssub.s32 %s13, %s20
    %p22 = scmp.eq.s32.totalorder %s21, 0
    %s24 = sadd.s32 %s23, 1
    %s25 = scalar_select %p22, %s23, %s24
    %p28 = pneg %p22
    %p29 = scmp.eq.s32.totalorder %s13, 1
    %p30 = por %p28, %p29
    %p31 = scmp.ne.s32.totalorder %s23, %s26
    %p32 = scmp.eq.s32.totalorder %s13, 0
    %p33 = por %p31, %p32
    %p34 = scmp.ne.s32.totalorder %s23, %s26
    %p35 = scmp.eq.s32.totalorder %s18, 1
    %p36 = por %p34, %p35
    %p37 = scmp.ne.s32.totalorder %s26, %s27
    %p38 = scmp.eq.s32.totalorder %s18, 0
    %p39 = por %p37, %p38
    %p40 = scmp.ne.s32.totalorder %s26, %s27
    %p41 = scmp.eq.s32.totalorder %s19, 1
    %p42 = por %p40, %p41
    %p44 = scmp.ne.s32.totalorder %s27, %s43
    %p45 = scmp.eq.s32.totalorder %s19, 0
    %p46 = por %p44, %p45
    %s48 = sadd.s32 %s47, 1
    %p51 = scmp.eq.s32.totalorder %s13, 1
    %p52 = scmp.ne.s32.totalorder %s47, %s49
    %p53 = scmp.eq.s32.totalorder %s13, 0
    %p54 = por %p52, %p53
    %p55 = scmp.ne.s32.totalorder %s47, %s49
    %p56 = scmp.eq.s32.totalorder %s18, 1
    %p57 = por %p55, %p56
    %p58 = scmp.ne.s32.totalorder %s49, %s50
    %p59 = scmp.eq.s32.totalorder %s18, 0
    %p60 = por %p58, %p59
    %p61 = scmp.ne.s32.totalorder %s49, %s50
    %p62 = scmp.eq.s32.totalorder %s19, 1
    %p63 = por %p61, %p62
    %p65 = scmp.ne.s32.totalorder %s50, %s64
    %p66 = scmp.eq.s32.totalorder %s19, 0
    %p67 = por %p65, %p66
    %s69 = sadd.s32 %s68, 1
    %p72 = scmp.eq.s32.totalorder %s13, 1
    %p73 = scmp.ne.s32.totalorder %s68, %s70
    %p74 = scmp.eq.s32.totalorder %s13, 0
    %p75 = por %p73, %p74
    %p76 = scmp.ne.s32.totalorder %s68, %s70
    %p77 = scmp.eq.s32.totalorder %s18, 1
    %p78 = por %p76, %p77
    %p79 = scmp.ne.s32.totalorder %s70, %s71
    %p80 = scmp.eq.s32.totalorder %s18, 0
    %p81 = por %p79, %p80
    %p82 = scmp.ne.s32.totalorder %s70, %s71
    %p83 = scmp.eq.s32.totalorder %s19, 1
    %p84 = por %p82, %p83
    %p86 = scmp.ne.s32.totalorder %s71, %s85
    %p87 = scmp.eq.s32.totalorder %s19, 0
    %p88 = por %p86, %p87
    %s90 = sadd.s32 %s89, 1
    %p93 = scmp.eq.s32.totalorder %s13, 1
    %p94 = scmp.ne.s32.totalorder %s89, %s91
    %p95 = scmp.eq.s32.totalorder %s13, 0
    %p96 = por %p94, %p95
    %p97 = scmp.ne.s32.totalorder %s89, %s91
    %p98 = scmp.eq.s32.totalorder %s18, 1
    %p99 = por %p97, %p98
    %p100 = scmp.ne.s32.totalorder %s91, %s92
    %p101 = scmp.eq.s32.totalorder %s18, 0
    %p102 = por %p100, %p101
    %p103 = scmp.ne.s32.totalorder %s91, %s92
    %p104 = scmp.eq.s32.totalorder %s19, 1
    %p105 = por %p103, %p104
    %p107 = scmp.ne.s32.totalorder %s92, %s106
    %p108 = scmp.eq.s32.totalorder %s19, 0
    %p109 = por %p107, %p108
    %s111 = sadd.s32 %s110, 1
    %p114 = scmp.eq.s32.totalorder %s13, 1
    %p115 = scmp.ne.s32.totalorder %s110, %s112
    %p116 = scmp.eq.s32.totalorder %s13, 0
    %p117 = por %p115, %p116
    %p118 = scmp.ne.s32.totalorder %s110, %s112
    %p119 = scmp.eq.s32.totalorder %s18, 1
    %p120 = por %p118, %p119
    %p121 = scmp.ne.s32.totalorder %s112, %s113
    %p122 = scmp.eq.s32.totalorder %s18, 0
    %p123 = por %p121, %p122
    %p124 = scmp.ne.s32.totalorder %s112, %s113
    %p125 = scmp.eq.s32.totalorder %s19, 1
    %p126 = por %p124, %p125
    %p128 = scmp.ne.s32.totalorder %s113, %s127
    %p129 = scmp.eq.s32.totalorder %s19, 0
    %p130 = por %p128, %p129
    %s132 = sadd.s32 %s131, 1
    %p135 = scmp.eq.s32.totalorder %s13, 1
    %p136 = scmp.ne.s32.totalorder %s131, %s133
    %p137 = scmp.eq.s32.totalorder %s13, 0
    %p138 = por %p136, %p137
    %p139 = scmp.ne.s32.totalorder %s131, %s133
    %p140 = scmp.eq.s32.totalorder %s18, 1
    %p141 = por %p139, %p140
    %p142 = scmp.ne.s32.totalorder %s133, %s134
    %p143 = scmp.eq.s32.totalorder %s18, 0
    %p144 = por %p142, %p143
    %p145 = scmp.ne.s32.totalorder %s133, %s134
    %p146 = scmp.eq.s32.totalorder %s19, 1
    %p147 = por %p145, %p146
    %p149 = scmp.ne.s32.totalorder %s134, %s148
    %p150 = scmp.eq.s32.totalorder %s19, 0
    %p151 = por %p149, %p150
    %s153 = sadd.s32 %s152, 1
    %p156 = scmp.eq.s32.totalorder %s13, 1
    %p157 = scmp.ne.s32.totalorder %s152, %s154
    %p158 = scmp.eq.s32.totalorder %s13, 0
    %p159 = por %p157, %p158
    %p160 = scmp.ne.s32.totalorder %s152, %s154
    %p161 = scmp.eq.s32.totalorder %s18, 1
    %p162 = por %p160, %p161
    %p163 = scmp.ne.s32.totalorder %s154, %s155
    %p164 = scmp.eq.s32.totalorder %s18, 0
    %p165 = por %p163, %p164
    %p166 = scmp.ne.s32.totalorder %s154, %s155
    %p167 = scmp.eq.s32.totalorder %s19, 1
    %p168 = por %p166, %p167
    %p170 = scmp.ne.s32.totalorder %s155, %s169
    %p171 = scmp.eq.s32.totalorder %s19, 0
    %p172 = por %p170, %p171
    %s173 = ssub.s32 %s13, %s20
    %p174 = scmp.eq.s32.totalorder %s173, 0
    %s176 = sadd.s32 %s175, 1
    %s177 = scalar_select %p174, %s175, %s176
    %p180 = pneg %p174
    %p181 = scmp.eq.s32.totalorder %s13, 1
    %p182 = por %p180, %p181
    %p183 = scmp.ne.s32.totalorder %s175, %s178
    %p184 = scmp.eq.s32.totalorder %s13, 0
    %p185 = por %p183, %p184
    %p186 = scmp.ne.s32.totalorder %s175, %s178
    %p187 = scmp.eq.s32.totalorder %s18, 1
    %p188 = por %p186, %p187
    %p189 = scmp.ne.s32.totalorder %s178, %s179
    %p190 = scmp.eq.s32.totalorder %s18, 0
    %p191 = por %p189, %p190
    %p192 = scmp.ne.s32.totalorder %s178, %s179
    %p193 = scmp.eq.s32.totalorder %s19, 1
    %p194 = por %p192, %p193
    %p196 = scmp.ne.s32.totalorder %s179, %s195
    %p197 = scmp.eq.s32.totalorder %s19, 0
    %p198 = por %p196, %p197
    %p199 = scmp.le.s32.totalorder 1, %s13
    %p200 = scmp.lt.s32.totalorder %s13, 3
    %p201 = pnand %p199, %p200
    %p202 = pneg %p201
    // Predicated region
    $region9: #{carafe_forward.1} parent=5 // pred_check
      _
    $region10: #{carafe_forward.1} parent=5 // pred_check_branch
      %204 = sbr.rel (%p201) target = $region12
    $region11: #{carafe_forward.1} parent=5 // pred_region
      %s205 = ssub.s32 %s13, 1
      // Predicated region
      $region13: #{carafe_forward.1} parent=11 // pred_check
        %p206 = pneg %p60
      $region14: #{carafe_forward.1} parent=11 // pred_check_branch
        %208 = sbr.rel (%p206) target = $region16
      $region15: #{carafe_forward.1} parent=11 // pred_region
        _
      $region16: #{carafe_forward.1} parent=11 // pred_fallthru
        _
      // Predicated region
      $region17: #{carafe_forward.1} parent=11 // pred_check
        %p209 = pneg %p81
      $region18: #{carafe_forward.1} parent=11 // pred_check_branch
        %211 = sbr.rel (%p209) target = $region20
      $region19: #{carafe_forward.1} parent=11 // pred_region
        _
      $region20: #{carafe_forward.1} parent=11 // pred_fallthru
        _
      // Predicated region
      $region21: #{carafe_forward.1} parent=11 // pred_check
        %p212 = pneg %p102
      $region22: #{carafe_forward.1} parent=11 // pred_check_branch
        %214 = sbr.rel (%p212) target = $region24
      $region23: #{carafe_forward.1} parent=11 // pred_region
        _
      $region24: #{carafe_forward.1} parent=11 // pred_fallthru
        _
      // Predicated region
      $region25: #{carafe_forward.1} parent=11 // pred_check
        %p215 = pneg %p123
      $region26: #{carafe_forward.1} parent=11 // pred_check_branch
        %217 = sbr.rel (%p215) target = $region28
      $region27: #{carafe_forward.1} parent=11 // pred_region
        _
      $region28: #{carafe_forward.1} parent=11 // pred_fallthru
        _
      // Predicated region
      $region29: #{carafe_forward.1} parent=11 // pred_check
        %p218 = pneg %p144
      $region30: #{carafe_forward.1} parent=11 // pred_check_branch
        %220 = sbr.rel (%p218) target = $region32
      $region31: #{carafe_forward.1} parent=11 // pred_region
        _
      $region32: #{carafe_forward.1} parent=11 // pred_fallthru
        _
      // Predicated region
      $region33: #{carafe_forward.1} parent=11 // pred_check
        %p221 = pneg %p165
      $region34: #{carafe_forward.1} parent=11 // pred_check_branch
        %223 = sbr.rel (%p221) target = $region36
      $region35: #{carafe_forward.1} parent=11 // pred_region
        _
      $region36: #{carafe_forward.1} parent=11 // pred_fallthru
        _
    $region12: #{carafe_forward.1} parent=5 // pred_fallthru
      _
    %p224 = scmp.lt.s32.totalorder %s13, 2
    // Predicated region
    $region37: #{carafe_forward.1} parent=5 // pred_check
      %p225 = pneg %p224
    $region38: #{carafe_forward.1} parent=5 // pred_check_branch
      %227 = sbr.rel (%p225) target = $region40
    $region39: #{carafe_forward.1} parent=5 // pred_region
      // Predicated region
      $region41: #{carafe_forward.1} parent=39 // pred_check
        %p228 = pneg %p33
      $region42: #{carafe_forward.1} parent=39 // pred_check_branch
        %230 = sbr.rel (%p228) target = $region44
      $region43: #{carafe_forward.1} parent=39 // pred_region
        %p231 = scmp.lt.s32.totalorder %s13, 1
        %s232 = scalar_select %p231, %s13, 1
        %s233 = smul.addr %s232, 4
        %s234 = smul.addr %s233, 8
        %s235 = scalar_lea.vmem %s0, %s234
      $region44: #{carafe_forward.1} parent=39 // pred_fallthru
        _
    $region40: #{carafe_forward.1} parent=5 // pred_fallthru
      _
    %p236 = scmp.le.s32.totalorder 1, %s13
    %p237 = scmp.lt.s32.totalorder %s13, 3
    %p238 = pnand %p236, %p237
    %p239 = pneg %p238
    // Predicated region
    $region45: #{carafe_forward.1} parent=5 // pred_check
      _
    $region46: #{carafe_forward.1} parent=5 // pred_check_branch
      %241 = sbr.rel (%p238) target = $region48
    $region47: #{carafe_forward.1} parent=5 // pred_region
      %s242 = ssub.s32 %s13, 1
      %p243 = scmp.lt.s32.totalorder %s18, 1
      %s244 = scalar_select %p243, %s18, 1
      %s245 = smul.addr %s244, 4
      %s246 = smul.addr %s245, 8
      %s247 = scalar_lea.vmem %s0, %s246
      %p248 = pneg %p39
      %p249 = pneg %p36
      %p250 = pneg %p60
      %p251 = pneg %p57
      %p252 = pneg %p81
      %p253 = pneg %p78
      %p254 = pneg %p102
      %p255 = pneg %p99
      %p256 = pneg %p123
      %p257 = pneg %p120
      %p258 = pneg %p144
      %p259 = pneg %p141
      %p260 = pneg %p165
      %p261 = pneg %p162
      %p262 = pneg %p191
      %p263 = pneg %p188
      %p264 = scmp.lt.s32.totalorder %s18, 1
      %s265 = scalar_select %p264, %s18, 1
      %s266 = smul.addr %s265, 16
      %s267 = smul.addr %s266, 8
      %s268 = scalar_lea.vmem %s7, %s267
      %p269 = scmp.lt.s32.totalorder %s18, 1
      %s270 = scalar_select %p269, %s18, 1
      %s271 = smul.addr %s270, 4
      %s272 = smul.addr %s271, 8
      %s273 = scalar_lea.vmem %s0, %s272
      %p274 = scmp.lt.s32.totalorder %s18, 1
      %s275 = scalar_select %p274, %s18, 1
      %s276 = smul.addr %s275, 16
      %s277 = smul.addr %s276, 8
      %s278 = scalar_lea.vmem %s7, %s277
      %v280 = vld [vmem:[%s273] sm:$0xff]
      %v281 = vld [vmem:[%s273 + $0x8] sm:$0xff]
      %v282 = vld [vmem:[%s273 + $0x10] sm:$0xff]
      %v283 = vld [vmem:[%s273 + $0x18] sm:$0xff]
      %v284 = vld [vmem:[%s1] sm:$0xf]
      %v285 = vld [vmem:[%s1 + $0x4] sm:$0xf]
      %v286 = vld [vmem:[%s1 + $0x8] sm:$0xf]
      %v287 = vld [vmem:[%s1 + $0xc] sm:$0xf]
      %v288 = vld [vmem:[%s1 + $0x10] sm:$0xf]
      %v289 = vld [vmem:[%s1 + $0x14] sm:$0xf]
      %v290 = vld [vmem:[%s1 + $0x18] sm:$0xf]
      %v291 = vld [vmem:[%s1 + $0x1c] sm:$0xf]
      %v292 = vpack.c.bf16 %v282, %v280
      %v293 = vpack.c.bf16 %v283, %v281
      %v294 = vld [vmem:[%s2] sm:$0xff]
      %v295 = vld [vmem:[%s2 + $0x8] sm:$0xff]
      %v296 = vld [vmem:[%s2 + $0x10] sm:$0xff]
      %v297 = vld [vmem:[%s2 + $0x18] sm:$0xff]
      %v298 = vld [vmem:[%s2 + $0x20] sm:$0xff]
      %v299 = vld [vmem:[%s2 + $0x28] sm:$0xff]
      %v300 = vld [vmem:[%s2 + $0x30] sm:$0xff]
      %v301 = vld [vmem:[%s2 + $0x38] sm:$0xff]
      %303 = vset.pattern.permute.xlu0 0
      %304 = vperm.xlu0 %303, %v294
      %v305 = vpop.permute.xlu0 %304
      %308 = vset.pattern.permute.xlu0 0
      %309 = vperm.xlu0 %308, %v295
      %v310 = vpop.permute.xlu0 %309
      %313 = vset.pattern.permute.xlu0 0
      %314 = vperm.xlu0 %313, %v296
      %v315 = vpop.permute.xlu0 %314
      %318 = vset.pattern.permute.xlu0 0
      %319 = vperm.xlu0 %318, %v297
      %v320 = vpop.permute.xlu0 %319
      %323 = vset.pattern.permute.xlu0 0
      %324 = vperm.xlu0 %323, %v298
      %v325 = vpop.permute.xlu0 %324
      %328 = vset.pattern.permute.xlu0 0
      %329 = vperm.xlu0 %328, %v299
      %v330 = vpop.permute.xlu0 %329
      %333 = vset.pattern.permute.xlu0 0
      %334 = vperm.xlu0 %333, %v300
      %v335 = vpop.permute.xlu0 %334
      %338 = vset.pattern.permute.xlu0 0
      %339 = vperm.xlu0 %338, %v301
      %v340 = vpop.permute.xlu0 %339
      %v350 = vunpack.c.l.b16 %v284
      %v351 = vunpack.c.l.b16 %v285
      %v352 = vunpack.c.l.b16 %v286
      %v353 = vunpack.c.l.b16 %v287
      %v354 = vunpack.c.l.b16 %v288
      %v355 = vunpack.c.l.b16 %v289
      %v356 = vunpack.c.l.b16 %v290
      %v357 = vunpack.c.l.b16 %v291
      %v358 = vpack.c.b16 %v351, %v350
      %v359 = vpack.c.b16 %v353, %v352
      %v360 = vpack.c.b16 %v355, %v354
      %v361 = vpack.c.b16 %v357, %v356
      %vm362 = vcmask 130048
      %v364 = vsel %vm362, %v358, 0
      %v367 = vsel %vm362, %v359, 0
      %v370 = vsel %vm362, %v360, 0
      %v373 = vsel %vm362, %v361, 0
      %375 = vmatpush.bf16.msra.mxu0 0
      %376 = vmatpush.bf16.msra.mxu0 0
      %377 = vmatpush.bf16.msra.mxu0 0
      %378 = vmatpush.bf16.msra.mxu0 0
      %379 = vmatpush.bf16.msra.mxu0 0
      %380 = vmatpush.bf16.msra.mxu0 0
      %381 = vmatpush.bf16.msra.mxu0 0
      %382 = vmatpush.bf16.msra.mxu0 %v292
      %383 = vmatmul.bf16.gmra.mxu0 %v364
      %v384 = vpop.f32.mrf.mxu0
      %v385 = vadd.f32 %v305, %v384
      %v386 = vpop.f32.mrf.mxu0
      %v387 = vadd.f32 %v310, %v386
      %388 = vmatmul.bf16.gmra.mxu0 %v367
      %v389 = vpop.f32.mrf.mxu0
      %v390 = vadd.f32 %v315, %v389
      %v391 = vpop.f32.mrf.mxu0
      %v392 = vadd.f32 %v320, %v391
      %393 = vmatmul.bf16.gmra.mxu0 %v370
      %v394 = vpop.f32.mrf.mxu0
      %v395 = vadd.f32 %v325, %v394
      %v396 = vpop.f32.mrf.mxu0
      %v397 = vadd.f32 %v330, %v396
      %398 = vmatmul.bf16.gmra.mxu0 %v373
      %v399 = vpop.f32.mrf.mxu0
      %v400 = vadd.f32 %v335, %v399
      %v401 = vpop.f32.mrf.mxu0
      %v402 = vadd.f32 %v340, %v401
      %403 = vdwg.mxu0
      %404 = vmatpush.bf16.msra.mxu0 0
      %405 = vmatpush.bf16.msra.mxu0 0
      %406 = vmatpush.bf16.msra.mxu0 0
      %407 = vmatpush.bf16.msra.mxu0 0
      %408 = vmatpush.bf16.msra.mxu0 0
      %409 = vmatpush.bf16.msra.mxu0 0
      %410 = vmatpush.bf16.msra.mxu0 0
      %411 = vmatpush.bf16.msra.mxu0 %v293
      %412 = vmatmul.bf16.gmra.mxu0 %v364
      %v413 = vpop.f32.mrf.mxu0
      %v414 = vadd.f32 %v305, %v413
      %v415 = vpop.f32.mrf.mxu0
      %v416 = vadd.f32 %v310, %v415
      %417 = vmatmul.bf16.gmra.mxu0 %v367
      %v418 = vpop.f32.mrf.mxu0
      %v419 = vadd.f32 %v315, %v418
      %v420 = vpop.f32.mrf.mxu0
      %v421 = vadd.f32 %v320, %v420
      %422 = vmatmul.bf16.gmra.mxu0 %v370
      %v423 = vpop.f32.mrf.mxu0
      %v424 = vadd.f32 %v325, %v423
      %v425 = vpop.f32.mrf.mxu0
      %v426 = vadd.f32 %v330, %v425
      %427 = vmatmul.bf16.gmra.mxu0 %v373
      %v428 = vpop.f32.mrf.mxu0
      %v429 = vadd.f32 %v335, %v428
      %v430 = vpop.f32.mrf.mxu0
      %v431 = vadd.f32 %v340, %v430
      %432 = vdwg.mxu0
      %v433 = vxor.u32 %v385, 2147483648
      %v434 = vxor.u32 %v414, 2147483648
      %v435 = vxor.u32 %v387, 2147483648
      %v436 = vxor.u32 %v416, 2147483648
      %v437 = vxor.u32 %v390, 2147483648
      %v438 = vxor.u32 %v419, 2147483648
      %v439 = vxor.u32 %v392, 2147483648
      %v440 = vxor.u32 %v421, 2147483648
      %v441 = vxor.u32 %v395, 2147483648
      %v442 = vxor.u32 %v424, 2147483648
      %v443 = vxor.u32 %v397, 2147483648
      %v444 = vxor.u32 %v426, 2147483648
      %v445 = vxor.u32 %v400, 2147483648
      %v446 = vxor.u32 %v429, 2147483648
      %v447 = vxor.u32 %v402, 2147483648
      %v448 = vxor.u32 %v431, 2147483648
      %v449 = vmul.f32 %v433, 1.442695
      %v450 = vpow.pop %v449
      %v451 = vmul.f32 %v434, 1.442695
      %v452 = vpow.pop %v451
      %v453 = vmul.f32 %v435, 1.442695
      %v454 = vpow.pop %v453
      %v455 = vmul.f32 %v436, 1.442695
      %v456 = vpow.pop %v455
      %v457 = vmul.f32 %v437, 1.442695
      %v458 = vpow.pop %v457
      %v459 = vmul.f32 %v438, 1.442695
      %v460 = vpow.pop %v459
      %v461 = vmul.f32 %v439, 1.442695
      %v462 = vpow.pop %v461
      %v463 = vmul.f32 %v440, 1.442695
      %v464 = vpow.pop %v463
      %v465 = vmul.f32 %v441, 1.442695
      %v466 = vpow.pop %v465
      %v467 = vmul.f32 %v442, 1.442695
      %v468 = vpow.pop %v467
      %v469 = vmul.f32 %v443, 1.442695
      %v470 = vpow.pop %v469
      %v471 = vmul.f32 %v444, 1.442695
      %v472 = vpow.pop %v471
      %v473 = vmul.f32 %v445, 1.442695
      %v474 = vpow.pop %v473
      %v475 = vmul.f32 %v446, 1.442695
      %v476 = vpow.pop %v475
      %v477 = vmul.f32 %v447, 1.442695
      %v478 = vpow.pop %v477
      %v479 = vmul.f32 %v448, 1.442695
      %v480 = vpow.pop %v479
      %v481 = vadd.f32 %v450, 1.0
      %v482 = vadd.f32 %v452, 1.0
      %v483 = vadd.f32 %v454, 1.0
      %v484 = vadd.f32 %v456, 1.0
      %v485 = vadd.f32 %v458, 1.0
      %v486 = vadd.f32 %v460, 1.0
      %v487 = vadd.f32 %v462, 1.0
      %v488 = vadd.f32 %v464, 1.0
      %v489 = vadd.f32 %v466, 1.0
      %v490 = vadd.f32 %v468, 1.0
      %v491 = vadd.f32 %v470, 1.0
      %v492 = vadd.f32 %v472, 1.0
      %v493 = vadd.f32 %v474, 1.0
      %v494 = vadd.f32 %v476, 1.0
      %v495 = vadd.f32 %v478, 1.0
      %v496 = vadd.f32 %v480, 1.0
      %v497 = vrcp.pop %v481
      %v498 = vmul.f32 %v481, %v497
      %v499 = vsub.f32 1.0, %v498
      %v500 = vmul.f32 %v497, %v499
      %v501 = vadd.f32 %v497, %v500
      %vm502 = vweird.f32 %v481
      %vm503 = vweird.f32 %v497
      %vm504 = vmor %vm502, %vm503
      %v505 = vsel %vm504, %v497, %v501
      %v506 = vand.u32 2147483647, %v481
      %vm507 = vcmp.eq.f32.partialorder %v506, 8.507059e+37
      %v508 = vand.u32 %v481, 2147483648
      %v509 = vor.u32 1.1754944e-38, %v508
      %v510 = vsel %vm507, %v509, %v505
      %v511 = vmul.f32 1.0, %v510
      %v512 = vrcp.pop %v482
      %v513 = vmul.f32 %v482, %v512
      %v514 = vsub.f32 1.0, %v513
      %v515 = vmul.f32 %v512, %v514
      %v516 = vadd.f32 %v512, %v515
      %vm517 = vweird.f32 %v482
      %vm518 = vweird.f32 %v512
      %vm519 = vmor %vm517, %vm518
      %v520 = vsel %vm519, %v512, %v516
      %v521 = vand.u32 2147483647, %v482
      %vm522 = vcmp.eq.f32.partialorder %v521, 8.507059e+37
      %v523 = vand.u32 %v482, 2147483648
      %v524 = vor.u32 1.1754944e-38, %v523
      %v525 = vsel %vm522, %v524, %v520
      %v526 = vmul.f32 1.0, %v525
      %v527 = vrcp.pop %v483
      %v528 = vmul.f32 %v483, %v527
      %v529 = vsub.f32 1.0, %v528
      %v530 = vmul.f32 %v527, %v529
      %v531 = vadd.f32 %v527, %v530
      %vm532 = vweird.f32 %v483
      %vm533 = vweird.f32 %v527
      %vm534 = vmor %vm532, %vm533
      %v535 = vsel %vm534, %v527, %v531
      %v536 = vand.u32 2147483647, %v483
      %vm537 = vcmp.eq.f32.partialorder %v536, 8.507059e+37
      %v538 = vand.u32 %v483, 2147483648
      %v539 = vor.u32 1.1754944e-38, %v538
      %v540 = vsel %vm537, %v539, %v535
      %v541 = vmul.f32 1.0, %v540
      %v542 = vrcp.pop %v484
      %v543 = vmul.f32 %v484, %v542
      %v544 = vsub.f32 1.0, %v543
      %v545 = vmul.f32 %v542, %v544
      %v546 = vadd.f32 %v542, %v545
      %vm547 = vweird.f32 %v484
      %vm548 = vweird.f32 %v542
      %vm549 = vmor %vm547, %vm548
      %v550 = vsel %vm549, %v542, %v546
      %v551 = vand.u32 2147483647, %v484
      %vm552 = vcmp.eq.f32.partialorder %v551, 8.507059e+37
      %v553 = vand.u32 %v484, 2147483648
      %v554 = vor.u32 1.1754944e-38, %v553
      %v555 = vsel %vm552, %v554, %v550
      %v556 = vmul.f32 1.0, %v555
      %v557 = vrcp.pop %v485
      %v558 = vmul.f32 %v485, %v557
      %v559 = vsub.f32 1.0, %v558
      %v560 = vmul.f32 %v557, %v559
      %v561 = vadd.f32 %v557, %v560
      %vm562 = vweird.f32 %v485
      %vm563 = vweird.f32 %v557
      %vm564 = vmor %vm562, %vm563
      %v565 = vsel %vm564, %v557, %v561
      %v566 = vand.u32 2147483647, %v485
      %vm567 = vcmp.eq.f32.partialorder %v566, 8.507059e+37
      %v568 = vand.u32 %v485, 2147483648
      %v569 = vor.u32 1.1754944e-38, %v568
      %v570 = vsel %vm567, %v569, %v565
      %v571 = vmul.f32 1.0, %v570
      %v572 = vrcp.pop %v486
      %v573 = vmul.f32 %v486, %v572
      %v574 = vsub.f32 1.0, %v573
      %v575 = vmul.f32 %v572, %v574
      %v576 = vadd.f32 %v572, %v575
      %vm577 = vweird.f32 %v486
      %vm578 = vweird.f32 %v572
      %vm579 = vmor %vm577, %vm578
      %v580 = vsel %vm579, %v572, %v576
      %v581 = vand.u32 2147483647, %v486
      %vm582 = vcmp.eq.f32.partialorder %v581, 8.507059e+37
      %v583 = vand.u32 %v486, 2147483648
      %v584 = vor.u32 1.1754944e-38, %v583
      %v585 = vsel %vm582, %v584, %v580
      %v586 = vmul.f32 1.0, %v585
      %v587 = vrcp.pop %v487
      %v588 = vmul.f32 %v487, %v587
      %v589 = vsub.f32 1.0, %v588
      %v590 = vmul.f32 %v587, %v589
      %v591 = vadd.f32 %v587, %v590
      %vm592 = vweird.f32 %v487
      %vm593 = vweird.f32 %v587
      %vm594 = vmor %vm592, %vm593
      %v595 = vsel %vm594, %v587, %v591
      %v596 = vand.u32 2147483647, %v487
      %vm597 = vcmp.eq.f32.partialorder %v596, 8.507059e+37
      %v598 = vand.u32 %v487, 2147483648
      %v599 = vor.u32 1.1754944e-38, %v598
      %v600 = vsel %vm597, %v599, %v595
      %v601 = vmul.f32 1.0, %v600
      %v602 = vrcp.pop %v488
      %v603 = vmul.f32 %v488, %v602
      %v604 = vsub.f32 1.0, %v603
      %v605 = vmul.f32 %v602, %v604
      %v606 = vadd.f32 %v602, %v605
      %vm607 = vweird.f32 %v488
      %vm608 = vweird.f32 %v602
      %vm609 = vmor %vm607, %vm608
      %v610 = vsel %vm609, %v602, %v606
      %v611 = vand.u32 2147483647, %v488
      %vm612 = vcmp.eq.f32.partialorder %v611, 8.507059e+37
      %v613 = vand.u32 %v488, 2147483648
      %v614 = vor.u32 1.1754944e-38, %v613
      %v615 = vsel %vm612, %v614, %v610
      %v616 = vmul.f32 1.0, %v615
      %v617 = vrcp.pop %v489
      %v618 = vmul.f32 %v489, %v617
      %v619 = vsub.f32 1.0, %v618
      %v620 = vmul.f32 %v617, %v619
      %v621 = vadd.f32 %v617, %v620
      %vm622 = vweird.f32 %v489
      %vm623 = vweird.f32 %v617
      %vm624 = vmor %vm622, %vm623
      %v625 = vsel %vm624, %v617, %v621
      %v626 = vand.u32 2147483647, %v489
      %vm627 = vcmp.eq.f32.partialorder %v626, 8.507059e+37
      %v628 = vand.u32 %v489, 2147483648
      %v629 = vor.u32 1.1754944e-38, %v628
      %v630 = vsel %vm627, %v629, %v625
      %v631 = vmul.f32 1.0, %v630
      %v632 = vrcp.pop %v490
      %v633 = vmul.f32 %v490, %v632
      %v634 = vsub.f32 1.0, %v633
      %v635 = vmul.f32 %v632, %v634
      %v636 = vadd.f32 %v632, %v635
      %vm637 = vweird.f32 %v490
      %vm638 = vweird.f32 %v632
      %vm639 = vmor %vm637, %vm638
      %v640 = vsel %vm639, %v632, %v636
      %v641 = vand.u32 2147483647, %v490
      %vm642 = vcmp.eq.f32.partialorder %v641, 8.507059e+37
      %v643 = vand.u32 %v490, 2147483648
      %v644 = vor.u32 1.1754944e-38, %v643
      %v645 = vsel %vm642, %v644, %v640
      %v646 = vmul.f32 1.0, %v645
      %v647 = vrcp.pop %v491
      %v648 = vmul.f32 %v491, %v647
      %v649 = vsub.f32 1.0, %v648
      %v650 = vmul.f32 %v647, %v649
      %v651 = vadd.f32 %v647, %v650
      %vm652 = vweird.f32 %v491
      %vm653 = vweird.f32 %v647
      %vm654 = vmor %vm652, %vm653
      %v655 = vsel %vm654, %v647, %v651
      %v656 = vand.u32 2147483647, %v491
      %vm657 = vcmp.eq.f32.partialorder %v656, 8.507059e+37
      %v658 = vand.u32 %v491, 2147483648
      %v659 = vor.u32 1.1754944e-38, %v658
      %v660 = vsel %vm657, %v659, %v655
      %v661 = vmul.f32 1.0, %v660
      %v662 = vrcp.pop %v492
      %v663 = vmul.f32 %v492, %v662
      %v664 = vsub.f32 1.0, %v663
      %v665 = vmul.f32 %v662, %v664
      %v666 = vadd.f32 %v662, %v665
      %vm667 = vweird.f32 %v492
      %vm668 = vweird.f32 %v662
      %vm669 = vmor %vm667, %vm668
      %v670 = vsel %vm669, %v662, %v666
      %v671 = vand.u32 2147483647, %v492
      %vm672 = vcmp.eq.f32.partialorder %v671, 8.507059e+37
      %v673 = vand.u32 %v492, 2147483648
      %v674 = vor.u32 1.1754944e-38, %v673
      %v675 = vsel %vm672, %v674, %v670
      %v676 = vmul.f32 1.0, %v675
      %v677 = vrcp.pop %v493
      %v678 = vmul.f32 %v493, %v677
      %v679 = vsub.f32 1.0, %v678
      %v680 = vmul.f32 %v677, %v679
      %v681 = vadd.f32 %v677, %v680
      %vm682 = vweird.f32 %v493
      %vm683 = vweird.f32 %v677
      %vm684 = vmor %vm682, %vm683
      %v685 = vsel %vm684, %v677, %v681
      %v686 = vand.u32 2147483647, %v493
      %vm687 = vcmp.eq.f32.partialorder %v686, 8.507059e+37
      %v688 = vand.u32 %v493, 2147483648
      %v689 = vor.u32 1.1754944e-38, %v688
      %v690 = vsel %vm687, %v689, %v685
      %v691 = vmul.f32 1.0, %v690
      %v692 = vrcp.pop %v494
      %v693 = vmul.f32 %v494, %v692
      %v694 = vsub.f32 1.0, %v693
      %v695 = vmul.f32 %v692, %v694
      %v696 = vadd.f32 %v692, %v695
      %vm697 = vweird.f32 %v494
      %vm698 = vweird.f32 %v692
      %vm699 = vmor %vm697, %vm698
      %v700 = vsel %vm699, %v692, %v696
      %v701 = vand.u32 2147483647, %v494
      %vm702 = vcmp.eq.f32.partialorder %v701, 8.507059e+37
      %v703 = vand.u32 %v494, 2147483648
      %v704 = vor.u32 1.1754944e-38, %v703
      %v705 = vsel %vm702, %v704, %v700
      %v706 = vmul.f32 1.0, %v705
      %v707 = vrcp.pop %v495
      %v708 = vmul.f32 %v495, %v707
      %v709 = vsub.f32 1.0, %v708
      %v710 = vmul.f32 %v707, %v709
      %v711 = vadd.f32 %v707, %v710
      %vm712 = vweird.f32 %v495
      %vm713 = vweird.f32 %v707
      %vm714 = vmor %vm712, %vm713
      %v715 = vsel %vm714, %v707, %v711
      %v716 = vand.u32 2147483647, %v495
      %vm717 = vcmp.eq.f32.partialorder %v716, 8.507059e+37
      %v718 = vand.u32 %v495, 2147483648
      %v719 = vor.u32 1.1754944e-38, %v718
      %v720 = vsel %vm717, %v719, %v715
      %v721 = vmul.f32 1.0, %v720
      %v722 = vrcp.pop %v496
      %v723 = vmul.f32 %v496, %v722
      %v724 = vsub.f32 1.0, %v723
      %v725 = vmul.f32 %v722, %v724
      %v726 = vadd.f32 %v722, %v725
      %vm727 = vweird.f32 %v496
      %vm728 = vweird.f32 %v722
      %vm729 = vmor %vm727, %vm728
      %v730 = vsel %vm729, %v722, %v726
      %v731 = vand.u32 2147483647, %v496
      %vm732 = vcmp.eq.f32.partialorder %v731, 8.507059e+37
      %v733 = vand.u32 %v496, 2147483648
      %v734 = vor.u32 1.1754944e-38, %v733
      %v735 = vsel %vm732, %v734, %v730
      %v736 = vmul.f32 1.0, %v735
      %v737 = vmul.f32 %v385, %v511
      %v738 = vmul.f32 %v414, %v526
      %v739 = vmul.f32 %v387, %v541
      %v740 = vmul.f32 %v416, %v556
      %v741 = vmul.f32 %v390, %v571
      %v742 = vmul.f32 %v419, %v586
      %v743 = vmul.f32 %v392, %v601
      %v744 = vmul.f32 %v421, %v616
      %v745 = vmul.f32 %v395, %v631
      %v746 = vmul.f32 %v424, %v646
      %v747 = vmul.f32 %v397, %v661
      %v748 = vmul.f32 %v426, %v676
      %v749 = vmul.f32 %v400, %v691
      %v750 = vmul.f32 %v429, %v706
      %v751 = vmul.f32 %v402, %v721
      %v752 = vmul.f32 %v431, %v736
      %753 = vrot.lane.b32.xlu0 %v737, 17
      %v754 = vpop.permute.xlu0 %753
      %755 = vrot.lane.b32.xlu0 %v739, 17
      %v756 = vpop.permute.xlu0 %755
      %757 = vrot.lane.b32.xlu0 %v741, 17
      %v758 = vpop.permute.xlu0 %757
      %759 = vrot.lane.b32.xlu0 %v743, 17
      %v760 = vpop.permute.xlu0 %759
      %761 = vrot.lane.b32.xlu0 %v745, 17
      %v762 = vpop.permute.xlu0 %761
      %763 = vrot.lane.b32.xlu0 %v747, 17
      %v764 = vpop.permute.xlu0 %763
      %765 = vrot.lane.b32.xlu0 %v749, 17
      %v766 = vpop.permute.xlu0 %765
      %767 = vrot.lane.b32.xlu0 %v751, 17
      %v768 = vpop.permute.xlu0 %767
      %769 = vrot.lane.b32.xlu0 %v738, 17
      %v770 = vpop.permute.xlu0 %769
      %771 = vrot.lane.b32.xlu0 %v740, 17
      %v772 = vpop.permute.xlu0 %771
      %773 = vrot.lane.b32.xlu0 %v742, 17
      %v774 = vpop.permute.xlu0 %773
      %775 = vrot.lane.b32.xlu0 %v744, 17
      %v776 = vpop.permute.xlu0 %775
      %777 = vrot.lane.b32.xlu0 %v746, 17
      %v778 = vpop.permute.xlu0 %777
      %779 = vrot.lane.b32.xlu0 %v748, 17
      %v780 = vpop.permute.xlu0 %779
      %781 = vrot.lane.b32.xlu0 %v750, 17
      %v782 = vpop.permute.xlu0 %781
      %783 = vrot.lane.b32.xlu0 %v752, 17
      %v784 = vpop.permute.xlu0 %783
      %v785 = vlaneseq
      %v786 = vand.u32 %v785, 127
      %vm787 = vcmp.lt.s32.totalorder %v786, 17
      %v788 = vsel %vm787, %v754, %v770
      %v789 = vsel %vm787, %v756, %v772
      %v790 = vsel %vm787, %v758, %v774
      %v791 = vsel %vm787, %v760, %v776
      %v792 = vsel %vm787, %v762, %v778
      %v793 = vsel %vm787, %v764, %v780
      %v794 = vsel %vm787, %v766, %v782
      %v795 = vsel %vm787, %v768, %v784
      %v796 = vsel %vm787, %v770, %v754
      %v797 = vsel %vm787, %v772, %v756
      %v798 = vsel %vm787, %v774, %v758
      %v799 = vsel %vm787, %v776, %v760
      %v800 = vsel %vm787, %v778, %v762
      %v801 = vsel %vm787, %v780, %v764
      %v802 = vsel %vm787, %v782, %v766
      %v803 = vsel %vm787, %v784, %v768
      %v804 = vld [vmem:[%s5] ss:$8 sm:$0x3]
      %v806 = vperm.slane %v804, 0
      %v807 = vperm.slane %v804, 1
      %v810 = vmul.f32 %v796, %v806
      %v811 = vmul.f32 %v788, %v807
      %v812 = vmul.f32 %v797, %v806
      %v813 = vmul.f32 %v789, %v807
      %v814 = vmul.f32 %v798, %v806
      %v815 = vmul.f32 %v790, %v807
      %v816 = vmul.f32 %v799, %v806
      %v817 = vmul.f32 %v791, %v807
      %v818 = vmul.f32 %v800, %v806
      %v819 = vmul.f32 %v792, %v807
      %v820 = vmul.f32 %v801, %v806
      %v821 = vmul.f32 %v793, %v807
      %v822 = vmul.f32 %v802, %v806
      %v823 = vmul.f32 %v794, %v807
      %v824 = vmul.f32 %v803, %v806
      %v825 = vmul.f32 %v795, %v807
      %v826 = vpack.c.bf16 %v811, %v810
      %v827 = vpack.c.bf16 %v813, %v812
      %v828 = vpack.c.bf16 %v815, %v814
      %v829 = vpack.c.bf16 %v817, %v816
      %v830 = vpack.c.bf16 %v819, %v818
      %v831 = vpack.c.bf16 %v821, %v820
      %v832 = vpack.c.bf16 %v823, %v822
      %v833 = vpack.c.bf16 %v825, %v824
      %834 = vst [vmem:[#allocation2] sm:$0xff] %v826
      %835 = vst [vmem:[#allocation2 + $0x8] sm:$0xff] %v827
      %836 = vst [vmem:[#allocation2 + $0x10] sm:$0xff] %v828
      %837 = vst [vmem:[#allocation2 + $0x18] sm:$0xff] %v829
      %838 = vst [vmem:[#allocation2 + $0x20] sm:$0xff] %v830
      %839 = vst [vmem:[#allocation2 + $0x28] sm:$0xff] %v831
      %840 = vst [vmem:[#allocation2 + $0x30] sm:$0xff] %v832
      %841 = vst [vmem:[#allocation2 + $0x38] sm:$0xff] %v833
      %842 = vrot.lane.b32.xlu0 %v737, 16
      %v843 = vpop.permute.xlu0 %842
      %844 = vrot.lane.b32.xlu0 %v739, 16
      %v845 = vpop.permute.xlu0 %844
      %846 = vrot.lane.b32.xlu0 %v741, 16
      %v847 = vpop.permute.xlu0 %846
      %848 = vrot.lane.b32.xlu0 %v743, 16
      %v849 = vpop.permute.xlu0 %848
      %850 = vrot.lane.b32.xlu0 %v745, 16
      %v851 = vpop.permute.xlu0 %850
      %852 = vrot.lane.b32.xlu0 %v747, 16
      %v853 = vpop.permute.xlu0 %852
      %854 = vrot.lane.b32.xlu0 %v749, 16
      %v855 = vpop.permute.xlu0 %854
      %856 = vrot.lane.b32.xlu0 %v751, 16
      %v857 = vpop.permute.xlu0 %856
      %858 = vrot.lane.b32.xlu0 %v738, 16
      %v859 = vpop.permute.xlu0 %858
      %860 = vrot.lane.b32.xlu0 %v740, 16
      %v861 = vpop.permute.xlu0 %860
      %862 = vrot.lane.b32.xlu0 %v742, 16
      %v863 = vpop.permute.xlu0 %862
      %864 = vrot.lane.b32.xlu0 %v744, 16
      %v865 = vpop.permute.xlu0 %864
      %866 = vrot.lane.b32.xlu0 %v746, 16
      %v867 = vpop.permute.xlu0 %866
      %868 = vrot.lane.b32.xlu0 %v748, 16
      %v869 = vpop.permute.xlu0 %868
      %870 = vrot.lane.b32.xlu0 %v750, 16
      %v871 = vpop.permute.xlu0 %870
      %872 = vrot.lane.b32.xlu0 %v752, 16
      %v873 = vpop.permute.xlu0 %872
      %vm874 = vcmp.lt.s32.totalorder %v786, 16
      %v875 = vsel %vm874, %v843, %v859
      %v876 = vsel %vm874, %v845, %v861
      %v877 = vsel %vm874, %v847, %v863
      %v878 = vsel %vm874, %v849, %v865
      %v879 = vsel %vm874, %v851, %v867
      %v880 = vsel %vm874, %v853, %v869
      %v881 = vsel %vm874, %v855, %v871
      %v882 = vsel %vm874, %v857, %v873
      %v883 = vsel %vm874, %v859, %v843
      %v884 = vsel %vm874, %v861, %v845
      %v885 = vsel %vm874, %v863, %v847
      %v886 = vsel %vm874, %v865, %v849
      %v887 = vsel %vm874, %v867, %v851
      %v888 = vsel %vm874, %v869, %v853
      %v889 = vsel %vm874, %v871, %v855
      %v890 = vsel %vm874, %v873, %v857
      %s891 = scalar_lea.vmem %s5, 1
      %v892 = vld [vmem:[%s891] ss:$8 sm:$0x3]
      %v894 = vperm.slane %v892, 0
      %v895 = vperm.slane %v892, 1
      %v898 = vmul.f32 %v883, %v894
      %v899 = vmul.f32 %v875, %v895
      %v900 = vmul.f32 %v884, %v894
      %v901 = vmul.f32 %v876, %v895
      %v902 = vmul.f32 %v885, %v894
      %v903 = vmul.f32 %v877, %v895
      %v904 = vmul.f32 %v886, %v894
      %v905 = vmul.f32 %v878, %v895
      %v906 = vmul.f32 %v887, %v894
      %v907 = vmul.f32 %v879, %v895
      %v908 = vmul.f32 %v888, %v894
      %v909 = vmul.f32 %v880, %v895
      %v910 = vmul.f32 %v889, %v894
      %v911 = vmul.f32 %v881, %v895
      %v912 = vmul.f32 %v890, %v894
      %v913 = vmul.f32 %v882, %v895
      %v914 = vpack.c.bf16 %v899, %v898
      %v915 = vpack.c.bf16 %v901, %v900
      %v916 = vpack.c.bf16 %v903, %v902
      %v917 = vpack.c.bf16 %v905, %v904
      %v918 = vpack.c.bf16 %v907, %v906
      %v919 = vpack.c.bf16 %v909, %v908
      %v920 = vpack.c.bf16 %v911, %v910
      %v921 = vpack.c.bf16 %v913, %v912
      %922 = vst [vmem:[#allocation2 + $0x40] sm:$0xff] %v914
      %923 = vst [vmem:[#allocation2 + $0x48] sm:$0xff] %v915
      %924 = vst [vmem:[#allocation2 + $0x50] sm:$0xff] %v916
      %925 = vst [vmem:[#allocation2 + $0x58] sm:$0xff] %v917
      %926 = vst [vmem:[#allocation2 + $0x60] sm:$0xff] %v918
      %927 = vst [vmem:[#allocation2 + $0x68] sm:$0xff] %v919
      %928 = vst [vmem:[#allocation2 + $0x70] sm:$0xff] %v920
      %929 = vst [vmem:[#allocation2 + $0x78] sm:$0xff] %v921
      %930 = vrot.lane.b32.xlu0 %v737, 15
      %v931 = vpop.permute.xlu0 %930
      %932 = vrot.lane.b32.xlu0 %v739, 15
      %v933 = vpop.permute.xlu0 %932
      %934 = vrot.lane.b32.xlu0 %v741, 15
      %v935 = vpop.permute.xlu0 %934
      %936 = vrot.lane.b32.xlu0 %v743, 15
      %v937 = vpop.permute.xlu0 %936
      %938 = vrot.lane.b32.xlu0 %v745, 15
      %v939 = vpop.permute.xlu0 %938
      %940 = vrot.lane.b32.xlu0 %v747, 15
      %v941 = vpop.permute.xlu0 %940
      %942 = vrot.lane.b32.xlu0 %v749, 15
      %v943 = vpop.permute.xlu0 %942
      %944 = vrot.lane.b32.xlu0 %v751, 15
      %v945 = vpop.permute.xlu0 %944
      %946 = vrot.lane.b32.xlu0 %v738, 15
      %v947 = vpop.permute.xlu0 %946
      %948 = vrot.lane.b32.xlu0 %v740, 15
      %v949 = vpop.permute.xlu0 %948
      %950 = vrot.lane.b32.xlu0 %v742, 15
      %v951 = vpop.permute.xlu0 %950
      %952 = vrot.lane.b32.xlu0 %v744, 15
      %v953 = vpop.permute.xlu0 %952
      %954 = vrot.lane.b32.xlu0 %v746, 15
      %v955 = vpop.permute.xlu0 %954
      %956 = vrot.lane.b32.xlu0 %v748, 15
      %v957 = vpop.permute.xlu0 %956
      %958 = vrot.lane.b32.xlu0 %v750, 15
      %v959 = vpop.permute.xlu0 %958
      %960 = vrot.lane.b32.xlu0 %v752, 15
      %v961 = vpop.permute.xlu0 %960
      %vm962 = vcmp.lt.s32.totalorder %v786, 15
      %v963 = vsel %vm962, %v931, %v947
      %v964 = vsel %vm962, %v933, %v949
      %v965 = vsel %vm962, %v935, %v951
      %v966 = vsel %vm962, %v937, %v953
      %v967 = vsel %vm962, %v939, %v955
      %v968 = vsel %vm962, %v941, %v957
      %v969 = vsel %vm962, %v943, %v959
      %v970 = vsel %vm962, %v945, %v961
      %v971 = vsel %vm962, %v947, %v931
      %v972 = vsel %vm962, %v949, %v933
      %v973 = vsel %vm962, %v951, %v935
      %v974 = vsel %vm962, %v953, %v937
      %v975 = vsel %vm962, %v955, %v939
      %v976 = vsel %vm962, %v957, %v941
      %v977 = vsel %vm962, %v959, %v943
      %v978 = vsel %vm962, %v961, %v945
      %s979 = scalar_lea.vmem %s5, 2
      %v980 = vld [vmem:[%s979] ss:$8 sm:$0x3]
      %v982 = vperm.slane %v980, 0
      %v983 = vperm.slane %v980, 1
      %v986 = vmul.f32 %v971, %v982
      %v987 = vmul.f32 %v963, %v983
      %v988 = vmul.f32 %v972, %v982
      %v989 = vmul.f32 %v964, %v983
      %v990 = vmul.f32 %v973, %v982
      %v991 = vmul.f32 %v965, %v983
      %v992 = vmul.f32 %v974, %v982
      %v993 = vmul.f32 %v966, %v983
      %v994 = vmul.f32 %v975, %v982
      %v995 = vmul.f32 %v967, %v983
      %v996 = vmul.f32 %v976, %v982
      %v997 = vmul.f32 %v968, %v983
      %v998 = vmul.f32 %v977, %v982
      %v999 = vmul.f32 %v969, %v983
      %v1000 = vmul.f32 %v978, %v982
      %v1001 = vmul.f32 %v970, %v983
      %v1002 = vpack.c.bf16 %v987, %v986
      %v1003 = vpack.c.bf16 %v989, %v988
      %v1004 = vpack.c.bf16 %v991, %v990
      %v1005 = vpack.c.bf16 %v993, %v992
      %v1006 = vpack.c.bf16 %v995, %v994
      %v1007 = vpack.c.bf16 %v997, %v996
      %v1008 = vpack.c.bf16 %v999, %v998
      %v1009 = vpack.c.bf16 %v1001, %v1000
      %1010 = vst [vmem:[#allocation2 + $0x80] sm:$0xff] %v1002
      %1011 = vst [vmem:[#allocation2 + $0x88] sm:$0xff] %v1003
      %1012 = vst [vmem:[#allocation2 + $0x90] sm:$0xff] %v1004
      %1013 = vst [vmem:[#allocation2 + $0x98] sm:$0xff] %v1005
      %1014 = vst [vmem:[#allocation2 + $0xa0] sm:$0xff] %v1006
      %1015 = vst [vmem:[#allocation2 + $0xa8] sm:$0xff] %v1007
      %1016 = vst [vmem:[#allocation2 + $0xb0] sm:$0xff] %v1008
      %1017 = vst [vmem:[#allocation2 + $0xb8] sm:$0xff] %v1009
      %1018 = vrot.lane.b32.xlu0 %v737, 1
      %v1019 = vpop.permute.xlu0 %1018
      %1020 = vrot.lane.b32.xlu0 %v739, 1
      %v1021 = vpop.permute.xlu0 %1020
      %1022 = vrot.lane.b32.xlu0 %v741, 1
      %v1023 = vpop.permute.xlu0 %1022
      %1024 = vrot.lane.b32.xlu0 %v743, 1
      %v1025 = vpop.permute.xlu0 %1024
      %1026 = vrot.lane.b32.xlu0 %v745, 1
      %v1027 = vpop.permute.xlu0 %1026
      %1028 = vrot.lane.b32.xlu0 %v747, 1
      %v1029 = vpop.permute.xlu0 %1028
      %1030 = vrot.lane.b32.xlu0 %v749, 1
      %v1031 = vpop.permute.xlu0 %1030
      %1032 = vrot.lane.b32.xlu0 %v751, 1
      %v1033 = vpop.permute.xlu0 %1032
      %1034 = vrot.lane.b32.xlu0 %v738, 1
      %v1035 = vpop.permute.xlu0 %1034
      %1036 = vrot.lane.b32.xlu0 %v740, 1
      %v1037 = vpop.permute.xlu0 %1036
      %1038 = vrot.lane.b32.xlu0 %v742, 1
      %v1039 = vpop.permute.xlu0 %1038
      %1040 = vrot.lane.b32.xlu0 %v744, 1
      %v1041 = vpop.permute.xlu0 %1040
      %1042 = vrot.lane.b32.xlu0 %v746, 1
      %v1043 = vpop.permute.xlu0 %1042
      %1044 = vrot.lane.b32.xlu0 %v748, 1
      %v1045 = vpop.permute.xlu0 %1044
      %1046 = vrot.lane.b32.xlu0 %v750, 1
      %v1047 = vpop.permute.xlu0 %1046
      %1048 = vrot.lane.b32.xlu0 %v752, 1
      %v1049 = vpop.permute.xlu0 %1048
      %vm1050 = vcmp.lt.s32.totalorder %v786, 1
      %v1051 = vsel %vm1050, %v1019, %v1035
      %v1052 = vsel %vm1050, %v1021, %v1037
      %v1053 = vsel %vm1050, %v1023, %v1039
      %v1054 = vsel %vm1050, %v1025, %v1041
      %v1055 = vsel %vm1050, %v1027, %v1043
      %v1056 = vsel %vm1050, %v1029, %v1045
      %v1057 = vsel %vm1050, %v1031, %v1047
      %v1058 = vsel %vm1050, %v1033, %v1049
      %v1059 = vsel %vm1050, %v1035, %v1019
      %v1060 = vsel %vm1050, %v1037, %v1021
      %v1061 = vsel %vm1050, %v1039, %v1023
      %v1062 = vsel %vm1050, %v1041, %v1025
      %v1063 = vsel %vm1050, %v1043, %v1027
      %v1064 = vsel %vm1050, %v1045, %v1029
      %v1065 = vsel %vm1050, %v1047, %v1031
      %v1066 = vsel %vm1050, %v1049, %v1033
      %s1067 = scalar_lea.vmem %s5, 3
      %v1068 = vld [vmem:[%s1067] ss:$8 sm:$0x3]
      %v1070 = vperm.slane %v1068, 0
      %v1071 = vperm.slane %v1068, 1
      %v1074 = vmul.f32 %v1059, %v1070
      %v1075 = vmul.f32 %v1051, %v1071
      %v1076 = vmul.f32 %v1060, %v1070
      %v1077 = vmul.f32 %v1052, %v1071
      %v1078 = vmul.f32 %v1061, %v1070
      %v1079 = vmul.f32 %v1053, %v1071
      %v1080 = vmul.f32 %v1062, %v1070
      %v1081 = vmul.f32 %v1054, %v1071
      %v1082 = vmul.f32 %v1063, %v1070
      %v1083 = vmul.f32 %v1055, %v1071
      %v1084 = vmul.f32 %v1064, %v1070
      %v1085 = vmul.f32 %v1056, %v1071
      %v1086 = vmul.f32 %v1065, %v1070
      %v1087 = vmul.f32 %v1057, %v1071
      %v1088 = vmul.f32 %v1066, %v1070
      %v1089 = vmul.f32 %v1058, %v1071
      %v1090 = vpack.c.bf16 %v1075, %v1074
      %v1091 = vpack.c.bf16 %v1077, %v1076
      %v1092 = vpack.c.bf16 %v1079, %v1078
      %v1093 = vpack.c.bf16 %v1081, %v1080
      %v1094 = vpack.c.bf16 %v1083, %v1082
      %v1095 = vpack.c.bf16 %v1085, %v1084
      %v1096 = vpack.c.bf16 %v1087, %v1086
      %v1097 = vpack.c.bf16 %v1089, %v1088
      %1098 = vst [vmem:[#allocation2 + $0xc0] sm:$0xff] %v1090
      %1099 = vst [vmem:[#allocation2 + $0xc8] sm:$0xff] %v1091
      %1100 = vst [vmem:[#allocation2 + $0xd0] sm:$0xff] %v1092
      %1101 = vst [vmem:[#allocation2 + $0xd8] sm:$0xff] %v1093
      %1102 = vst [vmem:[#allocation2 + $0xe0] sm:$0xff] %v1094
      %1103 = vst [vmem:[#allocation2 + $0xe8] sm:$0xff] %v1095
      %1104 = vst [vmem:[#allocation2 + $0xf0] sm:$0xff] %v1096
      %1105 = vst [vmem:[#allocation2 + $0xf8] sm:$0xff] %v1097
      %s1106 = scalar_lea.vmem %s5, 4
      %v1107 = vld [vmem:[%s1106] ss:$8 sm:$0x3]
      %v1109 = vperm.slane %v1107, 0
      %v1110 = vperm.slane %v1107, 1
      %v1113 = vmul.f32 %v737, %v1109
      %v1114 = vmul.f32 %v738, %v1110
      %v1115 = vmul.f32 %v739, %v1109
      %v1116 = vmul.f32 %v740, %v1110
      %v1117 = vmul.f32 %v741, %v1109
      %v1118 = vmul.f32 %v742, %v1110
      %v1119 = vmul.f32 %v743, %v1109
      %v1120 = vmul.f32 %v744, %v1110
      %v1121 = vmul.f32 %v745, %v1109
      %v1122 = vmul.f32 %v746, %v1110
      %v1123 = vmul.f32 %v747, %v1109
      %v1124 = vmul.f32 %v748, %v1110
      %v1125 = vmul.f32 %v749, %v1109
      %v1126 = vmul.f32 %v750, %v1110
      %v1127 = vmul.f32 %v751, %v1109
      %v1128 = vmul.f32 %v752, %v1110
      %v1129 = vpack.c.bf16 %v1114, %v1113
      %v1130 = vpack.c.bf16 %v1116, %v1115
      %v1131 = vpack.c.bf16 %v1118, %v1117
      %v1132 = vpack.c.bf16 %v1120, %v1119
      %v1133 = vpack.c.bf16 %v1122, %v1121
      %v1134 = vpack.c.bf16 %v1124, %v1123
      %v1135 = vpack.c.bf16 %v1126, %v1125
      %v1136 = vpack.c.bf16 %v1128, %v1127
      %1137 = vst [vmem:[#allocation2 + $0x100] sm:$0xff] %v1129
      %1138 = vst [vmem:[#allocation2 + $0x108] sm:$0xff] %v1130
      %1139 = vst [vmem:[#allocation2 + $0x110] sm:$0xff] %v1131
      %1140 = vst [vmem:[#allocation2 + $0x118] sm:$0xff] %v1132
      %1141 = vst [vmem:[#allocation2 + $0x120] sm:$0xff] %v1133
      %1142 = vst [vmem:[#allocation2 + $0x128] sm:$0xff] %v1134
      %1143 = vst [vmem:[#allocation2 + $0x130] sm:$0xff] %v1135
      %1144 = vst [vmem:[#allocation2 + $0x138] sm:$0xff] %v1136
      %1145 = vrot.lane.b32.xlu0 %v737, 127
      %v1146 = vpop.permute.xlu0 %1145
      %1147 = vrot.lane.b32.xlu0 %v739, 127
      %v1148 = vpop.permute.xlu0 %1147
      %1149 = vrot.lane.b32.xlu0 %v741, 127
      %v1150 = vpop.permute.xlu0 %1149
      %1151 = vrot.lane.b32.xlu0 %v743, 127
      %v1152 = vpop.permute.xlu0 %1151
      %1153 = vrot.lane.b32.xlu0 %v745, 127
      %v1154 = vpop.permute.xlu0 %1153
      %1155 = vrot.lane.b32.xlu0 %v747, 127
      %v1156 = vpop.permute.xlu0 %1155
      %1157 = vrot.lane.b32.xlu0 %v749, 127
      %v1158 = vpop.permute.xlu0 %1157
      %1159 = vrot.lane.b32.xlu0 %v751, 127
      %v1160 = vpop.permute.xlu0 %1159
      %1161 = vrot.lane.b32.xlu0 %v738, 127
      %v1162 = vpop.permute.xlu0 %1161
      %1163 = vrot.lane.b32.xlu0 %v740, 127
      %v1164 = vpop.permute.xlu0 %1163
      %1165 = vrot.lane.b32.xlu0 %v742, 127
      %v1166 = vpop.permute.xlu0 %1165
      %1167 = vrot.lane.b32.xlu0 %v744, 127
      %v1168 = vpop.permute.xlu0 %1167
      %1169 = vrot.lane.b32.xlu0 %v746, 127
      %v1170 = vpop.permute.xlu0 %1169
      %1171 = vrot.lane.b32.xlu0 %v748, 127
      %v1172 = vpop.permute.xlu0 %1171
      %1173 = vrot.lane.b32.xlu0 %v750, 127
      %v1174 = vpop.permute.xlu0 %1173
      %1175 = vrot.lane.b32.xlu0 %v752, 127
      %v1176 = vpop.permute.xlu0 %1175
      %vm1177 = vcmp.lt.s32.totalorder %v786, 127
      %v1178 = vsel %vm1177, %v1146, %v1162
      %v1179 = vsel %vm1177, %v1148, %v1164
      %v1180 = vsel %vm1177, %v1150, %v1166
      %v1181 = vsel %vm1177, %v1152, %v1168
      %v1182 = vsel %vm1177, %v1154, %v1170
      %v1183 = vsel %vm1177, %v1156, %v1172
      %v1184 = vsel %vm1177, %v1158, %v1174
      %v1185 = vsel %vm1177, %v1160, %v1176
      %v1186 = vsel %vm1177, %v1162, %v1146
      %v1187 = vsel %vm1177, %v1164, %v1148
      %v1188 = vsel %vm1177, %v1166, %v1150
      %v1189 = vsel %vm1177, %v1168, %v1152
      %v1190 = vsel %vm1177, %v1170, %v1154
      %v1191 = vsel %vm1177, %v1172, %v1156
      %v1192 = vsel %vm1177, %v1174, %v1158
      %v1193 = vsel %vm1177, %v1176, %v1160
      %s1194 = scalar_lea.vmem %s5, 5
      %v1195 = vld [vmem:[%s1194] ss:$8 sm:$0x3]
      %v1197 = vperm.slane %v1195, 0
      %v1198 = vperm.slane %v1195, 1
      %v1201 = vmul.f32 %v1178, %v1197
      %v1202 = vmul.f32 %v1186, %v1198
      %v1203 = vmul.f32 %v1179, %v1197
      %v1204 = vmul.f32 %v1187, %v1198
      %v1205 = vmul.f32 %v1180, %v1197
      %v1206 = vmul.f32 %v1188, %v1198
      %v1207 = vmul.f32 %v1181, %v1197
      %v1208 = vmul.f32 %v1189, %v1198
      %v1209 = vmul.f32 %v1182, %v1197
      %v1210 = vmul.f32 %v1190, %v1198
      %v1211 = vmul.f32 %v1183, %v1197
      %v1212 = vmul.f32 %v1191, %v1198
      %v1213 = vmul.f32 %v1184, %v1197
      %v1214 = vmul.f32 %v1192, %v1198
      %v1215 = vmul.f32 %v1185, %v1197
      %v1216 = vmul.f32 %v1193, %v1198
      %v1217 = vpack.c.bf16 %v1202, %v1201
      %v1218 = vpack.c.bf16 %v1204, %v1203
      %v1219 = vpack.c.bf16 %v1206, %v1205
      %v1220 = vpack.c.bf16 %v1208, %v1207
      %v1221 = vpack.c.bf16 %v1210, %v1209
      %v1222 = vpack.c.bf16 %v1212, %v1211
      %v1223 = vpack.c.bf16 %v1214, %v1213
      %v1224 = vpack.c.bf16 %v1216, %v1215
      %1225 = vst [vmem:[#allocation2 + $0x140] sm:$0xff] %v1217
      %1226 = vst [vmem:[#allocation2 + $0x148] sm:$0xff] %v1218
      %1227 = vst [vmem:[#allocation2 + $0x150] sm:$0xff] %v1219
      %1228 = vst [vmem:[#allocation2 + $0x158] sm:$0xff] %v1220
      %1229 = vst [vmem:[#allocation2 + $0x160] sm:$0xff] %v1221
      %1230 = vst [vmem:[#allocation2 + $0x168] sm:$0xff] %v1222
      %1231 = vst [vmem:[#allocation2 + $0x170] sm:$0xff] %v1223
      %1232 = vst [vmem:[#allocation2 + $0x178] sm:$0xff] %v1224
      %1233 = vrot.lane.b32.xlu0 %v737, 113
      %v1234 = vpop.permute.xlu0 %1233
      %1235 = vrot.lane.b32.xlu0 %v739, 113
      %v1236 = vpop.permute.xlu0 %1235
      %1237 = vrot.lane.b32.xlu0 %v741, 113
      %v1238 = vpop.permute.xlu0 %1237
      %1239 = vrot.lane.b32.xlu0 %v743, 113
      %v1240 = vpop.permute.xlu0 %1239
      %1241 = vrot.lane.b32.xlu0 %v745, 113
      %v1242 = vpop.permute.xlu0 %1241
      %1243 = vrot.lane.b32.xlu0 %v747, 113
      %v1244 = vpop.permute.xlu0 %1243
      %1245 = vrot.lane.b32.xlu0 %v749, 113
      %v1246 = vpop.permute.xlu0 %1245
      %1247 = vrot.lane.b32.xlu0 %v751, 113
      %v1248 = vpop.permute.xlu0 %1247
      %1249 = vrot.lane.b32.xlu0 %v738, 113
      %v1250 = vpop.permute.xlu0 %1249
      %1251 = vrot.lane.b32.xlu0 %v740, 113
      %v1252 = vpop.permute.xlu0 %1251
      %1253 = vrot.lane.b32.xlu0 %v742, 113
      %v1254 = vpop.permute.xlu0 %1253
      %1255 = vrot.lane.b32.xlu0 %v744, 113
      %v1256 = vpop.permute.xlu0 %1255
      %1257 = vrot.lane.b32.xlu0 %v746, 113
      %v1258 = vpop.permute.xlu0 %1257
      %1259 = vrot.lane.b32.xlu0 %v748, 113
      %v1260 = vpop.permute.xlu0 %1259
      %1261 = vrot.lane.b32.xlu0 %v750, 113
      %v1262 = vpop.permute.xlu0 %1261
      %1263 = vrot.lane.b32.xlu0 %v752, 113
      %v1264 = vpop.permute.xlu0 %1263
      %vm1265 = vcmp.lt.s32.totalorder %v786, 113
      %v1266 = vsel %vm1265, %v1234, %v1250
      %v1267 = vsel %vm1265, %v1236, %v1252
      %v1268 = vsel %vm1265, %v1238, %v1254
      %v1269 = vsel %vm1265, %v1240, %v1256
      %v1270 = vsel %vm1265, %v1242, %v1258
      %v1271 = vsel %vm1265, %v1244, %v1260
      %v1272 = vsel %vm1265, %v1246, %v1262
      %v1273 = vsel %vm1265, %v1248, %v1264
      %v1274 = vsel %vm1265, %v1250, %v1234
      %v1275 = vsel %vm1265, %v1252, %v1236
      %v1276 = vsel %vm1265, %v1254, %v1238
      %v1277 = vsel %vm1265, %v1256, %v1240
      %v1278 = vsel %vm1265, %v1258, %v1242
      %v1279 = vsel %vm1265, %v1260, %v1244
      %v1280 = vsel %vm1265, %v1262, %v1246
      %v1281 = vsel %vm1265, %v1264, %v1248
      %s1282 = scalar_lea.vmem %s5, 6
      %v1283 = vld [vmem:[%s1282] ss:$8 sm:$0x3]
      %v1285 = vperm.slane %v1283, 0
      %v1286 = vperm.slane %v1283, 1
      %v1289 = vmul.f32 %v1266, %v1285
      %v1290 = vmul.f32 %v1274, %v1286
      %v1291 = vmul.f32 %v1267, %v1285
      %v1292 = vmul.f32 %v1275, %v1286
      %v1293 = vmul.f32 %v1268, %v1285
      %v1294 = vmul.f32 %v1276, %v1286
      %v1295 = vmul.f32 %v1269, %v1285
      %v1296 = vmul.f32 %v1277, %v1286
      %v1297 = vmul.f32 %v1270, %v1285
      %v1298 = vmul.f32 %v1278, %v1286
      %v1299 = vmul.f32 %v1271, %v1285
      %v1300 = vmul.f32 %v1279, %v1286
      %v1301 = vmul.f32 %v1272, %v1285
      %v1302 = vmul.f32 %v1280, %v1286
      %v1303 = vmul.f32 %v1273, %v1285
      %v1304 = vmul.f32 %v1281, %v1286
      %v1305 = vpack.c.bf16 %v1290, %v1289
      %v1306 = vpack.c.bf16 %v1292, %v1291
      %v1307 = vpack.c.bf16 %v1294, %v1293
      %v1308 = vpack.c.bf16 %v1296, %v1295
      %v1309 = vpack.c.bf16 %v1298, %v1297
      %v1310 = vpack.c.bf16 %v1300, %v1299
      %v1311 = vpack.c.bf16 %v1302, %v1301
      %v1312 = vpack.c.bf16 %v1304, %v1303
      %1313 = vst [vmem:[#allocation2 + $0x180] sm:$0xff] %v1305
      %1314 = vst [vmem:[#allocation2 + $0x188] sm:$0xff] %v1306
      %1315 = vst [vmem:[#allocation2 + $0x190] sm:$0xff] %v1307
      %1316 = vst [vmem:[#allocation2 + $0x198] sm:$0xff] %v1308
      %1317 = vst [vmem:[#allocation2 + $0x1a0] sm:$0xff] %v1309
      %1318 = vst [vmem:[#allocation2 + $0x1a8] sm:$0xff] %v1310
      %1319 = vst [vmem:[#allocation2 + $0x1b0] sm:$0xff] %v1311
      %1320 = vst [vmem:[#allocation2 + $0x1b8] sm:$0xff] %v1312
      %1321 = vrot.lane.b32.xlu0 %v737, 112
      %v1322 = vpop.permute.xlu0 %1321
      %1323 = vrot.lane.b32.xlu0 %v739, 112
      %v1324 = vpop.permute.xlu0 %1323
      %1325 = vrot.lane.b32.xlu0 %v741, 112
      %v1326 = vpop.permute.xlu0 %1325
      %1327 = vrot.lane.b32.xlu0 %v743, 112
      %v1328 = vpop.permute.xlu0 %1327
      %1329 = vrot.lane.b32.xlu0 %v745, 112
      %v1330 = vpop.permute.xlu0 %1329
      %1331 = vrot.lane.b32.xlu0 %v747, 112
      %v1332 = vpop.permute.xlu0 %1331
      %1333 = vrot.lane.b32.xlu0 %v749, 112
      %v1334 = vpop.permute.xlu0 %1333
      %1335 = vrot.lane.b32.xlu0 %v751, 112
      %v1336 = vpop.permute.xlu0 %1335
      %1337 = vrot.lane.b32.xlu0 %v738, 112
      %v1338 = vpop.permute.xlu0 %1337
      %1339 = vrot.lane.b32.xlu0 %v740, 112
      %v1340 = vpop.permute.xlu0 %1339
      %1341 = vrot.lane.b32.xlu0 %v742, 112
      %v1342 = vpop.permute.xlu0 %1341
      %1343 = vrot.lane.b32.xlu0 %v744, 112
      %v1344 = vpop.permute.xlu0 %1343
      %1345 = vrot.lane.b32.xlu0 %v746, 112
      %v1346 = vpop.permute.xlu0 %1345
      %1347 = vrot.lane.b32.xlu0 %v748, 112
      %v1348 = vpop.permute.xlu0 %1347
      %1349 = vrot.lane.b32.xlu0 %v750, 112
      %v1350 = vpop.permute.xlu0 %1349
      %1351 = vrot.lane.b32.xlu0 %v752, 112
      %v1352 = vpop.permute.xlu0 %1351
      %vm1353 = vcmp.lt.s32.totalorder %v786, 112
      %v1354 = vsel %vm1353, %v1322, %v1338
      %v1355 = vsel %vm1353, %v1324, %v1340
      %v1356 = vsel %vm1353, %v1326, %v1342
      %v1357 = vsel %vm1353, %v1328, %v1344
      %v1358 = vsel %vm1353, %v1330, %v1346
      %v1359 = vsel %vm1353, %v1332, %v1348
      %v1360 = vsel %vm1353, %v1334, %v1350
      %v1361 = vsel %vm1353, %v1336, %v1352
      %v1362 = vsel %vm1353, %v1338, %v1322
      %v1363 = vsel %vm1353, %v1340, %v1324
      %v1364 = vsel %vm1353, %v1342, %v1326
      %v1365 = vsel %vm1353, %v1344, %v1328
      %v1366 = vsel %vm1353, %v1346, %v1330
      %v1367 = vsel %vm1353, %v1348, %v1332
      %v1368 = vsel %vm1353, %v1350, %v1334
      %v1369 = vsel %vm1353, %v1352, %v1336
      %s1370 = scalar_lea.vmem %s5, 7
      %v1371 = vld [vmem:[%s1370] ss:$8 sm:$0x3]
      %v1373 = vperm.slane %v1371, 0
      %v1374 = vperm.slane %v1371, 1
      %v1377 = vmul.f32 %v1354, %v1373
      %v1378 = vmul.f32 %v1362, %v1374
      %v1379 = vmul.f32 %v1355, %v1373
      %v1380 = vmul.f32 %v1363, %v1374
      %v1381 = vmul.f32 %v1356, %v1373
      %v1382 = vmul.f32 %v1364, %v1374
      %v1383 = vmul.f32 %v1357, %v1373
      %v1384 = vmul.f32 %v1365, %v1374
      %v1385 = vmul.f32 %v1358, %v1373
      %v1386 = vmul.f32 %v1366, %v1374
      %v1387 = vmul.f32 %v1359, %v1373
      %v1388 = vmul.f32 %v1367, %v1374
      %v1389 = vmul.f32 %v1360, %v1373
      %v1390 = vmul.f32 %v1368, %v1374
      %v1391 = vmul.f32 %v1361, %v1373
      %v1392 = vmul.f32 %v1369, %v1374
      %v1393 = vpack.c.bf16 %v1378, %v1377
      %v1394 = vpack.c.bf16 %v1380, %v1379
      %v1395 = vpack.c.bf16 %v1382, %v1381
      %v1396 = vpack.c.bf16 %v1384, %v1383
      %v1397 = vpack.c.bf16 %v1386, %v1385
      %v1398 = vpack.c.bf16 %v1388, %v1387
      %v1399 = vpack.c.bf16 %v1390, %v1389
      %v1400 = vpack.c.bf16 %v1392, %v1391
      %1401 = vst [vmem:[#allocation2 + $0x1c0] sm:$0xff] %v1393
      %1402 = vst [vmem:[#allocation2 + $0x1c8] sm:$0xff] %v1394
      %1403 = vst [vmem:[#allocation2 + $0x1d0] sm:$0xff] %v1395
      %1404 = vst [vmem:[#allocation2 + $0x1d8] sm:$0xff] %v1396
      %1405 = vst [vmem:[#allocation2 + $0x1e0] sm:$0xff] %v1397
      %1406 = vst [vmem:[#allocation2 + $0x1e8] sm:$0xff] %v1398
      %1407 = vst [vmem:[#allocation2 + $0x1f0] sm:$0xff] %v1399
      %1408 = vst [vmem:[#allocation2 + $0x1f8] sm:$0xff] %v1400
      %1409 = vrot.lane.b32.xlu0 %v737, 111
      %v1410 = vpop.permute.xlu0 %1409
      %1411 = vrot.lane.b32.xlu0 %v739, 111
      %v1412 = vpop.permute.xlu0 %1411
      %1413 = vrot.lane.b32.xlu0 %v741, 111
      %v1414 = vpop.permute.xlu0 %1413
      %1415 = vrot.lane.b32.xlu0 %v743, 111
      %v1416 = vpop.permute.xlu0 %1415
      %1417 = vrot.lane.b32.xlu0 %v745, 111
      %v1418 = vpop.permute.xlu0 %1417
      %1419 = vrot.lane.b32.xlu0 %v747, 111
      %v1420 = vpop.permute.xlu0 %1419
      %1421 = vrot.lane.b32.xlu0 %v749, 111
      %v1422 = vpop.permute.xlu0 %1421
      %1423 = vrot.lane.b32.xlu0 %v751, 111
      %v1424 = vpop.permute.xlu0 %1423
      %1425 = vrot.lane.b32.xlu0 %v738, 111
      %v1426 = vpop.permute.xlu0 %1425
      %1427 = vrot.lane.b32.xlu0 %v740, 111
      %v1428 = vpop.permute.xlu0 %1427
      %1429 = vrot.lane.b32.xlu0 %v742, 111
      %v1430 = vpop.permute.xlu0 %1429
      %1431 = vrot.lane.b32.xlu0 %v744, 111
      %v1432 = vpop.permute.xlu0 %1431
      %1433 = vrot.lane.b32.xlu0 %v746, 111
      %v1434 = vpop.permute.xlu0 %1433
      %1435 = vrot.lane.b32.xlu0 %v748, 111
      %v1436 = vpop.permute.xlu0 %1435
      %1437 = vrot.lane.b32.xlu0 %v750, 111
      %v1438 = vpop.permute.xlu0 %1437
      %1439 = vrot.lane.b32.xlu0 %v752, 111
      %v1440 = vpop.permute.xlu0 %1439
      %vm1441 = vcmp.lt.s32.totalorder %v786, 111
      %v1442 = vsel %vm1441, %v1410, %v1426
      %v1443 = vsel %vm1441, %v1412, %v1428
      %v1444 = vsel %vm1441, %v1414, %v1430
      %v1445 = vsel %vm1441, %v1416, %v1432
      %v1446 = vsel %vm1441, %v1418, %v1434
      %v1447 = vsel %vm1441, %v1420, %v1436
      %v1448 = vsel %vm1441, %v1422, %v1438
      %v1449 = vsel %vm1441, %v1424, %v1440
      %v1450 = vsel %vm1441, %v1426, %v1410
      %v1451 = vsel %vm1441, %v1428, %v1412
      %v1452 = vsel %vm1441, %v1430, %v1414
      %v1453 = vsel %vm1441, %v1432, %v1416
      %v1454 = vsel %vm1441, %v1434, %v1418
      %v1455 = vsel %vm1441, %v1436, %v1420
      %v1456 = vsel %vm1441, %v1438, %v1422
      %v1457 = vsel %vm1441, %v1440, %v1424
      %s1458 = scalar_lea.vmem %s5, 16
      %v1459 = vld [vmem:[%s1458] ss:$8 sm:$0x3]
      %v1461 = vperm.slane %v1459, 0
      %v1462 = vperm.slane %v1459, 1
      %v1465 = vmul.f32 %v1442, %v1461
      %v1466 = vmul.f32 %v1450, %v1462
      %v1467 = vmul.f32 %v1443, %v1461
      %v1468 = vmul.f32 %v1451, %v1462
      %v1469 = vmul.f32 %v1444, %v1461
      %v1470 = vmul.f32 %v1452, %v1462
      %v1471 = vmul.f32 %v1445, %v1461
      %v1472 = vmul.f32 %v1453, %v1462
      %v1473 = vmul.f32 %v1446, %v1461
      %v1474 = vmul.f32 %v1454, %v1462
      %v1475 = vmul.f32 %v1447, %v1461
      %v1476 = vmul.f32 %v1455, %v1462
      %v1477 = vmul.f32 %v1448, %v1461
      %v1478 = vmul.f32 %v1456, %v1462
      %v1479 = vmul.f32 %v1449, %v1461
      %v1480 = vmul.f32 %v1457, %v1462
      %v1481 = vpack.c.bf16 %v1466, %v1465
      %v1482 = vpack.c.bf16 %v1468, %v1467
      %v1483 = vpack.c.bf16 %v1470, %v1469
      %v1484 = vpack.c.bf16 %v1472, %v1471
      %v1485 = vpack.c.bf16 %v1474, %v1473
      %v1486 = vpack.c.bf16 %v1476, %v1475
      %v1487 = vpack.c.bf16 %v1478, %v1477
      %v1488 = vpack.c.bf16 %v1480, %v1479
      %1489 = vst [vmem:[#allocation2 + $0x200] sm:$0xff] %v1481
      %1490 = vst [vmem:[#allocation2 + $0x208] sm:$0xff] %v1482
      %1491 = vst [vmem:[#allocation2 + $0x210] sm:$0xff] %v1483
      %1492 = vst [vmem:[#allocation2 + $0x218] sm:$0xff] %v1484
      %1493 = vst [vmem:[#allocation2 + $0x220] sm:$0xff] %v1485
      %1494 = vst [vmem:[#allocation2 + $0x228] sm:$0xff] %v1486
      %1495 = vst [vmem:[#allocation2 + $0x230] sm:$0xff] %v1487
      %1496 = vst [vmem:[#allocation2 + $0x238] sm:$0xff] %v1488
      %v1497 = vld [vmem:[%s3] sm:$0xff]
      %v1498 = vld [vmem:[%s3 + $0x8] sm:$0xff]
      %v1499 = vld [vmem:[%s3 + $0x10] sm:$0xf]
      %v1500 = vld [vmem:[%s3 + $0x14] sm:$0xff]
      %v1501 = vld [vmem:[%s3 + $0x1c] sm:$0xff]
      %v1502 = vld [vmem:[%s3 + $0x24] sm:$0xf]
      %v1503 = vld [vmem:[%s3 + $0x28] sm:$0xff]
      %v1504 = vld [vmem:[%s3 + $0x30] sm:$0xff]
      %v1505 = vld [vmem:[%s3 + $0x38] sm:$0xf]
      %v1506 = vld [vmem:[%s3 + $0x3c] sm:$0xff]
      %v1507 = vld [vmem:[%s3 + $0x44] sm:$0xff]
      %v1508 = vld [vmem:[%s3 + $0x4c] sm:$0xf]
      %v1509 = vld [vmem:[%s3 + $0x50] sm:$0xff]
      %v1510 = vld [vmem:[%s3 + $0x58] sm:$0xff]
      %v1511 = vld [vmem:[%s3 + $0x60] sm:$0xf]
      %v1512 = vld [vmem:[%s3 + $0x64] sm:$0xff]
      %v1513 = vld [vmem:[%s3 + $0x6c] sm:$0xff]
      %v1514 = vld [vmem:[%s3 + $0x74] sm:$0xf]
      %v1515 = vld [vmem:[%s3 + $0x78] sm:$0xff]
      %v1516 = vld [vmem:[%s3 + $0x80] sm:$0xff]
      %v1517 = vld [vmem:[%s3 + $0x88] sm:$0xf]
      %v1518 = vld [vmem:[%s3 + $0x8c] sm:$0xff]
      %v1519 = vld [vmem:[%s3 + $0x94] sm:$0xff]
      %v1520 = vld [vmem:[%s3 + $0x9c] sm:$0xf]
      %v1521 = vld [vmem:[%s3 + $0xa0] sm:$0xff]
      %v1522 = vld [vmem:[%s3 + $0xa8] sm:$0xff]
      %v1523 = vld [vmem:[%s3 + $0xb0] sm:$0xf]
      %v1524 = vld [vmem:[%s3 + $0xb4] sm:$0xff]
      %v1525 = vld [vmem:[%s3 + $0xbc] sm:$0xff]
      %v1526 = vld [vmem:[%s3 + $0xc4] sm:$0xf]
      %v1527 = vld [vmem:[%s3 + $0xc8] sm:$0xff]
      %v1528 = vld [vmem:[%s3 + $0xd0] sm:$0xff]
      %v1529 = vld [vmem:[%s3 + $0xd8] sm:$0xf]
      %v1530 = vld [vmem:[%s3 + $0xdc] sm:$0xff]
      %v1531 = vld [vmem:[%s3 + $0xe4] sm:$0xff]
      %v1532 = vld [vmem:[%s3 + $0xec] sm:$0xf]
      %v1533 = vld [vmem:[%s3 + $0xf0] sm:$0xff]
      %v1534 = vld [vmem:[%s3 + $0xf8] sm:$0xff]
      %v1535 = vld [vmem:[%s3 + $0x100] sm:$0xf]
      %v1536 = vld [vmem:[%s3 + $0x104] sm:$0xff]
      %v1537 = vld [vmem:[%s3 + $0x10c] sm:$0xff]
      %v1538 = vld [vmem:[%s3 + $0x114] sm:$0xf]
      %v1539 = vld [vmem:[%s3 + $0x118] sm:$0xff]
      %v1540 = vld [vmem:[%s3 + $0x120] sm:$0xff]
      %v1541 = vld [vmem:[%s3 + $0x128] sm:$0xf]
      %v1542 = vld [vmem:[%s3 + $0x12c] sm:$0xff]
      %v1543 = vld [vmem:[%s3 + $0x134] sm:$0xff]
      %v1544 = vld [vmem:[%s3 + $0x13c] sm:$0xf]
      %v1545 = vld [vmem:[#allocation2] sm:$0xff]
      %v1546 = vld [vmem:[#allocation2 + $0x8] sm:$0xff]
      %v1547 = vld [vmem:[#allocation2 + $0x10] sm:$0xff]
      %v1548 = vld [vmem:[#allocation2 + $0x18] sm:$0xff]
      %v1549 = vld [vmem:[#allocation2 + $0x20] sm:$0xff]
      %v1550 = vld [vmem:[#allocation2 + $0x28] sm:$0xff]
      %v1551 = vld [vmem:[#allocation2 + $0x30] sm:$0xff]
      %v1552 = vld [vmem:[#allocation2 + $0x38] sm:$0xff]
      %v1553 = vld [vmem:[#allocation2 + $0x40] sm:$0xff]
      %v1554 = vld [vmem:[#allocation2 + $0x48] sm:$0xff]
      %v1555 = vld [vmem:[#allocation2 + $0x50] sm:$0xff]
      %v1556 = vld [vmem:[#allocation2 + $0x58] sm:$0xff]
      %v1557 = vld [vmem:[#allocation2 + $0x60] sm:$0xff]
      %v1558 = vld [vmem:[#allocation2 + $0x68] sm:$0xff]
      %v1559 = vld [vmem:[#allocation2 + $0x70] sm:$0xff]
      %v1560 = vld [vmem:[#allocation2 + $0x78] sm:$0xff]
      %v1561 = vld [vmem:[#allocation2 + $0x80] sm:$0xff]
      %v1562 = vld [vmem:[#allocation2 + $0x88] sm:$0xff]
      %v1563 = vld [vmem:[#allocation2 + $0x90] sm:$0xff]
      %v1564 = vld [vmem:[#allocation2 + $0x98] sm:$0xff]
      %v1565 = vld [vmem:[#allocation2 + $0xa0] sm:$0xff]
      %v1566 = vld [vmem:[#allocation2 + $0xa8] sm:$0xff]
      %v1567 = vld [vmem:[#allocation2 + $0xb0] sm:$0xff]
      %v1568 = vld [vmem:[#allocation2 + $0xb8] sm:$0xff]
      %v1569 = vld [vmem:[#allocation2 + $0xc0] sm:$0xff]
      %v1570 = vld [vmem:[#allocation2 + $0xc8] sm:$0xff]
      %v1571 = vld [vmem:[#allocation2 + $0xd0] sm:$0xff]
      %v1572 = vld [vmem:[#allocation2 + $0xd8] sm:$0xff]
      %v1573 = vld [vmem:[#allocation2 + $0xe0] sm:$0xff]
      %v1574 = vld [vmem:[#allocation2 + $0xe8] sm:$0xff]
      %v1575 = vld [vmem:[#allocation2 + $0xf0] sm:$0xff]
      %v1576 = vld [vmem:[#allocation2 + $0xf8] sm:$0xff]
      %v1577 = vld [vmem:[#allocation2 + $0x100] sm:$0xff]
      %v1578 = vld [vmem:[#allocation2 + $0x108] sm:$0xff]
      %v1579 = vld [vmem:[#allocation2 + $0x110] sm:$0xff]
      %v1580 = vld [vmem:[#allocation2 + $0x118] sm:$0xff]
      %v1581 = vld [vmem:[#allocation2 + $0x120] sm:$0xff]
      %v1582 = vld [vmem:[#allocation2 + $0x128] sm:$0xff]
      %v1583 = vld [vmem:[#allocation2 + $0x130] sm:$0xff]
      %v1584 = vld [vmem:[#allocation2 + $0x138] sm:$0xff]
      %v1585 = vld [vmem:[#allocation2 + $0x140] sm:$0xff]
      %v1586 = vld [vmem:[#allocation2 + $0x148] sm:$0xff]
      %v1587 = vld [vmem:[#allocation2 + $0x150] sm:$0xff]
      %v1588 = vld [vmem:[#allocation2 + $0x158] sm:$0xff]
      %v1589 = vld [vmem:[#allocation2 + $0x160] sm:$0xff]
      %v1590 = vld [vmem:[#allocation2 + $0x168] sm:$0xff]
      %v1591 = vld [vmem:[#allocation2 + $0x170] sm:$0xff]
      %v1592 = vld [vmem:[#allocation2 + $0x178] sm:$0xff]
      %v1593 = vld [vmem:[#allocation2 + $0x180] sm:$0xff]
      %v1594 = vld [vmem:[#allocation2 + $0x188] sm:$0xff]
      %v1595 = vld [vmem:[#allocation2 + $0x190] sm:$0xff]
      %v1596 = vld [vmem:[#allocation2 + $0x198] sm:$0xff]
      %v1597 = vld [vmem:[#allocation2 + $0x1a0] sm:$0xff]
      %v1598 = vld [vmem:[#allocation2 + $0x1a8] sm:$0xff]
      %v1599 = vld [vmem:[#allocation2 + $0x1b0] sm:$0xff]
      %v1600 = vld [vmem:[#allocation2 + $0x1b8] sm:$0xff]
      %v1601 = vld [vmem:[#allocation2 + $0x1c0] sm:$0xff]
      %v1602 = vld [vmem:[#allocation2 + $0x1c8] sm:$0xff]
      %v1603 = vld [vmem:[#allocation2 + $0x1d0] sm:$0xff]
      %v1604 = vld [vmem:[#allocation2 + $0x1d8] sm:$0xff]
      %v1605 = vld [vmem:[#allocation2 + $0x1e0] sm:$0xff]
      %v1606 = vld [vmem:[#allocation2 + $0x1e8] sm:$0xff]
      %v1607 = vld [vmem:[#allocation2 + $0x1f0] sm:$0xff]
      %v1608 = vld [vmem:[#allocation2 + $0x1f8] sm:$0xff]
      %v1609 = vld [vmem:[#allocation2 + $0x200] sm:$0xff]
      %v1610 = vld [vmem:[#allocation2 + $0x208] sm:$0xff]
      %v1611 = vld [vmem:[#allocation2 + $0x210] sm:$0xff]
      %v1612 = vld [vmem:[#allocation2 + $0x218] sm:$0xff]
      %v1613 = vld [vmem:[#allocation2 + $0x220] sm:$0xff]
      %v1614 = vld [vmem:[#allocation2 + $0x228] sm:$0xff]
      %v1615 = vld [vmem:[#allocation2 + $0x230] sm:$0xff]
      %v1616 = vld [vmem:[#allocation2 + $0x238] sm:$0xff]
      %v1617 = vld [vmem:[%s4] sm:$0xff]
      %v1618 = vld [vmem:[%s4 + $0x8] sm:$0xff]
      %v1619 = vld [vmem:[%s4 + $0x10] sm:$0xff]
      %v1620 = vld [vmem:[%s4 + $0x18] sm:$0xff]
      %v1621 = vld [vmem:[%s4 + $0x20] sm:$0xff]
      %v1622 = vld [vmem:[%s4 + $0x28] sm:$0xff]
      %v1623 = vld [vmem:[%s4 + $0x30] sm:$0xff]
      %v1624 = vld [vmem:[%s4 + $0x38] sm:$0xff]
      %v1625 = vld [vmem:[%s4 + $0x40] sm:$0xff]
      %v1626 = vld [vmem:[%s4 + $0x48] sm:$0xff]
      %v1627 = vld [vmem:[%s4 + $0x50] sm:$0xff]
      %v1628 = vld [vmem:[%s4 + $0x58] sm:$0xff]
      %v1629 = vld [vmem:[%s4 + $0x60] sm:$0xff]
      %v1630 = vld [vmem:[%s4 + $0x68] sm:$0xff]
      %v1631 = vld [vmem:[%s4 + $0x70] sm:$0xff]
      %v1632 = vld [vmem:[%s4 + $0x78] sm:$0xff]
      %1634 = vset.pattern.permute.xlu0 0
      %1635 = vperm.xlu0 %1634, %v1617
      %v1636 = vpop.permute.xlu0 %1635
      %1639 = vset.pattern.permute.xlu0 0
      %1640 = vperm.xlu0 %1639, %v1618
      %v1641 = vpop.permute.xlu0 %1640
      %1644 = vset.pattern.permute.xlu0 0
      %1645 = vperm.xlu0 %1644, %v1619
      %v1646 = vpop.permute.xlu0 %1645
      %1649 = vset.pattern.permute.xlu0 0
      %1650 = vperm.xlu0 %1649, %v1620
      %v1651 = vpop.permute.xlu0 %1650
      %1654 = vset.pattern.permute.xlu0 0
      %1655 = vperm.xlu0 %1654, %v1621
      %v1656 = vpop.permute.xlu0 %1655
      %1659 = vset.pattern.permute.xlu0 0
      %1660 = vperm.xlu0 %1659, %v1622
      %v1661 = vpop.permute.xlu0 %1660
      %1664 = vset.pattern.permute.xlu0 0
      %1665 = vperm.xlu0 %1664, %v1623
      %v1666 = vpop.permute.xlu0 %1665
      %1669 = vset.pattern.permute.xlu0 0
      %1670 = vperm.xlu0 %1669, %v1624
      %v1671 = vpop.permute.xlu0 %1670
      %1674 = vset.pattern.permute.xlu0 0
      %1675 = vperm.xlu0 %1674, %v1625
      %v1676 = vpop.permute.xlu0 %1675
      %1679 = vset.pattern.permute.xlu0 0
      %1680 = vperm.xlu0 %1679, %v1626
      %v1681 = vpop.permute.xlu0 %1680
      %1684 = vset.pattern.permute.xlu0 0
      %1685 = vperm.xlu0 %1684, %v1627
      %v1686 = vpop.permute.xlu0 %1685
      %1689 = vset.pattern.permute.xlu0 0
      %1690 = vperm.xlu0 %1689, %v1628
      %v1691 = vpop.permute.xlu0 %1690
      %1694 = vset.pattern.permute.xlu0 0
      %1695 = vperm.xlu0 %1694, %v1629
      %v1696 = vpop.permute.xlu0 %1695
      %1699 = vset.pattern.permute.xlu0 0
      %1700 = vperm.xlu0 %1699, %v1630
      %v1701 = vpop.permute.xlu0 %1700
      %1704 = vset.pattern.permute.xlu0 0
      %1705 = vperm.xlu0 %1704, %v1631
      %v1706 = vpop.permute.xlu0 %1705
      %1709 = vset.pattern.permute.xlu0 0
      %1710 = vperm.xlu0 %1709, %v1632
      %v1711 = vpop.permute.xlu0 %1710
      %v1761 = vunpack.c.l.b16 %v1497
      %v1762 = vunpack.c.h.b16 %v1497
      %v1763 = vunpack.c.l.b16 %v1498
      %v1764 = vunpack.c.h.b16 %v1498
      %v1765 = vunpack.c.l.b16 %v1499
      %v1766 = vunpack.c.l.b16 %v1500
      %v1767 = vunpack.c.h.b16 %v1500
      %v1768 = vunpack.c.l.b16 %v1501
      %v1769 = vunpack.c.h.b16 %v1501
      %v1770 = vunpack.c.l.b16 %v1502
      %v1771 = vunpack.c.l.b16 %v1503
      %v1772 = vunpack.c.h.b16 %v1503
      %v1773 = vunpack.c.l.b16 %v1504
      %v1774 = vunpack.c.h.b16 %v1504
      %v1775 = vunpack.c.l.b16 %v1505
      %v1776 = vunpack.c.l.b16 %v1506
      %v1777 = vunpack.c.h.b16 %v1506
      %v1778 = vunpack.c.l.b16 %v1507
      %v1779 = vunpack.c.h.b16 %v1507
      %v1780 = vunpack.c.l.b16 %v1508
      %v1781 = vunpack.c.l.b16 %v1509
      %v1782 = vunpack.c.h.b16 %v1509
      %v1783 = vunpack.c.l.b16 %v1510
      %v1784 = vunpack.c.h.b16 %v1510
      %v1785 = vunpack.c.l.b16 %v1511
      %v1786 = vunpack.c.l.b16 %v1512
      %v1787 = vunpack.c.h.b16 %v1512
      %v1788 = vunpack.c.l.b16 %v1513
      %v1789 = vunpack.c.h.b16 %v1513
      %v1790 = vunpack.c.l.b16 %v1514
      %v1791 = vunpack.c.l.b16 %v1515
      %v1792 = vunpack.c.h.b16 %v1515
      %v1793 = vunpack.c.l.b16 %v1516
      %v1794 = vunpack.c.h.b16 %v1516
      %v1795 = vunpack.c.l.b16 %v1517
      %v1796 = vunpack.c.l.b16 %v1518
      %v1797 = vunpack.c.h.b16 %v1518
      %v1798 = vunpack.c.l.b16 %v1519
      %v1799 = vunpack.c.h.b16 %v1519
      %v1800 = vunpack.c.l.b16 %v1520
      %v1801 = vunpack.c.l.b16 %v1521
      %v1802 = vunpack.c.h.b16 %v1521
      %v1803 = vunpack.c.l.b16 %v1522
      %v1804 = vunpack.c.h.b16 %v1522
      %v1805 = vunpack.c.l.b16 %v1523
      %v1806 = vunpack.c.l.b16 %v1524
      %v1807 = vunpack.c.h.b16 %v1524
      %v1808 = vunpack.c.l.b16 %v1525
      %v1809 = vunpack.c.h.b16 %v1525
      %v1810 = vunpack.c.l.b16 %v1526
      %v1811 = vunpack.c.l.b16 %v1527
      %v1812 = vunpack.c.h.b16 %v1527
      %v1813 = vunpack.c.l.b16 %v1528
      %v1814 = vunpack.c.h.b16 %v1528
      %v1815 = vunpack.c.l.b16 %v1529
      %v1816 = vunpack.c.l.b16 %v1530
      %v1817 = vunpack.c.h.b16 %v1530
      %v1818 = vunpack.c.l.b16 %v1531
      %v1819 = vunpack.c.h.b16 %v1531
      %v1820 = vunpack.c.l.b16 %v1532
      %v1821 = vunpack.c.l.b16 %v1533
      %v1822 = vunpack.c.h.b16 %v1533
      %v1823 = vunpack.c.l.b16 %v1534
      %v1824 = vunpack.c.h.b16 %v1534
      %v1825 = vunpack.c.l.b16 %v1535
      %v1826 = vunpack.c.l.b16 %v1536
      %v1827 = vunpack.c.h.b16 %v1536
      %v1828 = vunpack.c.l.b16 %v1537
      %v1829 = vunpack.c.h.b16 %v1537
      %v1830 = vunpack.c.l.b16 %v1538
      %v1831 = vunpack.c.l.b16 %v1539
      %v1832 = vunpack.c.h.b16 %v1539
      %v1833 = vunpack.c.l.b16 %v1540
      %v1834 = vunpack.c.h.b16 %v1540
      %v1835 = vunpack.c.l.b16 %v1541
      %v1836 = vunpack.c.l.b16 %v1542
      %v1837 = vunpack.c.h.b16 %v1542
      %v1838 = vunpack.c.l.b16 %v1543
      %v1839 = vunpack.c.h.b16 %v1543
      %v1840 = vunpack.c.l.b16 %v1544
      %v1841 = vpack.c.b16 %v1766, %v1761
      %v1842 = vpack.c.b16 %v1767, %v1762
      %v1843 = vpack.c.b16 %v1768, %v1763
      %v1844 = vpack.c.b16 %v1769, %v1764
      %v1845 = vpack.c.b16 %v1770, %v1765
      %v1846 = vpack.c.b16 %v1776, %v1771
      %v1847 = vpack.c.b16 %v1777, %v1772
      %v1848 = vpack.c.b16 %v1778, %v1773
      %v1849 = vpack.c.b16 %v1779, %v1774
      %v1850 = vpack.c.b16 %v1780, %v1775
      %v1851 = vpack.c.b16 %v1786, %v1781
      %v1852 = vpack.c.b16 %v1787, %v1782
      %v1853 = vpack.c.b16 %v1788, %v1783
      %v1854 = vpack.c.b16 %v1789, %v1784
      %v1855 = vpack.c.b16 %v1790, %v1785
      %v1856 = vpack.c.b16 %v1796, %v1791
      %v1857 = vpack.c.b16 %v1797, %v1792
      %v1858 = vpack.c.b16 %v1798, %v1793
      %v1859 = vpack.c.b16 %v1799, %v1794
      %v1860 = vpack.c.b16 %v1800, %v1795
      %v1861 = vpack.c.b16 %v1806, %v1801
      %v1862 = vpack.c.b16 %v1807, %v1802
      %v1863 = vpack.c.b16 %v1808, %v1803
      %v1864 = vpack.c.b16 %v1809, %v1804
      %v1865 = vpack.c.b16 %v1810, %v1805
      %v1866 = vpack.c.b16 %v1816, %v1811
      %v1867 = vpack.c.b16 %v1817, %v1812
      %v1868 = vpack.c.b16 %v1818, %v1813
      %v1869 = vpack.c.b16 %v1819, %v1814
      %v1870 = vpack.c.b16 %v1820, %v1815
      %v1871 = vpack.c.b16 %v1826, %v1821
      %v1872 = vpack.c.b16 %v1827, %v1822
      %v1873 = vpack.c.b16 %v1828, %v1823
      %v1874 = vpack.c.b16 %v1829, %v1824
      %v1875 = vpack.c.b16 %v1830, %v1825
      %v1876 = vpack.c.b16 %v1836, %v1831
      %v1877 = vpack.c.b16 %v1837, %v1832
      %v1878 = vpack.c.b16 %v1838, %v1833
      %v1879 = vpack.c.b16 %v1839, %v1834
      %v1880 = vpack.c.b16 %v1840, %v1835
      %v1985 = vunpack.c.l.b16 %v1545
      %v1986 = vunpack.c.h.b16 %v1545
      %v1987 = vunpack.c.l.b16 %v1546
      %v1988 = vunpack.c.h.b16 %v1546
      %v1989 = vunpack.c.l.b16 %v1547
      %v1990 = vunpack.c.h.b16 %v1547
      %v1991 = vunpack.c.l.b16 %v1548
      %v1992 = vunpack.c.h.b16 %v1548
      %v1993 = vunpack.c.l.b16 %v1549
      %v1994 = vunpack.c.h.b16 %v1549
      %v1995 = vunpack.c.l.b16 %v1550
      %v1996 = vunpack.c.h.b16 %v1550
      %v1997 = vunpack.c.l.b16 %v1551
      %v1998 = vunpack.c.h.b16 %v1551
      %v1999 = vunpack.c.l.b16 %v1552
      %v2000 = vunpack.c.h.b16 %v1552
      %v2001 = vunpack.c.l.b16 %v1553
      %v2002 = vunpack.c.h.b16 %v1553
      %v2003 = vunpack.c.l.b16 %v1554
      %v2004 = vunpack.c.h.b16 %v1554
      %v2005 = vunpack.c.l.b16 %v1555
      %v2006 = vunpack.c.h.b16 %v1555
      %v2007 = vunpack.c.l.b16 %v1556
      %v2008 = vunpack.c.h.b16 %v1556
      %v2009 = vunpack.c.l.b16 %v1557
      %v2010 = vunpack.c.h.b16 %v1557
      %v2011 = vunpack.c.l.b16 %v1558
      %v2012 = vunpack.c.h.b16 %v1558
      %v2013 = vunpack.c.l.b16 %v1559
      %v2014 = vunpack.c.h.b16 %v1559
      %v2015 = vunpack.c.l.b16 %v1560
      %v2016 = vunpack.c.h.b16 %v1560
      %v2017 = vunpack.c.l.b16 %v1561
      %v2018 = vunpack.c.h.b16 %v1561
      %v2019 = vunpack.c.l.b16 %v1562
      %v2020 = vunpack.c.h.b16 %v1562
      %v2021 = vunpack.c.l.b16 %v1563
      %v2022 = vunpack.c.h.b16 %v1563
      %v2023 = vunpack.c.l.b16 %v1564
      %v2024 = vunpack.c.h.b16 %v1564
      %v2025 = vunpack.c.l.b16 %v1565
      %v2026 = vunpack.c.h.b16 %v1565
      %v2027 = vunpack.c.l.b16 %v1566
      %v2028 = vunpack.c.h.b16 %v1566
      %v2029 = vunpack.c.l.b16 %v1567
      %v2030 = vunpack.c.h.b16 %v1567
      %v2031 = vunpack.c.l.b16 %v1568
      %v2032 = vunpack.c.h.b16 %v1568
      %v2033 = vunpack.c.l.b16 %v1569
      %v2034 = vunpack.c.h.b16 %v1569
      %v2035 = vunpack.c.l.b16 %v1570
      %v2036 = vunpack.c.h.b16 %v1570
      %v2037 = vunpack.c.l.b16 %v1571
      %v2038 = vunpack.c.h.b16 %v1571
      %v2039 = vunpack.c.l.b16 %v1572
      %v2040 = vunpack.c.h.b16 %v1572
      %v2041 = vunpack.c.l.b16 %v1573
      %v2042 = vunpack.c.h.b16 %v1573
      %v2043 = vunpack.c.l.b16 %v1574
      %v2044 = vunpack.c.h.b16 %v1574
      %v2045 = vunpack.c.l.b16 %v1575
      %v2046 = vunpack.c.h.b16 %v1575
      %v2047 = vunpack.c.l.b16 %v1576
      %v2048 = vunpack.c.h.b16 %v1576
      %v2049 = vunpack.c.l.b16 %v1577
      %v2050 = vunpack.c.h.b16 %v1577
      %v2051 = vunpack.c.l.b16 %v1578
      %v2052 = vunpack.c.h.b16 %v1578
      %v2053 = vunpack.c.l.b16 %v1579
      %v2054 = vunpack.c.h.b16 %v1579
      %v2055 = vunpack.c.l.b16 %v1580
      %v2056 = vunpack.c.h.b16 %v1580
      %v2057 = vunpack.c.l.b16 %v1581
      %v2058 = vunpack.c.h.b16 %v1581
      %v2059 = vunpack.c.l.b16 %v1582
      %v2060 = vunpack.c.h.b16 %v1582
      %v2061 = vunpack.c.l.b16 %v1583
      %v2062 = vunpack.c.h.b16 %v1583
      %v2063 = vunpack.c.l.b16 %v1584
      %v2064 = vunpack.c.h.b16 %v1584
      %v2065 = vunpack.c.l.b16 %v1585
      %v2066 = vunpack.c.h.b16 %v1585
      %v2067 = vunpack.c.l.b16 %v1586
      %v2068 = vunpack.c.h.b16 %v1586
      %v2069 = vunpack.c.l.b16 %v1587
      %v2070 = vunpack.c.h.b16 %v1587
      %v2071 = vunpack.c.l.b16 %v1588
      %v2072 = vunpack.c.h.b16 %v1588
      %v2073 = vunpack.c.l.b16 %v1589
      %v2074 = vunpack.c.h.b16 %v1589
      %v2075 = vunpack.c.l.b16 %v1590
      %v2076 = vunpack.c.h.b16 %v1590
      %v2077 = vunpack.c.l.b16 %v1591
      %v2078 = vunpack.c.h.b16 %v1591
      %v2079 = vunpack.c.l.b16 %v1592
      %v2080 = vunpack.c.h.b16 %v1592
      %v2081 = vunpack.c.l.b16 %v1593
      %v2082 = vunpack.c.h.b16 %v1593
      %v2083 = vunpack.c.l.b16 %v1594
      %v2084 = vunpack.c.h.b16 %v1594
      %v2085 = vunpack.c.l.b16 %v1595
      %v2086 = vunpack.c.h.b16 %v1595
      %v2087 = vunpack.c.l.b16 %v1596
      %v2088 = vunpack.c.h.b16 %v1596
      %v2089 = vunpack.c.l.b16 %v1597
      %v2090 = vunpack.c.h.b16 %v1597
      %v2091 = vunpack.c.l.b16 %v1598
      %v2092 = vunpack.c.h.b16 %v1598
      %v2093 = vunpack.c.l.b16 %v1599
      %v2094 = vunpack.c.h.b16 %v1599
      %v2095 = vunpack.c.l.b16 %v1600
      %v2096 = vunpack.c.h.b16 %v1600
      %v2097 = vunpack.c.l.b16 %v1601
      %v2098 = vunpack.c.h.b16 %v1601
      %v2099 = vunpack.c.l.b16 %v1602
      %v2100 = vunpack.c.h.b16 %v1602
      %v2101 = vunpack.c.l.b16 %v1603
      %v2102 = vunpack.c.h.b16 %v1603
      %v2103 = vunpack.c.l.b16 %v1604
      %v2104 = vunpack.c.h.b16 %v1604
      %v2105 = vunpack.c.l.b16 %v1605
      %v2106 = vunpack.c.h.b16 %v1605
      %v2107 = vunpack.c.l.b16 %v1606
      %v2108 = vunpack.c.h.b16 %v1606
      %v2109 = vunpack.c.l.b16 %v1607
      %v2110 = vunpack.c.h.b16 %v1607
      %v2111 = vunpack.c.l.b16 %v1608
      %v2112 = vunpack.c.h.b16 %v1608
      %v2113 = vunpack.c.l.b16 %v1609
      %v2114 = vunpack.c.h.b16 %v1609
      %v2115 = vunpack.c.l.b16 %v1610
      %v2116 = vunpack.c.h.b16 %v1610
      %v2117 = vunpack.c.l.b16 %v1611
      %v2118 = vunpack.c.h.b16 %v1611
      %v2119 = vunpack.c.l.b16 %v1612
      %v2120 = vunpack.c.h.b16 %v1612
      %v2121 = vunpack.c.l.b16 %v1613
      %v2122 = vunpack.c.h.b16 %v1613
      %v2123 = vunpack.c.l.b16 %v1614
      %v2124 = vunpack.c.h.b16 %v1614
      %v2125 = vunpack.c.l.b16 %v1615
      %v2126 = vunpack.c.h.b16 %v1615
      %v2127 = vunpack.c.l.b16 %v1616
      %v2128 = vunpack.c.h.b16 %v1616
      %v2129 = vpack.c.b16 %v1987, %v1985
      %v2130 = vpack.c.b16 %v1988, %v1986
      %v2131 = vpack.c.b16 %v1991, %v1989
      %v2132 = vpack.c.b16 %v1992, %v1990
      %v2133 = vpack.c.b16 %v1995, %v1993
      %v2134 = vpack.c.b16 %v1996, %v1994
      %v2135 = vpack.c.b16 %v1999, %v1997
      %v2136 = vpack.c.b16 %v2000, %v1998
      %v2137 = vpack.c.b16 %v2003, %v2001
      %v2138 = vpack.c.b16 %v2004, %v2002
      %v2139 = vpack.c.b16 %v2007, %v2005
      %v2140 = vpack.c.b16 %v2008, %v2006
      %v2141 = vpack.c.b16 %v2011, %v2009
      %v2142 = vpack.c.b16 %v2012, %v2010
      %v2143 = vpack.c.b16 %v2015, %v2013
      %v2144 = vpack.c.b16 %v2016, %v2014
      %v2145 = vpack.c.b16 %v2019, %v2017
      %v2146 = vpack.c.b16 %v2020, %v2018
      %v2147 = vpack.c.b16 %v2023, %v2021
      %v2148 = vpack.c.b16 %v2024, %v2022
      %v2149 = vpack.c.b16 %v2027, %v2025
      %v2150 = vpack.c.b16 %v2028, %v2026
      %v2151 = vpack.c.b16 %v2031, %v2029
      %v2152 = vpack.c.b16 %v2032, %v2030
      %v2153 = vpack.c.b16 %v2035, %v2033
      %v2154 = vpack.c.b16 %v2036, %v2034
      %v2155 = vpack.c.b16 %v2039, %v2037
      %v2156 = vpack.c.b16 %v2040, %v2038
      %v2157 = vpack.c.b16 %v2043, %v2041
      %v2158 = vpack.c.b16 %v2044, %v2042
      %v2159 = vpack.c.b16 %v2047, %v2045
      %v2160 = vpack.c.b16 %v2048, %v2046
      %v2161 = vpack.c.b16 %v2051, %v2049
      %v2162 = vpack.c.b16 %v2052, %v2050
      %v2163 = vpack.c.b16 %v2055, %v2053
      %v2164 = vpack.c.b16 %v2056, %v2054
      %v2165 = vpack.c.b16 %v2059, %v2057
      %v2166 = vpack.c.b16 %v2060, %v2058
      %v2167 = vpack.c.b16 %v2063, %v2061
      %v2168 = vpack.c.b16 %v2064, %v2062
      %v2169 = vpack.c.b16 %v2067, %v2065
      %v2170 = vpack.c.b16 %v2068, %v2066
      %v2171 = vpack.c.b16 %v2071, %v2069
      %v2172 = vpack.c.b16 %v2072, %v2070
      %v2173 = vpack.c.b16 %v2075, %v2073
      %v2174 = vpack.c.b16 %v2076, %v2074
      %v2175 = vpack.c.b16 %v2079, %v2077
      %v2176 = vpack.c.b16 %v2080, %v2078
      %v2177 = vpack.c.b16 %v2083, %v2081
      %v2178 = vpack.c.b16 %v2084, %v2082
      %v2179 = vpack.c.b16 %v2087, %v2085
      %v2180 = vpack.c.b16 %v2088, %v2086
      %v2181 = vpack.c.b16 %v2091, %v2089
      %v2182 = vpack.c.b16 %v2092, %v2090
      %v2183 = vpack.c.b16 %v2095, %v2093
      %v2184 = vpack.c.b16 %v2096, %v2094
      %v2185 = vpack.c.b16 %v2099, %v2097
      %v2186 = vpack.c.b16 %v2100, %v2098
      %v2187 = vpack.c.b16 %v2103, %v2101
      %v2188 = vpack.c.b16 %v2104, %v2102
      %v2189 = vpack.c.b16 %v2107, %v2105
      %v2190 = vpack.c.b16 %v2108, %v2106
      %v2191 = vpack.c.b16 %v2111, %v2109
      %v2192 = vpack.c.b16 %v2112, %v2110
      %v2193 = vpack.c.b16 %v2115, %v2113
      %v2194 = vpack.c.b16 %v2116, %v2114
      %v2195 = vpack.c.b16 %v2119, %v2117
      %v2196 = vpack.c.b16 %v2120, %v2118
      %v2197 = vpack.c.b16 %v2123, %v2121
      %v2198 = vpack.c.b16 %v2124, %v2122
      %v2199 = vpack.c.b16 %v2127, %v2125
      %v2200 = vpack.c.b16 %v2128, %v2126
      %vm2273 = vcmask 523264
      %v2275 = vsel %vm2273, %v1845, 0
      %v2278 = vsel %vm2273, %v1850, 0
      %v2281 = vsel %vm2273, %v1855, 0
      %v2284 = vsel %vm2273, %v1860, 0
      %v2287 = vsel %vm2273, %v1865, 0
      %v2290 = vsel %vm2273, %v1870, 0
      %v2293 = vsel %vm2273, %v1875, 0
      %v2296 = vsel %vm2273, %v1880, 0
      %2298 = vmatpush.bf16.msra.mxu0 %v2143
      %2299 = vmatpush.bf16.msra.mxu0 %v2141
      %2300 = vmatpush.bf16.msra.mxu0 %v2139
      %2301 = vmatpush.bf16.msra.mxu0 %v2137
      %2302 = vmatpush.bf16.msra.mxu0 %v2135
      %2303 = vmatpush.bf16.msra.mxu0 %v2133
      %2304 = vmatpush.bf16.msra.mxu0 %v2131
      %2305 = vmatpush.bf16.msra.mxu0 %v2129
      %2306 = vmatmul.bf16.gmra.mxu0 %v1841
      %v2307 = vpop.f32.mrf.mxu0
      %v2308 = vadd.f32 %v1636, %v2307
      %v2309 = vpop.f32.mrf.mxu0
      %v2310 = vadd.f32 %v1641, %v2309
      %2311 = vmatmul.bf16.gmra.mxu0 %v1846
      %v2312 = vpop.f32.mrf.mxu0
      %v2313 = vadd.f32 %v1646, %v2312
      %v2314 = vpop.f32.mrf.mxu0
      %v2315 = vadd.f32 %v1651, %v2314
      %2316 = vmatmul.bf16.gmra.mxu0 %v1851
      %v2317 = vpop.f32.mrf.mxu0
      %v2318 = vadd.f32 %v1656, %v2317
      %v2319 = vpop.f32.mrf.mxu0
      %v2320 = vadd.f32 %v1661, %v2319
      %2321 = vmatmul.bf16.gmra.mxu0 %v1856
      %v2322 = vpop.f32.mrf.mxu0
      %v2323 = vadd.f32 %v1666, %v2322
      %v2324 = vpop.f32.mrf.mxu0
      %v2325 = vadd.f32 %v1671, %v2324
      %2326 = vmatmul.bf16.gmra.mxu0 %v1861
      %v2327 = vpop.f32.mrf.mxu0
      %v2328 = vadd.f32 %v1676, %v2327
      %v2329 = vpop.f32.mrf.mxu0
      %v2330 = vadd.f32 %v1681, %v2329
      %2331 = vmatmul.bf16.gmra.mxu0 %v1866
      %v2332 = vpop.f32.mrf.mxu0
      %v2333 = vadd.f32 %v1686, %v2332
      %v2334 = vpop.f32.mrf.mxu0
      %v2335 = vadd.f32 %v1691, %v2334
      %2336 = vmatmul.bf16.gmra.mxu0 %v1871
      %v2337 = vpop.f32.mrf.mxu0
      %v2338 = vadd.f32 %v1696, %v2337
      %v2339 = vpop.f32.mrf.mxu0
      %v2340 = vadd.f32 %v1701, %v2339
      %2341 = vmatmul.bf16.gmra.mxu0 %v1876
      %v2342 = vpop.f32.mrf.mxu0
      %v2343 = vadd.f32 %v1706, %v2342
      %v2344 = vpop.f32.mrf.mxu0
      %v2345 = vadd.f32 %v1711, %v2344
      %2346 = vdwg.mxu0
      %2347 = vmatpush.bf16.msra.mxu0 %v2159
      %2348 = vmatpush.bf16.msra.mxu0 %v2157
      %2349 = vmatpush.bf16.msra.mxu0 %v2155
      %2350 = vmatpush.bf16.msra.mxu0 %v2153
      %2351 = vmatpush.bf16.msra.mxu0 %v2151
      %2352 = vmatpush.bf16.msra.mxu0 %v2149
      %2353 = vmatpush.bf16.msra.mxu0 %v2147
      %2354 = vmatpush.bf16.msra.mxu0 %v2145
      %2355 = vmatmul.bf16.gmra.mxu0 %v1842
      %v2356 = vpop.f32.mrf.mxu0
      %v2357 = vadd.f32 %v2308, %v2356
      %v2358 = vpop.f32.mrf.mxu0
      %v2359 = vadd.f32 %v2310, %v2358
      %2360 = vmatmul.bf16.gmra.mxu0 %v1847
      %v2361 = vpop.f32.mrf.mxu0
      %v2362 = vadd.f32 %v2313, %v2361
      %v2363 = vpop.f32.mrf.mxu0
      %v2364 = vadd.f32 %v2315, %v2363
      %2365 = vmatmul.bf16.gmra.mxu0 %v1852
      %v2366 = vpop.f32.mrf.mxu0
      %v2367 = vadd.f32 %v2318, %v2366
      %v2368 = vpop.f32.mrf.mxu0
      %v2369 = vadd.f32 %v2320, %v2368
      %2370 = vmatmul.bf16.gmra.mxu0 %v1857
      %v2371 = vpop.f32.mrf.mxu0
      %v2372 = vadd.f32 %v2323, %v2371
      %v2373 = vpop.f32.mrf.mxu0
      %v2374 = vadd.f32 %v2325, %v2373
      %2375 = vmatmul.bf16.gmra.mxu0 %v1862
      %v2376 = vpop.f32.mrf.mxu0
      %v2377 = vadd.f32 %v2328, %v2376
      %v2378 = vpop.f32.mrf.mxu0
      %v2379 = vadd.f32 %v2330, %v2378
      %2380 = vmatmul.bf16.gmra.mxu0 %v1867
      %v2381 = vpop.f32.mrf.mxu0
      %v2382 = vadd.f32 %v2333, %v2381
      %v2383 = vpop.f32.mrf.mxu0
      %v2384 = vadd.f32 %v2335, %v2383
      %2385 = vmatmul.bf16.gmra.mxu0 %v1872
      %v2386 = vpop.f32.mrf.mxu0
      %v2387 = vadd.f32 %v2338, %v2386
      %v2388 = vpop.f32.mrf.mxu0
      %v2389 = vadd.f32 %v2340, %v2388
      %2390 = vmatmul.bf16.gmra.mxu0 %v1877
      %v2391 = vpop.f32.mrf.mxu0
      %v2392 = vadd.f32 %v2343, %v2391
      %v2393 = vpop.f32.mrf.mxu0
      %v2394 = vadd.f32 %v2345, %v2393
      %2395 = vdwg.mxu0
      %2396 = vmatpush.bf16.msra.mxu0 %v2175
      %2397 = vmatpush.bf16.msra.mxu0 %v2173
      %2398 = vmatpush.bf16.msra.mxu0 %v2171
      %2399 = vmatpush.bf16.msra.mxu0 %v2169
      %2400 = vmatpush.bf16.msra.mxu0 %v2167
      %2401 = vmatpush.bf16.msra.mxu0 %v2165
      %2402 = vmatpush.bf16.msra.mxu0 %v2163
      %2403 = vmatpush.bf16.msra.mxu0 %v2161
      %2404 = vmatmul.bf16.gmra.mxu0 %v1843
      %v2405 = vpop.f32.mrf.mxu0
      %v2406 = vadd.f32 %v2357, %v2405
      %v2407 = vpop.f32.mrf.mxu0
      %v2408 = vadd.f32 %v2359, %v2407
      %2409 = vmatmul.bf16.gmra.mxu0 %v1848
      %v2410 = vpop.f32.mrf.mxu0
      %v2411 = vadd.f32 %v2362, %v2410
      %v2412 = vpop.f32.mrf.mxu0
      %v2413 = vadd.f32 %v2364, %v2412
      %2414 = vmatmul.bf16.gmra.mxu0 %v1853
      %v2415 = vpop.f32.mrf.mxu0
      %v2416 = vadd.f32 %v2367, %v2415
      %v2417 = vpop.f32.mrf.mxu0
      %v2418 = vadd.f32 %v2369, %v2417
      %2419 = vmatmul.bf16.gmra.mxu0 %v1858
      %v2420 = vpop.f32.mrf.mxu0
      %v2421 = vadd.f32 %v2372, %v2420
      %v2422 = vpop.f32.mrf.mxu0
      %v2423 = vadd.f32 %v2374, %v2422
      %2424 = vmatmul.bf16.gmra.mxu0 %v1863
      %v2425 = vpop.f32.mrf.mxu0
      %v2426 = vadd.f32 %v2377, %v2425
      %v2427 = vpop.f32.mrf.mxu0
      %v2428 = vadd.f32 %v2379, %v2427
      %2429 = vmatmul.bf16.gmra.mxu0 %v1868
      %v2430 = vpop.f32.mrf.mxu0
      %v2431 = vadd.f32 %v2382, %v2430
      %v2432 = vpop.f32.mrf.mxu0
      %v2433 = vadd.f32 %v2384, %v2432
      %2434 = vmatmul.bf16.gmra.mxu0 %v1873
      %v2435 = vpop.f32.mrf.mxu0
      %v2436 = vadd.f32 %v2387, %v2435
      %v2437 = vpop.f32.mrf.mxu0
      %v2438 = vadd.f32 %v2389, %v2437
      %2439 = vmatmul.bf16.gmra.mxu0 %v1878
      %v2440 = vpop.f32.mrf.mxu0
      %v2441 = vadd.f32 %v2392, %v2440
      %v2442 = vpop.f32.mrf.mxu0
      %v2443 = vadd.f32 %v2394, %v2442
      %2444 = vdwg.mxu0
      %2445 = vmatpush.bf16.msra.mxu0 %v2191
      %2446 = vmatpush.bf16.msra.mxu0 %v2189
      %2447 = vmatpush.bf16.msra.mxu0 %v2187
      %2448 = vmatpush.bf16.msra.mxu0 %v2185
      %2449 = vmatpush.bf16.msra.mxu0 %v2183
      %2450 = vmatpush.bf16.msra.mxu0 %v2181
      %2451 = vmatpush.bf16.msra.mxu0 %v2179
      %2452 = vmatpush.bf16.msra.mxu0 %v2177
      %2453 = vmatmul.bf16.gmra.mxu0 %v1844
      %v2454 = vpop.f32.mrf.mxu0
      %v2455 = vadd.f32 %v2406, %v2454
      %v2456 = vpop.f32.mrf.mxu0
      %v2457 = vadd.f32 %v2408, %v2456
      %2458 = vmatmul.bf16.gmra.mxu0 %v1849
      %v2459 = vpop.f32.mrf.mxu0
      %v2460 = vadd.f32 %v2411, %v2459
      %v2461 = vpop.f32.mrf.mxu0
      %v2462 = vadd.f32 %v2413, %v2461
      %2463 = vmatmul.bf16.gmra.mxu0 %v1854
      %v2464 = vpop.f32.mrf.mxu0
      %v2465 = vadd.f32 %v2416, %v2464
      %v2466 = vpop.f32.mrf.mxu0
      %v2467 = vadd.f32 %v2418, %v2466
      %2468 = vmatmul.bf16.gmra.mxu0 %v1859
      %v2469 = vpop.f32.mrf.mxu0
      %v2470 = vadd.f32 %v2421, %v2469
      %v2471 = vpop.f32.mrf.mxu0
      %v2472 = vadd.f32 %v2423, %v2471
      %2473 = vmatmul.bf16.gmra.mxu0 %v1864
      %v2474 = vpop.f32.mrf.mxu0
      %v2475 = vadd.f32 %v2426, %v2474
      %v2476 = vpop.f32.mrf.mxu0
      %v2477 = vadd.f32 %v2428, %v2476
      %2478 = vmatmul.bf16.gmra.mxu0 %v1869
      %v2479 = vpop.f32.mrf.mxu0
      %v2480 = vadd.f32 %v2431, %v2479
      %v2481 = vpop.f32.mrf.mxu0
      %v2482 = vadd.f32 %v2433, %v2481
      %2483 = vmatmul.bf16.gmra.mxu0 %v1874
      %v2484 = vpop.f32.mrf.mxu0
      %v2485 = vadd.f32 %v2436, %v2484
      %v2486 = vpop.f32.mrf.mxu0
      %v2487 = vadd.f32 %v2438, %v2486
      %2488 = vmatmul.bf16.gmra.mxu0 %v1879
      %v2489 = vpop.f32.mrf.mxu0
      %v2490 = vadd.f32 %v2441, %v2489
      %v2491 = vpop.f32.mrf.mxu0
      %v2492 = vadd.f32 %v2443, %v2491
      %2493 = vdwg.mxu0
      %2494 = vmatpush.bf16.msra.mxu0 0
      %2495 = vmatpush.bf16.msra.mxu0 0
      %2496 = vmatpush.bf16.msra.mxu0 0
      %2497 = vmatpush.bf16.msra.mxu0 0
      %2498 = vmatpush.bf16.msra.mxu0 %v2199
      %2499 = vmatpush.bf16.msra.mxu0 %v2197
      %2500 = vmatpush.bf16.msra.mxu0 %v2195
      %2501 = vmatpush.bf16.msra.mxu0 %v2193
      %2502 = vmatmul.bf16.gmra.mxu0 %v2275
      %v2503 = vpop.f32.mrf.mxu0
      %v2504 = vadd.f32 %v2455, %v2503
      %v2505 = vpop.f32.mrf.mxu0
      %v2506 = vadd.f32 %v2457, %v2505
      %2507 = vmatmul.bf16.gmra.mxu0 %v2278
      %v2508 = vpop.f32.mrf.mxu0
      %v2509 = vadd.f32 %v2460, %v2508
      %v2510 = vpop.f32.mrf.mxu0
      %v2511 = vadd.f32 %v2462, %v2510
      %2512 = vmatmul.bf16.gmra.mxu0 %v2281
      %v2513 = vpop.f32.mrf.mxu0
      %v2514 = vadd.f32 %v2465, %v2513
      %v2515 = vpop.f32.mrf.mxu0
      %v2516 = vadd.f32 %v2467, %v2515
      %2517 = vmatmul.bf16.gmra.mxu0 %v2284
      %v2518 = vpop.f32.mrf.mxu0
      %v2519 = vadd.f32 %v2470, %v2518
      %v2520 = vpop.f32.mrf.mxu0
      %v2521 = vadd.f32 %v2472, %v2520
      %2522 = vmatmul.bf16.gmra.mxu0 %v2287
      %v2523 = vpop.f32.mrf.mxu0
      %v2524 = vadd.f32 %v2475, %v2523
      %v2525 = vpop.f32.mrf.mxu0
      %v2526 = vadd.f32 %v2477, %v2525
      %2527 = vmatmul.bf16.gmra.mxu0 %v2290
      %v2528 = vpop.f32.mrf.mxu0
      %v2529 = vadd.f32 %v2480, %v2528
      %v2530 = vpop.f32.mrf.mxu0
      %v2531 = vadd.f32 %v2482, %v2530
      %2532 = vmatmul.bf16.gmra.mxu0 %v2293
      %v2533 = vpop.f32.mrf.mxu0
      %v2534 = vadd.f32 %v2485, %v2533
      %v2535 = vpop.f32.mrf.mxu0
      %v2536 = vadd.f32 %v2487, %v2535
      %2537 = vmatmul.bf16.gmra.mxu0 %v2296
      %v2538 = vpop.f32.mrf.mxu0
      %v2539 = vadd.f32 %v2490, %v2538
      %v2540 = vpop.f32.mrf.mxu0
      %v2541 = vadd.f32 %v2492, %v2540
      %2542 = vdwg.mxu0
      %2543 = vmatpush.bf16.msra.mxu0 %v2144
      %2544 = vmatpush.bf16.msra.mxu0 %v2142
      %2545 = vmatpush.bf16.msra.mxu0 %v2140
      %2546 = vmatpush.bf16.msra.mxu0 %v2138
      %2547 = vmatpush.bf16.msra.mxu0 %v2136
      %2548 = vmatpush.bf16.msra.mxu0 %v2134
      %2549 = vmatpush.bf16.msra.mxu0 %v2132
      %2550 = vmatpush.bf16.msra.mxu0 %v2130
      %2551 = vmatmul.bf16.gmra.mxu0 %v1841
      %v2552 = vpop.f32.mrf.mxu0
      %v2553 = vadd.f32 %v1636, %v2552
      %v2554 = vpop.f32.mrf.mxu0
      %v2555 = vadd.f32 %v1641, %v2554
      %2556 = vmatmul.bf16.gmra.mxu0 %v1846
      %v2557 = vpop.f32.mrf.mxu0
      %v2558 = vadd.f32 %v1646, %v2557
      %v2559 = vpop.f32.mrf.mxu0
      %v2560 = vadd.f32 %v1651, %v2559
      %2561 = vmatmul.bf16.gmra.mxu0 %v1851
      %v2562 = vpop.f32.mrf.mxu0
      %v2563 = vadd.f32 %v1656, %v2562
      %v2564 = vpop.f32.mrf.mxu0
      %v2565 = vadd.f32 %v1661, %v2564
      %2566 = vmatmul.bf16.gmra.mxu0 %v1856
      %v2567 = vpop.f32.mrf.mxu0
      %v2568 = vadd.f32 %v1666, %v2567
      %v2569 = vpop.f32.mrf.mxu0
      %v2570 = vadd.f32 %v1671, %v2569
      %2571 = vmatmul.bf16.gmra.mxu0 %v1861
      %v2572 = vpop.f32.mrf.mxu0
      %v2573 = vadd.f32 %v1676, %v2572
      %v2574 = vpop.f32.mrf.mxu0
      %v2575 = vadd.f32 %v1681, %v2574
      %2576 = vmatmul.bf16.gmra.mxu0 %v1866
      %v2577 = vpop.f32.mrf.mxu0
      %v2578 = vadd.f32 %v1686, %v2577
      %v2579 = vpop.f32.mrf.mxu0
      %v2580 = vadd.f32 %v1691, %v2579
      %2581 = vmatmul.bf16.gmra.mxu0 %v1871
      %v2582 = vpop.f32.mrf.mxu0
      %v2583 = vadd.f32 %v1696, %v2582
      %v2584 = vpop.f32.mrf.mxu0
      %v2585 = vadd.f32 %v1701, %v2584
      %2586 = vmatmul.bf16.gmra.mxu0 %v1876
      %v2587 = vpop.f32.mrf.mxu0
      %v2588 = vadd.f32 %v1706, %v2587
      %v2589 = vpop.f32.mrf.mxu0
      %v2590 = vadd.f32 %v1711, %v2589
      %2591 = vdwg.mxu0
      %2592 = vmatpush.bf16.msra.mxu0 %v2160
      %2593 = vmatpush.bf16.msra.mxu0 %v2158
      %2594 = vmatpush.bf16.msra.mxu0 %v2156
      %2595 = vmatpush.bf16.msra.mxu0 %v2154
      %2596 = vmatpush.bf16.msra.mxu0 %v2152
      %2597 = vmatpush.bf16.msra.mxu0 %v2150
      %2598 = vmatpush.bf16.msra.mxu0 %v2148
      %2599 = vmatpush.bf16.msra.mxu0 %v2146
      %2600 = vmatmul.bf16.gmra.mxu0 %v1842
      %v2601 = vpop.f32.mrf.mxu0
      %v2602 = vadd.f32 %v2553, %v2601
      %v2603 = vpop.f32.mrf.mxu0
      %v2604 = vadd.f32 %v2555, %v2603
      %2605 = vmatmul.bf16.gmra.mxu0 %v1847
      %v2606 = vpop.f32.mrf.mxu0
      %v2607 = vadd.f32 %v2558, %v2606
      %v2608 = vpop.f32.mrf.mxu0
      %v2609 = vadd.f32 %v2560, %v2608
      %2610 = vmatmul.bf16.gmra.mxu0 %v1852
      %v2611 = vpop.f32.mrf.mxu0
      %v2612 = vadd.f32 %v2563, %v2611
      %v2613 = vpop.f32.mrf.mxu0
      %v2614 = vadd.f32 %v2565, %v2613
      %2615 = vmatmul.bf16.gmra.mxu0 %v1857
      %v2616 = vpop.f32.mrf.mxu0
      %v2617 = vadd.f32 %v2568, %v2616
      %v2618 = vpop.f32.mrf.mxu0
      %v2619 = vadd.f32 %v2570, %v2618
      %2620 = vmatmul.bf16.gmra.mxu0 %v1862
      %v2621 = vpop.f32.mrf.mxu0
      %v2622 = vadd.f32 %v2573, %v2621
      %v2623 = vpop.f32.mrf.mxu0
      %v2624 = vadd.f32 %v2575, %v2623
      %2625 = vmatmul.bf16.gmra.mxu0 %v1867
      %v2626 = vpop.f32.mrf.mxu0
      %v2627 = vadd.f32 %v2578, %v2626
      %v2628 = vpop.f32.mrf.mxu0
      %v2629 = vadd.f32 %v2580, %v2628
      %2630 = vmatmul.bf16.gmra.mxu0 %v1872
      %v2631 = vpop.f32.mrf.mxu0
      %v2632 = vadd.f32 %v2583, %v2631
      %v2633 = vpop.f32.mrf.mxu0
      %v2634 = vadd.f32 %v2585, %v2633
      %2635 = vmatmul.bf16.gmra.mxu0 %v1877
      %v2636 = vpop.f32.mrf.mxu0
      %v2637 = vadd.f32 %v2588, %v2636
      %v2638 = vpop.f32.mrf.mxu0
      %v2639 = vadd.f32 %v2590, %v2638
      %2640 = vdwg.mxu0
      %2641 = vmatpush.bf16.msra.mxu0 %v2176
      %2642 = vmatpush.bf16.msra.mxu0 %v2174
      %2643 = vmatpush.bf16.msra.mxu0 %v2172
      %2644 = vmatpush.bf16.msra.mxu0 %v2170
      %2645 = vmatpush.bf16.msra.mxu0 %v2168
      %2646 = vmatpush.bf16.msra.mxu0 %v2166
      %2647 = vmatpush.bf16.msra.mxu0 %v2164
      %2648 = vmatpush.bf16.msra.mxu0 %v2162
      %2649 = vmatmul.bf16.gmra.mxu0 %v1843
      %v2650 = vpop.f32.mrf.mxu0
      %v2651 = vadd.f32 %v2602, %v2650
      %v2652 = vpop.f32.mrf.mxu0
      %v2653 = vadd.f32 %v2604, %v2652
      %2654 = vmatmul.bf16.gmra.mxu0 %v1848
      %v2655 = vpop.f32.mrf.mxu0
      %v2656 = vadd.f32 %v2607, %v2655
      %v2657 = vpop.f32.mrf.mxu0
      %v2658 = vadd.f32 %v2609, %v2657
      %2659 = vmatmul.bf16.gmra.mxu0 %v1853
      %v2660 = vpop.f32.mrf.mxu0
      %v2661 = vadd.f32 %v2612, %v2660
      %v2662 = vpop.f32.mrf.mxu0
      %v2663 = vadd.f32 %v2614, %v2662
      %2664 = vmatmul.bf16.gmra.mxu0 %v1858
      %v2665 = vpop.f32.mrf.mxu0
      %v2666 = vadd.f32 %v2617, %v2665
      %v2667 = vpop.f32.mrf.mxu0
      %v2668 = vadd.f32 %v2619, %v2667
      %2669 = vmatmul.bf16.gmra.mxu0 %v1863
      %v2670 = vpop.f32.mrf.mxu0
      %v2671 = vadd.f32 %v2622, %v2670
      %v2672 = vpop.f32.mrf.mxu0
      %v2673 = vadd.f32 %v2624, %v2672
      %2674 = vmatmul.bf16.gmra.mxu0 %v1868
      %v2675 = vpop.f32.mrf.mxu0
      %v2676 = vadd.f32 %v2627, %v2675
      %v2677 = vpop.f32.mrf.mxu0
      %v2678 = vadd.f32 %v2629, %v2677
      %2679 = vmatmul.bf16.gmra.mxu0 %v1873
      %v2680 = vpop.f32.mrf.mxu0
      %v2681 = vadd.f32 %v2632, %v2680
      %v2682 = vpop.f32.mrf.mxu0
      %v2683 = vadd.f32 %v2634, %v2682
      %2684 = vmatmul.bf16.gmra.mxu0 %v1878
      %v2685 = vpop.f32.mrf.mxu0
      %v2686 = vadd.f32 %v2637, %v2685
      %v2687 = vpop.f32.mrf.mxu0
      %v2688 = vadd.f32 %v2639, %v2687
      %2689 = vdwg.mxu0
      %2690 = vmatpush.bf16.msra.mxu0 %v2192
      %2691 = vmatpush.bf16.msra.mxu0 %v2190
      %2692 = vmatpush.bf16.msra.mxu0 %v2188
      %2693 = vmatpush.bf16.msra.mxu0 %v2186
      %2694 = vmatpush.bf16.msra.mxu0 %v2184
      %2695 = vmatpush.bf16.msra.mxu0 %v2182
      %2696 = vmatpush.bf16.msra.mxu0 %v2180
      %2697 = vmatpush.bf16.msra.mxu0 %v2178
      %2698 = vmatmul.bf16.gmra.mxu0 %v1844
      %v2699 = vpop.f32.mrf.mxu0
      %v2700 = vadd.f32 %v2651, %v2699
      %v2701 = vpop.f32.mrf.mxu0
      %v2702 = vadd.f32 %v2653, %v2701
      %2703 = vmatmul.bf16.gmra.mxu0 %v1849
      %v2704 = vpop.f32.mrf.mxu0
      %v2705 = vadd.f32 %v2656, %v2704
      %v2706 = vpop.f32.mrf.mxu0
      %v2707 = vadd.f32 %v2658, %v2706
      %2708 = vmatmul.bf16.gmra.mxu0 %v1854
      %v2709 = vpop.f32.mrf.mxu0
      %v2710 = vadd.f32 %v2661, %v2709
      %v2711 = vpop.f32.mrf.mxu0
      %v2712 = vadd.f32 %v2663, %v2711
      %2713 = vmatmul.bf16.gmra.mxu0 %v1859
      %v2714 = vpop.f32.mrf.mxu0
      %v2715 = vadd.f32 %v2666, %v2714
      %v2716 = vpop.f32.mrf.mxu0
      %v2717 = vadd.f32 %v2668, %v2716
      %2718 = vmatmul.bf16.gmra.mxu0 %v1864
      %v2719 = vpop.f32.mrf.mxu0
      %v2720 = vadd.f32 %v2671, %v2719
      %v2721 = vpop.f32.mrf.mxu0
      %v2722 = vadd.f32 %v2673, %v2721
      %2723 = vmatmul.bf16.gmra.mxu0 %v1869
      %v2724 = vpop.f32.mrf.mxu0
      %v2725 = vadd.f32 %v2676, %v2724
      %v2726 = vpop.f32.mrf.mxu0
      %v2727 = vadd.f32 %v2678, %v2726
      %2728 = vmatmul.bf16.gmra.mxu0 %v1874
      %v2729 = vpop.f32.mrf.mxu0
      %v2730 = vadd.f32 %v2681, %v2729
      %v2731 = vpop.f32.mrf.mxu0
      %v2732 = vadd.f32 %v2683, %v2731
      %2733 = vmatmul.bf16.gmra.mxu0 %v1879
      %v2734 = vpop.f32.mrf.mxu0
      %v2735 = vadd.f32 %v2686, %v2734
      %v2736 = vpop.f32.mrf.mxu0
      %v2737 = vadd.f32 %v2688, %v2736
      %2738 = vdwg.mxu0
      %2739 = vmatpush.bf16.msra.mxu0 0
      %2740 = vmatpush.bf16.msra.mxu0 0
      %2741 = vmatpush.bf16.msra.mxu0 0
      %2742 = vmatpush.bf16.msra.mxu0 0
      %2743 = vmatpush.bf16.msra.mxu0 %v2200
      %2744 = vmatpush.bf16.msra.mxu0 %v2198
      %2745 = vmatpush.bf16.msra.mxu0 %v2196
      %2746 = vmatpush.bf16.msra.mxu0 %v2194
      %2747 = vmatmul.bf16.gmra.mxu0 %v2275
      %v2748 = vpop.f32.mrf.mxu0
      %v2749 = vadd.f32 %v2700, %v2748
      %v2750 = vpop.f32.mrf.mxu0
      %v2751 = vadd.f32 %v2702, %v2750
      %2752 = vmatmul.bf16.gmra.mxu0 %v2278
      %v2753 = vpop.f32.mrf.mxu0
      %v2754 = vadd.f32 %v2705, %v2753
      %v2755 = vpop.f32.mrf.mxu0
      %v2756 = vadd.f32 %v2707, %v2755
      %2757 = vmatmul.bf16.gmra.mxu0 %v2281
      %v2758 = vpop.f32.mrf.mxu0
      %v2759 = vadd.f32 %v2710, %v2758
      %v2760 = vpop.f32.mrf.mxu0
      %v2761 = vadd.f32 %v2712, %v2760
      %2762 = vmatmul.bf16.gmra.mxu0 %v2284
      %v2763 = vpop.f32.mrf.mxu0
      %v2764 = vadd.f32 %v2715, %v2763
      %v2765 = vpop.f32.mrf.mxu0
      %v2766 = vadd.f32 %v2717, %v2765
      %2767 = vmatmul.bf16.gmra.mxu0 %v2287
      %v2768 = vpop.f32.mrf.mxu0
      %v2769 = vadd.f32 %v2720, %v2768
      %v2770 = vpop.f32.mrf.mxu0
      %v2771 = vadd.f32 %v2722, %v2770
      %2772 = vmatmul.bf16.gmra.mxu0 %v2290
      %v2773 = vpop.f32.mrf.mxu0
      %v2774 = vadd.f32 %v2725, %v2773
      %v2775 = vpop.f32.mrf.mxu0
      %v2776 = vadd.f32 %v2727, %v2775
      %2777 = vmatmul.bf16.gmra.mxu0 %v2293
      %v2778 = vpop.f32.mrf.mxu0
      %v2779 = vadd.f32 %v2730, %v2778
      %v2780 = vpop.f32.mrf.mxu0
      %v2781 = vadd.f32 %v2732, %v2780
      %2782 = vmatmul.bf16.gmra.mxu0 %v2296
      %v2783 = vpop.f32.mrf.mxu0
      %v2784 = vadd.f32 %v2735, %v2783
      %v2785 = vpop.f32.mrf.mxu0
      %v2786 = vadd.f32 %v2737, %v2785
      %2787 = vdwg.mxu0
      %v2788 = vmax.f32 %v2504, %v2509
      %v2789 = vmax.f32 %v2506, %v2511
      %v2790 = vmax.f32 %v2788, %v2789
      %v2791 = vrot.slane %v2790, 4
      %v2792 = vmax.f32 %v2790, %v2791
      %v2793 = vrot.slane %v2792, 2
      %v2794 = vmax.f32 %v2792, %v2793
      %v2795 = vrot.slane %v2794, 1
      %v2796 = vmax.f32 %v2794, %v2795
      %v2797 = vmax.f32 %v2749, %v2754
      %v2798 = vmax.f32 %v2751, %v2756
      %v2799 = vmax.f32 %v2797, %v2798
      %v2800 = vrot.slane %v2799, 4
      %v2801 = vmax.f32 %v2799, %v2800
      %v2802 = vrot.slane %v2801, 2
      %v2803 = vmax.f32 %v2801, %v2802
      %v2804 = vrot.slane %v2803, 1
      %v2805 = vmax.f32 %v2803, %v2804
      %v2806 = vsub.f32 %v2504, %v2796
      %v2807 = vsub.f32 %v2749, %v2805
      %v2808 = vsub.f32 %v2506, %v2796
      %v2809 = vsub.f32 %v2751, %v2805
      %v2810 = vsub.f32 %v2509, %v2796
      %v2811 = vsub.f32 %v2754, %v2805
      %v2812 = vsub.f32 %v2511, %v2796
      %v2813 = vsub.f32 %v2756, %v2805
      %v2814 = vmul.f32 %v2806, 1.442695
      %v2815 = vpow.pop %v2814
      %v2816 = vmul.f32 %v2807, 1.442695
      %v2817 = vpow.pop %v2816
      %v2818 = vmul.f32 %v2808, 1.442695
      %v2819 = vpow.pop %v2818
      %v2820 = vmul.f32 %v2809, 1.442695
      %v2821 = vpow.pop %v2820
      %v2822 = vmul.f32 %v2810, 1.442695
      %v2823 = vpow.pop %v2822
      %v2824 = vmul.f32 %v2811, 1.442695
      %v2825 = vpow.pop %v2824
      %v2826 = vmul.f32 %v2812, 1.442695
      %v2827 = vpow.pop %v2826
      %v2828 = vmul.f32 %v2813, 1.442695
      %v2829 = vpow.pop %v2828
      %v2830 = vadd.f32 %v2815, %v2819
      %v2831 = vadd.f32 %v2830, %v2823
      %v2832 = vadd.f32 %v2831, %v2827
      %v2833 = vrot.slane %v2832, 4
      %v2834 = vadd.f32 %v2832, %v2833
      %v2835 = vrot.slane %v2834, 2
      %v2836 = vadd.f32 %v2834, %v2835
      %v2837 = vrot.slane %v2836, 1
      %v2838 = vadd.f32 %v2836, %v2837
      %v2839 = vadd.f32 %v2817, %v2821
      %v2840 = vadd.f32 %v2839, %v2825
      %v2841 = vadd.f32 %v2840, %v2829
      %v2842 = vrot.slane %v2841, 4
      %v2843 = vadd.f32 %v2841, %v2842
      %v2844 = vrot.slane %v2843, 2
      %v2845 = vadd.f32 %v2843, %v2844
      %v2846 = vrot.slane %v2845, 1
      %v2847 = vadd.f32 %v2845, %v2846
      %v2848 = vrcp.pop %v2838
      %v2849 = vmul.f32 %v2838, %v2848
      %v2850 = vsub.f32 1.0, %v2849
      %v2851 = vmul.f32 %v2848, %v2850
      %v2852 = vadd.f32 %v2848, %v2851
      %vm2853 = vweird.f32 %v2838
      %vm2854 = vweird.f32 %v2848
      %vm2855 = vmor %vm2853, %vm2854
      %v2856 = vsel %vm2855, %v2848, %v2852
      %v2857 = vand.u32 2147483647, %v2838
      %vm2858 = vcmp.eq.f32.partialorder %v2857, 8.507059e+37
      %v2859 = vand.u32 %v2838, 2147483648
      %v2860 = vor.u32 1.1754944e-38, %v2859
      %v2861 = vsel %vm2858, %v2860, %v2856
      %v2862 = vmul.f32 %v2815, %v2861
      %v2863 = vrcp.pop %v2847
      %v2864 = vmul.f32 %v2847, %v2863
      %v2865 = vsub.f32 1.0, %v2864
      %v2866 = vmul.f32 %v2863, %v2865
      %v2867 = vadd.f32 %v2863, %v2866
      %vm2868 = vweird.f32 %v2847
      %vm2869 = vweird.f32 %v2863
      %vm2870 = vmor %vm2868, %vm2869
      %v2871 = vsel %vm2870, %v2863, %v2867
      %v2872 = vand.u32 2147483647, %v2847
      %vm2873 = vcmp.eq.f32.partialorder %v2872, 8.507059e+37
      %v2874 = vand.u32 %v2847, 2147483648
      %v2875 = vor.u32 1.1754944e-38, %v2874
      %v2876 = vsel %vm2873, %v2875, %v2871
      %v2877 = vmul.f32 %v2817, %v2876
      %v2878 = vmul.f32 %v2819, %v2861
      %v2879 = vmul.f32 %v2821, %v2876
      %v2880 = vmul.f32 %v2823, %v2861
      %v2881 = vmul.f32 %v2825, %v2876
      %v2882 = vmul.f32 %v2827, %v2861
      %v2883 = vmul.f32 %v2829, %v2876
      %v2884 = vld [vmem:[%s6] sm:$0xff]
      %v2885 = vld [vmem:[%s6 + $0x8] sm:$0xff]
      %v2886 = vld [vmem:[%s6 + $0x10] sm:$0xff]
      %v2887 = vld [vmem:[%s6 + $0x18] sm:$0xff]
      %v2888 = vld [vmem:[%s6 + $0x20] sm:$0xff]
      %v2889 = vld [vmem:[%s6 + $0x28] sm:$0xff]
      %v2890 = vld [vmem:[%s6 + $0x30] sm:$0xff]
      %v2891 = vld [vmem:[%s6 + $0x38] sm:$0xff]
      %v2892 = vmul.f32 %v2862, %v2884
      %v2893 = vmul.f32 %v2877, %v2885
      %v2894 = vmul.f32 %v2878, %v2886
      %v2895 = vmul.f32 %v2879, %v2887
      %v2896 = vmul.f32 %v2880, %v2888
      %v2897 = vmul.f32 %v2881, %v2889
      %v2898 = vmul.f32 %v2882, %v2890
      %v2899 = vmul.f32 %v2883, %v2891
      %v2900 = vmax.f32 %v2514, %v2519
      %v2901 = vmax.f32 %v2516, %v2521
      %v2902 = vmax.f32 %v2900, %v2901
      %v2903 = vrot.slane %v2902, 4
      %v2904 = vmax.f32 %v2902, %v2903
      %v2905 = vrot.slane %v2904, 2
      %v2906 = vmax.f32 %v2904, %v2905
      %v2907 = vrot.slane %v2906, 1
      %v2908 = vmax.f32 %v2906, %v2907
      %v2909 = vmax.f32 %v2759, %v2764
      %v2910 = vmax.f32 %v2761, %v2766
      %v2911 = vmax.f32 %v2909, %v2910
      %v2912 = vrot.slane %v2911, 4
      %v2913 = vmax.f32 %v2911, %v2912
      %v2914 = vrot.slane %v2913, 2
      %v2915 = vmax.f32 %v2913, %v2914
      %v2916 = vrot.slane %v2915, 1
      %v2917 = vmax.f32 %v2915, %v2916
      %v2918 = vsub.f32 %v2514, %v2908
      %v2919 = vsub.f32 %v2759, %v2917
      %v2920 = vsub.f32 %v2516, %v2908
      %v2921 = vsub.f32 %v2761, %v2917
      %v2922 = vsub.f32 %v2519, %v2908
      %v2923 = vsub.f32 %v2764, %v2917
      %v2924 = vsub.f32 %v2521, %v2908
      %v2925 = vsub.f32 %v2766, %v2917
      %v2926 = vmul.f32 %v2918, 1.442695
      %v2927 = vpow.pop %v2926
      %v2928 = vmul.f32 %v2919, 1.442695
      %v2929 = vpow.pop %v2928
      %v2930 = vmul.f32 %v2920, 1.442695
      %v2931 = vpow.pop %v2930
      %v2932 = vmul.f32 %v2921, 1.442695
      %v2933 = vpow.pop %v2932
      %v2934 = vmul.f32 %v2922, 1.442695
      %v2935 = vpow.pop %v2934
      %v2936 = vmul.f32 %v2923, 1.442695
      %v2937 = vpow.pop %v2936
      %v2938 = vmul.f32 %v2924, 1.442695
      %v2939 = vpow.pop %v2938
      %v2940 = vmul.f32 %v2925, 1.442695
      %v2941 = vpow.pop %v2940
      %v2942 = vadd.f32 %v2927, %v2931
      %v2943 = vadd.f32 %v2942, %v2935
      %v2944 = vadd.f32 %v2943, %v2939
      %v2945 = vrot.slane %v2944, 4
      %v2946 = vadd.f32 %v2944, %v2945
      %v2947 = vrot.slane %v2946, 2
      %v2948 = vadd.f32 %v2946, %v2947
      %v2949 = vrot.slane %v2948, 1
      %v2950 = vadd.f32 %v2948, %v2949
      %v2951 = vadd.f32 %v2929, %v2933
      %v2952 = vadd.f32 %v2951, %v2937
      %v2953 = vadd.f32 %v2952, %v2941
      %v2954 = vrot.slane %v2953, 4
      %v2955 = vadd.f32 %v2953, %v2954
      %v2956 = vrot.slane %v2955, 2
      %v2957 = vadd.f32 %v2955, %v2956
      %v2958 = vrot.slane %v2957, 1
      %v2959 = vadd.f32 %v2957, %v2958
      %v2960 = vrcp.pop %v2950
      %v2961 = vmul.f32 %v2950, %v2960
      %v2962 = vsub.f32 1.0, %v2961
      %v2963 = vmul.f32 %v2960, %v2962
      %v2964 = vadd.f32 %v2960, %v2963
      %vm2965 = vweird.f32 %v2950
      %vm2966 = vweird.f32 %v2960
      %vm2967 = vmor %vm2965, %vm2966
      %v2968 = vsel %vm2967, %v2960, %v2964
      %v2969 = vand.u32 2147483647, %v2950
      %vm2970 = vcmp.eq.f32.partialorder %v2969, 8.507059e+37
      %v2971 = vand.u32 %v2950, 2147483648
      %v2972 = vor.u32 1.1754944e-38, %v2971
      %v2973 = vsel %vm2970, %v2972, %v2968
      %v2974 = vmul.f32 %v2927, %v2973
      %v2975 = vrcp.pop %v2959
      %v2976 = vmul.f32 %v2959, %v2975
      %v2977 = vsub.f32 1.0, %v2976
      %v2978 = vmul.f32 %v2975, %v2977
      %v2979 = vadd.f32 %v2975, %v2978
      %vm2980 = vweird.f32 %v2959
      %vm2981 = vweird.f32 %v2975
      %vm2982 = vmor %vm2980, %vm2981
      %v2983 = vsel %vm2982, %v2975, %v2979
      %v2984 = vand.u32 2147483647, %v2959
      %vm2985 = vcmp.eq.f32.partialorder %v2984, 8.507059e+37
      %v2986 = vand.u32 %v2959, 2147483648
      %v2987 = vor.u32 1.1754944e-38, %v2986
      %v2988 = vsel %vm2985, %v2987, %v2983
      %v2989 = vmul.f32 %v2929, %v2988
      %v2990 = vmul.f32 %v2931, %v2973
      %v2991 = vmul.f32 %v2933, %v2988
      %v2992 = vmul.f32 %v2935, %v2973
      %v2993 = vmul.f32 %v2937, %v2988
      %v2994 = vmul.f32 %v2939, %v2973
      %v2995 = vmul.f32 %v2941, %v2988
      %v2996 = vmul.f32 %v2974, %v2884
      %v2997 = vmul.f32 %v2989, %v2885
      %v2998 = vmul.f32 %v2990, %v2886
      %v2999 = vmul.f32 %v2991, %v2887
      %v3000 = vmul.f32 %v2992, %v2888
      %v3001 = vmul.f32 %v2993, %v2889
      %v3002 = vmul.f32 %v2994, %v2890
      %v3003 = vmul.f32 %v2995, %v2891
      %v3004 = vmax.f32 %v2524, %v2529
      %v3005 = vmax.f32 %v2526, %v2531
      %v3006 = vmax.f32 %v3004, %v3005
      %v3007 = vrot.slane %v3006, 4
      %v3008 = vmax.f32 %v3006, %v3007
      %v3009 = vrot.slane %v3008, 2
      %v3010 = vmax.f32 %v3008, %v3009
      %v3011 = vrot.slane %v3010, 1
      %v3012 = vmax.f32 %v3010, %v3011
      %v3013 = vmax.f32 %v2769, %v2774
      %v3014 = vmax.f32 %v2771, %v2776
      %v3015 = vmax.f32 %v3013, %v3014
      %v3016 = vrot.slane %v3015, 4
      %v3017 = vmax.f32 %v3015, %v3016
      %v3018 = vrot.slane %v3017, 2
      %v3019 = vmax.f32 %v3017, %v3018
      %v3020 = vrot.slane %v3019, 1
      %v3021 = vmax.f32 %v3019, %v3020
      %v3022 = vsub.f32 %v2524, %v3012
      %v3023 = vsub.f32 %v2769, %v3021
      %v3024 = vsub.f32 %v2526, %v3012
      %v3025 = vsub.f32 %v2771, %v3021
      %v3026 = vsub.f32 %v2529, %v3012
      %v3027 = vsub.f32 %v2774, %v3021
      %v3028 = vsub.f32 %v2531, %v3012
      %v3029 = vsub.f32 %v2776, %v3021
      %v3030 = vmul.f32 %v3022, 1.442695
      %v3031 = vpow.pop %v3030
      %v3032 = vmul.f32 %v3023, 1.442695
      %v3033 = vpow.pop %v3032
      %v3034 = vmul.f32 %v3024, 1.442695
      %v3035 = vpow.pop %v3034
      %v3036 = vmul.f32 %v3025, 1.442695
      %v3037 = vpow.pop %v3036
      %v3038 = vmul.f32 %v3026, 1.442695
      %v3039 = vpow.pop %v3038
      %v3040 = vmul.f32 %v3027, 1.442695
      %v3041 = vpow.pop %v3040
      %v3042 = vmul.f32 %v3028, 1.442695
      %v3043 = vpow.pop %v3042
      %v3044 = vmul.f32 %v3029, 1.442695
      %v3045 = vpow.pop %v3044
      %v3046 = vadd.f32 %v3031, %v3035
      %v3047 = vadd.f32 %v3046, %v3039
      %v3048 = vadd.f32 %v3047, %v3043
      %v3049 = vrot.slane %v3048, 4
      %v3050 = vadd.f32 %v3048, %v3049
      %v3051 = vrot.slane %v3050, 2
      %v3052 = vadd.f32 %v3050, %v3051
      %v3053 = vrot.slane %v3052, 1
      %v3054 = vadd.f32 %v3052, %v3053
      %v3055 = vadd.f32 %v3033, %v3037
      %v3056 = vadd.f32 %v3055, %v3041
      %v3057 = vadd.f32 %v3056, %v3045
      %v3058 = vrot.slane %v3057, 4
      %v3059 = vadd.f32 %v3057, %v3058
      %v3060 = vrot.slane %v3059, 2
      %v3061 = vadd.f32 %v3059, %v3060
      %v3062 = vrot.slane %v3061, 1
      %v3063 = vadd.f32 %v3061, %v3062
      %v3064 = vrcp.pop %v3054
      %v3065 = vmul.f32 %v3054, %v3064
      %v3066 = vsub.f32 1.0, %v3065
      %v3067 = vmul.f32 %v3064, %v3066
      %v3068 = vadd.f32 %v3064, %v3067
      %vm3069 = vweird.f32 %v3054
      %vm3070 = vweird.f32 %v3064
      %vm3071 = vmor %vm3069, %vm3070
      %v3072 = vsel %vm3071, %v3064, %v3068
      %v3073 = vand.u32 2147483647, %v3054
      %vm3074 = vcmp.eq.f32.partialorder %v3073, 8.507059e+37
      %v3075 = vand.u32 %v3054, 2147483648
      %v3076 = vor.u32 1.1754944e-38, %v3075
      %v3077 = vsel %vm3074, %v3076, %v3072
      %v3078 = vmul.f32 %v3031, %v3077
      %v3079 = vrcp.pop %v3063
      %v3080 = vmul.f32 %v3063, %v3079
      %v3081 = vsub.f32 1.0, %v3080
      %v3082 = vmul.f32 %v3079, %v3081
      %v3083 = vadd.f32 %v3079, %v3082
      %vm3084 = vweird.f32 %v3063
      %vm3085 = vweird.f32 %v3079
      %vm3086 = vmor %vm3084, %vm3085
      %v3087 = vsel %vm3086, %v3079, %v3083
      %v3088 = vand.u32 2147483647, %v3063
      %vm3089 = vcmp.eq.f32.partialorder %v3088, 8.507059e+37
      %v3090 = vand.u32 %v3063, 2147483648
      %v3091 = vor.u32 1.1754944e-38, %v3090
      %v3092 = vsel %vm3089, %v3091, %v3087
      %v3093 = vmul.f32 %v3033, %v3092
      %v3094 = vmul.f32 %v3035, %v3077
      %v3095 = vmul.f32 %v3037, %v3092
      %v3096 = vmul.f32 %v3039, %v3077
      %v3097 = vmul.f32 %v3041, %v3092
      %v3098 = vmul.f32 %v3043, %v3077
      %v3099 = vmul.f32 %v3045, %v3092
      %v3100 = vmul.f32 %v3078, %v2884
      %v3101 = vmul.f32 %v3093, %v2885
      %v3102 = vmul.f32 %v3094, %v2886
      %v3103 = vmul.f32 %v3095, %v2887
      %v3104 = vmul.f32 %v3096, %v2888
      %v3105 = vmul.f32 %v3097, %v2889
      %v3106 = vmul.f32 %v3098, %v2890
      %v3107 = vmul.f32 %v3099, %v2891
      %v3108 = vmax.f32 %v2534, %v2539
      %v3109 = vmax.f32 %v2536, %v2541
      %v3110 = vmax.f32 %v3108, %v3109
      %v3111 = vrot.slane %v3110, 4
      %v3112 = vmax.f32 %v3110, %v3111
      %v3113 = vrot.slane %v3112, 2
      %v3114 = vmax.f32 %v3112, %v3113
      %v3115 = vrot.slane %v3114, 1
      %v3116 = vmax.f32 %v3114, %v3115
      %v3117 = vmax.f32 %v2779, %v2784
      %v3118 = vmax.f32 %v2781, %v2786
      %v3119 = vmax.f32 %v3117, %v3118
      %v3120 = vrot.slane %v3119, 4
      %v3121 = vmax.f32 %v3119, %v3120
      %v3122 = vrot.slane %v3121, 2
      %v3123 = vmax.f32 %v3121, %v3122
      %v3124 = vrot.slane %v3123, 1
      %v3125 = vmax.f32 %v3123, %v3124
      %v3126 = vsub.f32 %v2534, %v3116
      %v3127 = vsub.f32 %v2779, %v3125
      %v3128 = vsub.f32 %v2536, %v3116
      %v3129 = vsub.f32 %v2781, %v3125
      %v3130 = vsub.f32 %v2539, %v3116
      %v3131 = vsub.f32 %v2784, %v3125
      %v3132 = vsub.f32 %v2541, %v3116
      %v3133 = vsub.f32 %v2786, %v3125
      %v3134 = vmul.f32 %v3126, 1.442695
      %v3135 = vpow.pop %v3134
      %v3136 = vmul.f32 %v3127, 1.442695
      %v3137 = vpow.pop %v3136
      %v3138 = vmul.f32 %v3128, 1.442695
      %v3139 = vpow.pop %v3138
      %v3140 = vmul.f32 %v3129, 1.442695
      %v3141 = vpow.pop %v3140
      %v3142 = vmul.f32 %v3130, 1.442695
      %v3143 = vpow.pop %v3142
      %v3144 = vmul.f32 %v3131, 1.442695
      %v3145 = vpow.pop %v3144
      %v3146 = vmul.f32 %v3132, 1.442695
      %v3147 = vpow.pop %v3146
      %v3148 = vmul.f32 %v3133, 1.442695
      %v3149 = vpow.pop %v3148
      %v3150 = vadd.f32 %v3135, %v3139
      %v3151 = vadd.f32 %v3150, %v3143
      %v3152 = vadd.f32 %v3151, %v3147
      %v3153 = vrot.slane %v3152, 4
      %v3154 = vadd.f32 %v3152, %v3153
      %v3155 = vrot.slane %v3154, 2
      %v3156 = vadd.f32 %v3154, %v3155
      %v3157 = vrot.slane %v3156, 1
      %v3158 = vadd.f32 %v3156, %v3157
      %v3159 = vadd.f32 %v3137, %v3141
      %v3160 = vadd.f32 %v3159, %v3145
      %v3161 = vadd.f32 %v3160, %v3149
      %v3162 = vrot.slane %v3161, 4
      %v3163 = vadd.f32 %v3161, %v3162
      %v3164 = vrot.slane %v3163, 2
      %v3165 = vadd.f32 %v3163, %v3164
      %v3166 = vrot.slane %v3165, 1
      %v3167 = vadd.f32 %v3165, %v3166
      %v3168 = vrcp.pop %v3158
      %v3169 = vmul.f32 %v3158, %v3168
      %v3170 = vsub.f32 1.0, %v3169
      %v3171 = vmul.f32 %v3168, %v3170
      %v3172 = vadd.f32 %v3168, %v3171
      %vm3173 = vweird.f32 %v3158
      %vm3174 = vweird.f32 %v3168
      %vm3175 = vmor %vm3173, %vm3174
      %v3176 = vsel %vm3175, %v3168, %v3172
      %v3177 = vand.u32 2147483647, %v3158
      %vm3178 = vcmp.eq.f32.partialorder %v3177, 8.507059e+37
      %v3179 = vand.u32 %v3158, 2147483648
      %v3180 = vor.u32 1.1754944e-38, %v3179
      %v3181 = vsel %vm3178, %v3180, %v3176
      %v3182 = vmul.f32 %v3135, %v3181
      %v3183 = vrcp.pop %v3167
      %v3184 = vmul.f32 %v3167, %v3183
      %v3185 = vsub.f32 1.0, %v3184
      %v3186 = vmul.f32 %v3183, %v3185
      %v3187 = vadd.f32 %v3183, %v3186
      %vm3188 = vweird.f32 %v3167
      %vm3189 = vweird.f32 %v3183
      %vm3190 = vmor %vm3188, %vm3189
      %v3191 = vsel %vm3190, %v3183, %v3187
      %v3192 = vand.u32 2147483647, %v3167
      %vm3193 = vcmp.eq.f32.partialorder %v3192, 8.507059e+37
      %v3194 = vand.u32 %v3167, 2147483648
      %v3195 = vor.u32 1.1754944e-38, %v3194
      %v3196 = vsel %vm3193, %v3195, %v3191
      %v3197 = vmul.f32 %v3137, %v3196
      %v3198 = vmul.f32 %v3139, %v3181
      %v3199 = vmul.f32 %v3141, %v3196
      %v3200 = vmul.f32 %v3143, %v3181
      %v3201 = vmul.f32 %v3145, %v3196
      %v3202 = vmul.f32 %v3147, %v3181
      %v3203 = vmul.f32 %v3149, %v3196
      %v3204 = vmul.f32 %v3182, %v2884
      %v3205 = vmul.f32 %v3197, %v2885
      %v3206 = vmul.f32 %v3198, %v2886
      %v3207 = vmul.f32 %v3199, %v2887
      %v3208 = vmul.f32 %v3200, %v2888
      %v3209 = vmul.f32 %v3201, %v2889
      %v3210 = vmul.f32 %v3202, %v2890
      %v3211 = vmul.f32 %v3203, %v2891
      %3212 = vrot.lane.b32.xlu0 %v280, 34
      %v3213 = vpop.permute.xlu0 %3212
      %3214 = vrot.lane.b32.xlu0 %v282, 34
      %v3215 = vpop.permute.xlu0 %3214
      %3216 = vrot.lane.b32.xlu0 %v281, 34
      %v3217 = vpop.permute.xlu0 %3216
      %3218 = vrot.lane.b32.xlu0 %v283, 34
      %v3219 = vpop.permute.xlu0 %3218
      %vm3220 = vcmp.lt.s32.totalorder %v786, 34
      %v3221 = vsel %vm3220, %v3213, %v3217
      %v3222 = vsel %vm3220, %v3215, %v3219
      %v3223 = vsel %vm3220, %v3217, %v3213
      %v3224 = vsel %vm3220, %v3219, %v3215
      %v3225 = vperm.slane %v2892, 0
      %v3226 = vperm.slane %v2893, 0
      %v3227 = vmul.f32 %v3223, %v3225
      %v3228 = vmul.f32 %v3221, %v3226
      %v3229 = vmul.f32 %v3224, %v3225
      %v3230 = vmul.f32 %v3222, %v3226
      %v3231 = vadd.f32 %v3227, 0.0
      %v3232 = vadd.f32 %v3228, 0.0
      %v3233 = vadd.f32 %v3229, 0.0
      %v3234 = vadd.f32 %v3230, 0.0
      %v3235 = vperm.slane %v2996, 0
      %v3236 = vperm.slane %v2997, 0
      %v3237 = vmul.f32 %v3223, %v3235
      %v3238 = vmul.f32 %v3221, %v3236
      %v3239 = vmul.f32 %v3224, %v3235
      %v3240 = vmul.f32 %v3222, %v3236
      %v3241 = vadd.f32 %v3237, 0.0
      %v3242 = vadd.f32 %v3238, 0.0
      %v3243 = vadd.f32 %v3239, 0.0
      %v3244 = vadd.f32 %v3240, 0.0
      %v3245 = vperm.slane %v3100, 0
      %v3246 = vperm.slane %v3101, 0
      %v3247 = vmul.f32 %v3223, %v3245
      %v3248 = vmul.f32 %v3221, %v3246
      %v3249 = vmul.f32 %v3224, %v3245
      %v3250 = vmul.f32 %v3222, %v3246
      %v3251 = vadd.f32 %v3247, 0.0
      %v3252 = vadd.f32 %v3248, 0.0
      %v3253 = vadd.f32 %v3249, 0.0
      %v3254 = vadd.f32 %v3250, 0.0
      %v3255 = vperm.slane %v3204, 0
      %v3256 = vperm.slane %v3205, 0
      %v3257 = vmul.f32 %v3223, %v3255
      %v3258 = vmul.f32 %v3221, %v3256
      %v3259 = vmul.f32 %v3224, %v3255
      %v3260 = vmul.f32 %v3222, %v3256
      %v3261 = vadd.f32 %v3257, 0.0
      %v3262 = vadd.f32 %v3258, 0.0
      %v3263 = vadd.f32 %v3259, 0.0
      %v3264 = vadd.f32 %v3260, 0.0
      %3265 = vrot.lane.b32.xlu0 %v280, 33
      %v3266 = vpop.permute.xlu0 %3265
      %3267 = vrot.lane.b32.xlu0 %v282, 33
      %v3268 = vpop.permute.xlu0 %3267
      %3269 = vrot.lane.b32.xlu0 %v281, 33
      %v3270 = vpop.permute.xlu0 %3269
      %3271 = vrot.lane.b32.xlu0 %v283, 33
      %v3272 = vpop.permute.xlu0 %3271
      %vm3273 = vcmp.lt.s32.totalorder %v786, 33
      %v3274 = vsel %vm3273, %v3266, %v3270
      %v3275 = vsel %vm3273, %v3268, %v3272
      %v3276 = vsel %vm3273, %v3270, %v3266
      %v3277 = vsel %vm3273, %v3272, %v3268
      %v3278 = vperm.slane %v2892, 1
      %v3279 = vperm.slane %v2893, 1
      %v3280 = vmul.f32 %v3276, %v3278
      %v3281 = vmul.f32 %v3274, %v3279
      %v3282 = vmul.f32 %v3277, %v3278
      %v3283 = vmul.f32 %v3275, %v3279
      %v3284 = vadd.f32 %v3231, %v3280
      %v3285 = vadd.f32 %v3232, %v3281
      %v3286 = vadd.f32 %v3233, %v3282
      %v3287 = vadd.f32 %v3234, %v3283
      %v3288 = vperm.slane %v2996, 1
      %v3289 = vperm.slane %v2997, 1
      %v3290 = vmul.f32 %v3276, %v3288
      %v3291 = vmul.f32 %v3274, %v3289
      %v3292 = vmul.f32 %v3277, %v3288
      %v3293 = vmul.f32 %v3275, %v3289
      %v3294 = vadd.f32 %v3241, %v3290
      %v3295 = vadd.f32 %v3242, %v3291
      %v3296 = vadd.f32 %v3243, %v3292
      %v3297 = vadd.f32 %v3244, %v3293
      %v3298 = vperm.slane %v3100, 1
      %v3299 = vperm.slane %v3101, 1
      %v3300 = vmul.f32 %v3276, %v3298
      %v3301 = vmul.f32 %v3274, %v3299
      %v3302 = vmul.f32 %v3277, %v3298
      %v3303 = vmul.f32 %v3275, %v3299
      %v3304 = vadd.f32 %v3251, %v3300
      %v3305 = vadd.f32 %v3252, %v3301
      %v3306 = vadd.f32 %v3253, %v3302
      %v3307 = vadd.f32 %v3254, %v3303
      %v3308 = vperm.slane %v3204, 1
      %v3309 = vperm.slane %v3205, 1
      %v3310 = vmul.f32 %v3276, %v3308
      %v3311 = vmul.f32 %v3274, %v3309
      %v3312 = vmul.f32 %v3277, %v3308
      %v3313 = vmul.f32 %v3275, %v3309
      %v3314 = vadd.f32 %v3261, %v3310
      %v3315 = vadd.f32 %v3262, %v3311
      %v3316 = vadd.f32 %v3263, %v3312
      %v3317 = vadd.f32 %v3264, %v3313
      %3318 = vrot.lane.b32.xlu0 %v280, 32
      %v3319 = vpop.permute.xlu0 %3318
      %3320 = vrot.lane.b32.xlu0 %v282, 32
      %v3321 = vpop.permute.xlu0 %3320
      %3322 = vrot.lane.b32.xlu0 %v281, 32
      %v3323 = vpop.permute.xlu0 %3322
      %3324 = vrot.lane.b32.xlu0 %v283, 32
      %v3325 = vpop.permute.xlu0 %3324
      %vm3326 = vcmp.lt.s32.totalorder %v786, 32
      %v3327 = vsel %vm3326, %v3319, %v3323
      %v3328 = vsel %vm3326, %v3321, %v3325
      %v3329 = vsel %vm3326, %v3323, %v3319
      %v3330 = vsel %vm3326, %v3325, %v3321
      %v3331 = vperm.slane %v2892, 2
      %v3332 = vperm.slane %v2893, 2
      %v3333 = vmul.f32 %v3329, %v3331
      %v3334 = vmul.f32 %v3327, %v3332
      %v3335 = vmul.f32 %v3330, %v3331
      %v3336 = vmul.f32 %v3328, %v3332
      %v3337 = vadd.f32 %v3284, %v3333
      %v3338 = vadd.f32 %v3285, %v3334
      %v3339 = vadd.f32 %v3286, %v3335
      %v3340 = vadd.f32 %v3287, %v3336
      %v3341 = vperm.slane %v2996, 2
      %v3342 = vperm.slane %v2997, 2
      %v3343 = vmul.f32 %v3329, %v3341
      %v3344 = vmul.f32 %v3327, %v3342
      %v3345 = vmul.f32 %v3330, %v3341
      %v3346 = vmul.f32 %v3328, %v3342
      %v3347 = vadd.f32 %v3294, %v3343
      %v3348 = vadd.f32 %v3295, %v3344
      %v3349 = vadd.f32 %v3296, %v3345
      %v3350 = vadd.f32 %v3297, %v3346
      %v3351 = vperm.slane %v3100, 2
      %v3352 = vperm.slane %v3101, 2
      %v3353 = vmul.f32 %v3329, %v3351
      %v3354 = vmul.f32 %v3327, %v3352
      %v3355 = vmul.f32 %v3330, %v3351
      %v3356 = vmul.f32 %v3328, %v3352
      %v3357 = vadd.f32 %v3304, %v3353
      %v3358 = vadd.f32 %v3305, %v3354
      %v3359 = vadd.f32 %v3306, %v3355
      %v3360 = vadd.f32 %v3307, %v3356
      %v3361 = vperm.slane %v3204, 2
      %v3362 = vperm.slane %v3205, 2
      %v3363 = vmul.f32 %v3329, %v3361
      %v3364 = vmul.f32 %v3327, %v3362
      %v3365 = vmul.f32 %v3330, %v3361
      %v3366 = vmul.f32 %v3328, %v3362
      %v3367 = vadd.f32 %v3314, %v3363
      %v3368 = vadd.f32 %v3315, %v3364
      %v3369 = vadd.f32 %v3316, %v3365
      %v3370 = vadd.f32 %v3317, %v3366
      %3371 = vrot.lane.b32.xlu0 %v280, 31
      %v3372 = vpop.permute.xlu0 %3371
      %3373 = vrot.lane.b32.xlu0 %v282, 31
      %v3374 = vpop.permute.xlu0 %3373
      %3375 = vrot.lane.b32.xlu0 %v281, 31
      %v3376 = vpop.permute.xlu0 %3375
      %3377 = vrot.lane.b32.xlu0 %v283, 31
      %v3378 = vpop.permute.xlu0 %3377
      %vm3379 = vcmp.lt.s32.totalorder %v786, 31
      %v3380 = vsel %vm3379, %v3372, %v3376
      %v3381 = vsel %vm3379, %v3374, %v3378
      %v3382 = vsel %vm3379, %v3376, %v3372
      %v3383 = vsel %vm3379, %v3378, %v3374
      %v3384 = vperm.slane %v2892, 3
      %v3385 = vperm.slane %v2893, 3
      %v3386 = vmul.f32 %v3382, %v3384
      %v3387 = vmul.f32 %v3380, %v3385
      %v3388 = vmul.f32 %v3383, %v3384
      %v3389 = vmul.f32 %v3381, %v3385
      %v3390 = vadd.f32 %v3337, %v3386
      %v3391 = vadd.f32 %v3338, %v3387
      %v3392 = vadd.f32 %v3339, %v3388
      %v3393 = vadd.f32 %v3340, %v3389
      %v3394 = vperm.slane %v2996, 3
      %v3395 = vperm.slane %v2997, 3
      %v3396 = vmul.f32 %v3382, %v3394
      %v3397 = vmul.f32 %v3380, %v3395
      %v3398 = vmul.f32 %v3383, %v3394
      %v3399 = vmul.f32 %v3381, %v3395
      %v3400 = vadd.f32 %v3347, %v3396
      %v3401 = vadd.f32 %v3348, %v3397
      %v3402 = vadd.f32 %v3349, %v3398
      %v3403 = vadd.f32 %v3350, %v3399
      %v3404 = vperm.slane %v3100, 3
      %v3405 = vperm.slane %v3101, 3
      %v3406 = vmul.f32 %v3382, %v3404
      %v3407 = vmul.f32 %v3380, %v3405
      %v3408 = vmul.f32 %v3383, %v3404
      %v3409 = vmul.f32 %v3381, %v3405
      %v3410 = vadd.f32 %v3357, %v3406
      %v3411 = vadd.f32 %v3358, %v3407
      %v3412 = vadd.f32 %v3359, %v3408
      %v3413 = vadd.f32 %v3360, %v3409
      %v3414 = vperm.slane %v3204, 3
      %v3415 = vperm.slane %v3205, 3
      %v3416 = vmul.f32 %v3382, %v3414
      %v3417 = vmul.f32 %v3380, %v3415
      %v3418 = vmul.f32 %v3383, %v3414
      %v3419 = vmul.f32 %v3381, %v3415
      %v3420 = vadd.f32 %v3367, %v3416
      %v3421 = vadd.f32 %v3368, %v3417
      %v3422 = vadd.f32 %v3369, %v3418
      %v3423 = vadd.f32 %v3370, %v3419
      %3424 = vrot.lane.b32.xlu0 %v280, 30
      %v3425 = vpop.permute.xlu0 %3424
      %3426 = vrot.lane.b32.xlu0 %v282, 30
      %v3427 = vpop.permute.xlu0 %3426
      %3428 = vrot.lane.b32.xlu0 %v281, 30
      %v3429 = vpop.permute.xlu0 %3428
      %3430 = vrot.lane.b32.xlu0 %v283, 30
      %v3431 = vpop.permute.xlu0 %3430
      %vm3432 = vcmp.lt.s32.totalorder %v786, 30
      %v3433 = vsel %vm3432, %v3425, %v3429
      %v3434 = vsel %vm3432, %v3427, %v3431
      %v3435 = vsel %vm3432, %v3429, %v3425
      %v3436 = vsel %vm3432, %v3431, %v3427
      %v3437 = vperm.slane %v2892, 4
      %v3438 = vperm.slane %v2893, 4
      %v3439 = vmul.f32 %v3435, %v3437
      %v3440 = vmul.f32 %v3433, %v3438
      %v3441 = vmul.f32 %v3436, %v3437
      %v3442 = vmul.f32 %v3434, %v3438
      %v3443 = vadd.f32 %v3390, %v3439
      %v3444 = vadd.f32 %v3391, %v3440
      %v3445 = vadd.f32 %v3392, %v3441
      %v3446 = vadd.f32 %v3393, %v3442
      %v3447 = vperm.slane %v2996, 4
      %v3448 = vperm.slane %v2997, 4
      %v3449 = vmul.f32 %v3435, %v3447
      %v3450 = vmul.f32 %v3433, %v3448
      %v3451 = vmul.f32 %v3436, %v3447
      %v3452 = vmul.f32 %v3434, %v3448
      %v3453 = vadd.f32 %v3400, %v3449
      %v3454 = vadd.f32 %v3401, %v3450
      %v3455 = vadd.f32 %v3402, %v3451
      %v3456 = vadd.f32 %v3403, %v3452
      %v3457 = vperm.slane %v3100, 4
      %v3458 = vperm.slane %v3101, 4
      %v3459 = vmul.f32 %v3435, %v3457
      %v3460 = vmul.f32 %v3433, %v3458
      %v3461 = vmul.f32 %v3436, %v3457
      %v3462 = vmul.f32 %v3434, %v3458
      %v3463 = vadd.f32 %v3410, %v3459
      %v3464 = vadd.f32 %v3411, %v3460
      %v3465 = vadd.f32 %v3412, %v3461
      %v3466 = vadd.f32 %v3413, %v3462
      %v3467 = vperm.slane %v3204, 4
      %v3468 = vperm.slane %v3205, 4
      %v3469 = vmul.f32 %v3435, %v3467
      %v3470 = vmul.f32 %v3433, %v3468
      %v3471 = vmul.f32 %v3436, %v3467
      %v3472 = vmul.f32 %v3434, %v3468
      %v3473 = vadd.f32 %v3420, %v3469
      %v3474 = vadd.f32 %v3421, %v3470
      %v3475 = vadd.f32 %v3422, %v3471
      %v3476 = vadd.f32 %v3423, %v3472
      %3477 = vrot.lane.b32.xlu0 %v280, 18
      %v3478 = vpop.permute.xlu0 %3477
      %3479 = vrot.lane.b32.xlu0 %v282, 18
      %v3480 = vpop.permute.xlu0 %3479
      %3481 = vrot.lane.b32.xlu0 %v281, 18
      %v3482 = vpop.permute.xlu0 %3481
      %3483 = vrot.lane.b32.xlu0 %v283, 18
      %v3484 = vpop.permute.xlu0 %3483
      %vm3485 = vcmp.lt.s32.totalorder %v786, 18
      %v3486 = vsel %vm3485, %v3478, %v3482
      %v3487 = vsel %vm3485, %v3480, %v3484
      %v3488 = vsel %vm3485, %v3482, %v3478
      %v3489 = vsel %vm3485, %v3484, %v3480
      %v3490 = vperm.slane %v2892, 5
      %v3491 = vperm.slane %v2893, 5
      %v3492 = vmul.f32 %v3488, %v3490
      %v3493 = vmul.f32 %v3486, %v3491
      %v3494 = vmul.f32 %v3489, %v3490
      %v3495 = vmul.f32 %v3487, %v3491
      %v3496 = vadd.f32 %v3443, %v3492
      %v3497 = vadd.f32 %v3444, %v3493
      %v3498 = vadd.f32 %v3445, %v3494
      %v3499 = vadd.f32 %v3446, %v3495
      %v3500 = vperm.slane %v2996, 5
      %v3501 = vperm.slane %v2997, 5
      %v3502 = vmul.f32 %v3488, %v3500
      %v3503 = vmul.f32 %v3486, %v3501
      %v3504 = vmul.f32 %v3489, %v3500
      %v3505 = vmul.f32 %v3487, %v3501
      %v3506 = vadd.f32 %v3453, %v3502
      %v3507 = vadd.f32 %v3454, %v3503
      %v3508 = vadd.f32 %v3455, %v3504
      %v3509 = vadd.f32 %v3456, %v3505
      %v3510 = vperm.slane %v3100, 5
      %v3511 = vperm.slane %v3101, 5
      %v3512 = vmul.f32 %v3488, %v3510
      %v3513 = vmul.f32 %v3486, %v3511
      %v3514 = vmul.f32 %v3489, %v3510
      %v3515 = vmul.f32 %v3487, %v3511
      %v3516 = vadd.f32 %v3463, %v3512
      %v3517 = vadd.f32 %v3464, %v3513
      %v3518 = vadd.f32 %v3465, %v3514
      %v3519 = vadd.f32 %v3466, %v3515
      %v3520 = vperm.slane %v3204, 5
      %v3521 = vperm.slane %v3205, 5
      %v3522 = vmul.f32 %v3488, %v3520
      %v3523 = vmul.f32 %v3486, %v3521
      %v3524 = vmul.f32 %v3489, %v3520
      %v3525 = vmul.f32 %v3487, %v3521
      %v3526 = vadd.f32 %v3473, %v3522
      %v3527 = vadd.f32 %v3474, %v3523
      %v3528 = vadd.f32 %v3475, %v3524
      %v3529 = vadd.f32 %v3476, %v3525
      %3530 = vrot.lane.b32.xlu0 %v280, 17
      %v3531 = vpop.permute.xlu0 %3530
      %3532 = vrot.lane.b32.xlu0 %v282, 17
      %v3533 = vpop.permute.xlu0 %3532
      %3534 = vrot.lane.b32.xlu0 %v281, 17
      %v3535 = vpop.permute.xlu0 %3534
      %3536 = vrot.lane.b32.xlu0 %v283, 17
      %v3537 = vpop.permute.xlu0 %3536
      %v3538 = vsel %vm787, %v3531, %v3535
      %v3539 = vsel %vm787, %v3533, %v3537
      %v3540 = vsel %vm787, %v3535, %v3531
      %v3541 = vsel %vm787, %v3537, %v3533
      %v3542 = vperm.slane %v2892, 6
      %v3543 = vperm.slane %v2893, 6
      %v3544 = vmul.f32 %v3540, %v3542
      %v3545 = vmul.f32 %v3538, %v3543
      %v3546 = vmul.f32 %v3541, %v3542
      %v3547 = vmul.f32 %v3539, %v3543
      %v3548 = vadd.f32 %v3496, %v3544
      %v3549 = vadd.f32 %v3497, %v3545
      %v3550 = vadd.f32 %v3498, %v3546
      %v3551 = vadd.f32 %v3499, %v3547
      %v3552 = vperm.slane %v2996, 6
      %v3553 = vperm.slane %v2997, 6
      %v3554 = vmul.f32 %v3540, %v3552
      %v3555 = vmul.f32 %v3538, %v3553
      %v3556 = vmul.f32 %v3541, %v3552
      %v3557 = vmul.f32 %v3539, %v3553
      %v3558 = vadd.f32 %v3506, %v3554
      %v3559 = vadd.f32 %v3507, %v3555
      %v3560 = vadd.f32 %v3508, %v3556
      %v3561 = vadd.f32 %v3509, %v3557
      %v3562 = vperm.slane %v3100, 6
      %v3563 = vperm.slane %v3101, 6
      %v3564 = vmul.f32 %v3540, %v3562
      %v3565 = vmul.f32 %v3538, %v3563
      %v3566 = vmul.f32 %v3541, %v3562
      %v3567 = vmul.f32 %v3539, %v3563
      %v3568 = vadd.f32 %v3516, %v3564
      %v3569 = vadd.f32 %v3517, %v3565
      %v3570 = vadd.f32 %v3518, %v3566
      %v3571 = vadd.f32 %v3519, %v3567
      %v3572 = vperm.slane %v3204, 6
      %v3573 = vperm.slane %v3205, 6
      %v3574 = vmul.f32 %v3540, %v3572
      %v3575 = vmul.f32 %v3538, %v3573
      %v3576 = vmul.f32 %v3541, %v3572
      %v3577 = vmul.f32 %v3539, %v3573
      %v3578 = vadd.f32 %v3526, %v3574
      %v3579 = vadd.f32 %v3527, %v3575
      %v3580 = vadd.f32 %v3528, %v3576
      %v3581 = vadd.f32 %v3529, %v3577
      %3582 = vrot.lane.b32.xlu0 %v280, 16
      %v3583 = vpop.permute.xlu0 %3582
      %3584 = vrot.lane.b32.xlu0 %v282, 16
      %v3585 = vpop.permute.xlu0 %3584
      %3586 = vrot.lane.b32.xlu0 %v281, 16
      %v3587 = vpop.permute.xlu0 %3586
      %3588 = vrot.lane.b32.xlu0 %v283, 16
      %v3589 = vpop.permute.xlu0 %3588
      %v3590 = vsel %vm874, %v3583, %v3587
      %v3591 = vsel %vm874, %v3585, %v3589
      %v3592 = vsel %vm874, %v3587, %v3583
      %v3593 = vsel %vm874, %v3589, %v3585
      %v3594 = vperm.slane %v2892, 7
      %v3595 = vperm.slane %v2893, 7
      %v3596 = vmul.f32 %v3592, %v3594
      %v3597 = vmul.f32 %v3590, %v3595
      %v3598 = vmul.f32 %v3593, %v3594
      %v3599 = vmul.f32 %v3591, %v3595
      %v3600 = vadd.f32 %v3548, %v3596
      %v3601 = vadd.f32 %v3549, %v3597
      %v3602 = vadd.f32 %v3550, %v3598
      %v3603 = vadd.f32 %v3551, %v3599
      %v3604 = vperm.slane %v2996, 7
      %v3605 = vperm.slane %v2997, 7
      %v3606 = vmul.f32 %v3592, %v3604
      %v3607 = vmul.f32 %v3590, %v3605
      %v3608 = vmul.f32 %v3593, %v3604
      %v3609 = vmul.f32 %v3591, %v3605
      %v3610 = vadd.f32 %v3558, %v3606
      %v3611 = vadd.f32 %v3559, %v3607
      %v3612 = vadd.f32 %v3560, %v3608
      %v3613 = vadd.f32 %v3561, %v3609
      %v3614 = vperm.slane %v3100, 7
      %v3615 = vperm.slane %v3101, 7
      %v3616 = vmul.f32 %v3592, %v3614
      %v3617 = vmul.f32 %v3590, %v3615
      %v3618 = vmul.f32 %v3593, %v3614
      %v3619 = vmul.f32 %v3591, %v3615
      %v3620 = vadd.f32 %v3568, %v3616
      %v3621 = vadd.f32 %v3569, %v3617
      %v3622 = vadd.f32 %v3570, %v3618
      %v3623 = vadd.f32 %v3571, %v3619
      %v3624 = vperm.slane %v3204, 7
      %v3625 = vperm.slane %v3205, 7
      %v3626 = vmul.f32 %v3592, %v3624
      %v3627 = vmul.f32 %v3590, %v3625
      %v3628 = vmul.f32 %v3593, %v3624
      %v3629 = vmul.f32 %v3591, %v3625
      %v3630 = vadd.f32 %v3578, %v3626
      %v3631 = vadd.f32 %v3579, %v3627
      %v3632 = vadd.f32 %v3580, %v3628
      %v3633 = vadd.f32 %v3581, %v3629
      %3634 = vrot.lane.b32.xlu0 %v280, 15
      %v3635 = vpop.permute.xlu0 %3634
      %3636 = vrot.lane.b32.xlu0 %v282, 15
      %v3637 = vpop.permute.xlu0 %3636
      %3638 = vrot.lane.b32.xlu0 %v281, 15
      %v3639 = vpop.permute.xlu0 %3638
      %3640 = vrot.lane.b32.xlu0 %v283, 15
      %v3641 = vpop.permute.xlu0 %3640
      %v3642 = vsel %vm962, %v3635, %v3639
      %v3643 = vsel %vm962, %v3637, %v3641
      %v3644 = vsel %vm962, %v3639, %v3635
      %v3645 = vsel %vm962, %v3641, %v3637
      %v3646 = vperm.slane %v2894, 0
      %v3647 = vperm.slane %v2895, 0
      %v3648 = vmul.f32 %v3644, %v3646
      %v3649 = vmul.f32 %v3642, %v3647
      %v3650 = vmul.f32 %v3645, %v3646
      %v3651 = vmul.f32 %v3643, %v3647
      %v3652 = vadd.f32 %v3600, %v3648
      %v3653 = vadd.f32 %v3601, %v3649
      %v3654 = vadd.f32 %v3602, %v3650
      %v3655 = vadd.f32 %v3603, %v3651
      %v3656 = vperm.slane %v2998, 0
      %v3657 = vperm.slane %v2999, 0
      %v3658 = vmul.f32 %v3644, %v3656
      %v3659 = vmul.f32 %v3642, %v3657
      %v3660 = vmul.f32 %v3645, %v3656
      %v3661 = vmul.f32 %v3643, %v3657
      %v3662 = vadd.f32 %v3610, %v3658
      %v3663 = vadd.f32 %v3611, %v3659
      %v3664 = vadd.f32 %v3612, %v3660
      %v3665 = vadd.f32 %v3613, %v3661
      %v3666 = vperm.slane %v3102, 0
      %v3667 = vperm.slane %v3103, 0
      %v3668 = vmul.f32 %v3644, %v3666
      %v3669 = vmul.f32 %v3642, %v3667
      %v3670 = vmul.f32 %v3645, %v3666
      %v3671 = vmul.f32 %v3643, %v3667
      %v3672 = vadd.f32 %v3620, %v3668
      %v3673 = vadd.f32 %v3621, %v3669
      %v3674 = vadd.f32 %v3622, %v3670
      %v3675 = vadd.f32 %v3623, %v3671
      %v3676 = vperm.slane %v3206, 0
      %v3677 = vperm.slane %v3207, 0
      %v3678 = vmul.f32 %v3644, %v3676
      %v3679 = vmul.f32 %v3642, %v3677
      %v3680 = vmul.f32 %v3645, %v3676
      %v3681 = vmul.f32 %v3643, %v3677
      %v3682 = vadd.f32 %v3630, %v3678
      %v3683 = vadd.f32 %v3631, %v3679
      %v3684 = vadd.f32 %v3632, %v3680
      %v3685 = vadd.f32 %v3633, %v3681
      %3686 = vrot.lane.b32.xlu0 %v280, 14
      %v3687 = vpop.permute.xlu0 %3686
      %3688 = vrot.lane.b32.xlu0 %v282, 14
      %v3689 = vpop.permute.xlu0 %3688
      %3690 = vrot.lane.b32.xlu0 %v281, 14
      %v3691 = vpop.permute.xlu0 %3690
      %3692 = vrot.lane.b32.xlu0 %v283, 14
      %v3693 = vpop.permute.xlu0 %3692
      %vm3694 = vcmp.lt.s32.totalorder %v786, 14
      %v3695 = vsel %vm3694, %v3687, %v3691
      %v3696 = vsel %vm3694, %v3689, %v3693
      %v3697 = vsel %vm3694, %v3691, %v3687
      %v3698 = vsel %vm3694, %v3693, %v3689
      %v3699 = vperm.slane %v2894, 1
      %v3700 = vperm.slane %v2895, 1
      %v3701 = vmul.f32 %v3697, %v3699
      %v3702 = vmul.f32 %v3695, %v3700
      %v3703 = vmul.f32 %v3698, %v3699
      %v3704 = vmul.f32 %v3696, %v3700
      %v3705 = vadd.f32 %v3652, %v3701
      %v3706 = vadd.f32 %v3653, %v3702
      %v3707 = vadd.f32 %v3654, %v3703
      %v3708 = vadd.f32 %v3655, %v3704
      %v3709 = vperm.slane %v2998, 1
      %v3710 = vperm.slane %v2999, 1
      %v3711 = vmul.f32 %v3697, %v3709
      %v3712 = vmul.f32 %v3695, %v3710
      %v3713 = vmul.f32 %v3698, %v3709
      %v3714 = vmul.f32 %v3696, %v3710
      %v3715 = vadd.f32 %v3662, %v3711
      %v3716 = vadd.f32 %v3663, %v3712
      %v3717 = vadd.f32 %v3664, %v3713
      %v3718 = vadd.f32 %v3665, %v3714
      %v3719 = vperm.slane %v3102, 1
      %v3720 = vperm.slane %v3103, 1
      %v3721 = vmul.f32 %v3697, %v3719
      %v3722 = vmul.f32 %v3695, %v3720
      %v3723 = vmul.f32 %v3698, %v3719
      %v3724 = vmul.f32 %v3696, %v3720
      %v3725 = vadd.f32 %v3672, %v3721
      %v3726 = vadd.f32 %v3673, %v3722
      %v3727 = vadd.f32 %v3674, %v3723
      %v3728 = vadd.f32 %v3675, %v3724
      %v3729 = vperm.slane %v3206, 1
      %v3730 = vperm.slane %v3207, 1
      %v3731 = vmul.f32 %v3697, %v3729
      %v3732 = vmul.f32 %v3695, %v3730
      %v3733 = vmul.f32 %v3698, %v3729
      %v3734 = vmul.f32 %v3696, %v3730
      %v3735 = vadd.f32 %v3682, %v3731
      %v3736 = vadd.f32 %v3683, %v3732
      %v3737 = vadd.f32 %v3684, %v3733
      %v3738 = vadd.f32 %v3685, %v3734
      %3739 = vrot.lane.b32.xlu0 %v280, 2
      %v3740 = vpop.permute.xlu0 %3739
      %3741 = vrot.lane.b32.xlu0 %v282, 2
      %v3742 = vpop.permute.xlu0 %3741
      %3743 = vrot.lane.b32.xlu0 %v281, 2
      %v3744 = vpop.permute.xlu0 %3743
      %3745 = vrot.lane.b32.xlu0 %v283, 2
      %v3746 = vpop.permute.xlu0 %3745
      %vm3747 = vcmp.lt.s32.totalorder %v786, 2
      %v3748 = vsel %vm3747, %v3740, %v3744
      %v3749 = vsel %vm3747, %v3742, %v3746
      %v3750 = vsel %vm3747, %v3744, %v3740
      %v3751 = vsel %vm3747, %v3746, %v3742
      %v3752 = vperm.slane %v2894, 2
      %v3753 = vperm.slane %v2895, 2
      %v3754 = vmul.f32 %v3750, %v3752
      %v3755 = vmul.f32 %v3748, %v3753
      %v3756 = vmul.f32 %v3751, %v3752
      %v3757 = vmul.f32 %v3749, %v3753
      %v3758 = vadd.f32 %v3705, %v3754
      %v3759 = vadd.f32 %v3706, %v3755
      %v3760 = vadd.f32 %v3707, %v3756
      %v3761 = vadd.f32 %v3708, %v3757
      %v3762 = vperm.slane %v2998, 2
      %v3763 = vperm.slane %v2999, 2
      %v3764 = vmul.f32 %v3750, %v3762
      %v3765 = vmul.f32 %v3748, %v3763
      %v3766 = vmul.f32 %v3751, %v3762
      %v3767 = vmul.f32 %v3749, %v3763
      %v3768 = vadd.f32 %v3715, %v3764
      %v3769 = vadd.f32 %v3716, %v3765
      %v3770 = vadd.f32 %v3717, %v3766
      %v3771 = vadd.f32 %v3718, %v3767
      %v3772 = vperm.slane %v3102, 2
      %v3773 = vperm.slane %v3103, 2
      %v3774 = vmul.f32 %v3750, %v3772
      %v3775 = vmul.f32 %v3748, %v3773
      %v3776 = vmul.f32 %v3751, %v3772
      %v3777 = vmul.f32 %v3749, %v3773
      %v3778 = vadd.f32 %v3725, %v3774
      %v3779 = vadd.f32 %v3726, %v3775
      %v3780 = vadd.f32 %v3727, %v3776
      %v3781 = vadd.f32 %v3728, %v3777
      %v3782 = vperm.slane %v3206, 2
      %v3783 = vperm.slane %v3207, 2
      %v3784 = vmul.f32 %v3750, %v3782
      %v3785 = vmul.f32 %v3748, %v3783
      %v3786 = vmul.f32 %v3751, %v3782
      %v3787 = vmul.f32 %v3749, %v3783
      %v3788 = vadd.f32 %v3735, %v3784
      %v3789 = vadd.f32 %v3736, %v3785
      %v3790 = vadd.f32 %v3737, %v3786
      %v3791 = vadd.f32 %v3738, %v3787
      %3792 = vrot.lane.b32.xlu0 %v280, 1
      %v3793 = vpop.permute.xlu0 %3792
      %3794 = vrot.lane.b32.xlu0 %v282, 1
      %v3795 = vpop.permute.xlu0 %3794
      %3796 = vrot.lane.b32.xlu0 %v281, 1
      %v3797 = vpop.permute.xlu0 %3796
      %3798 = vrot.lane.b32.xlu0 %v283, 1
      %v3799 = vpop.permute.xlu0 %3798
      %v3800 = vsel %vm1050, %v3793, %v3797
      %v3801 = vsel %vm1050, %v3795, %v3799
      %v3802 = vsel %vm1050, %v3797, %v3793
      %v3803 = vsel %vm1050, %v3799, %v3795
      %v3804 = vperm.slane %v2894, 3
      %v3805 = vperm.slane %v2895, 3
      %v3806 = vmul.f32 %v3802, %v3804
      %v3807 = vmul.f32 %v3800, %v3805
      %v3808 = vmul.f32 %v3803, %v3804
      %v3809 = vmul.f32 %v3801, %v3805
      %v3810 = vadd.f32 %v3758, %v3806
      %v3811 = vadd.f32 %v3759, %v3807
      %v3812 = vadd.f32 %v3760, %v3808
      %v3813 = vadd.f32 %v3761, %v3809
      %v3814 = vperm.slane %v2998, 3
      %v3815 = vperm.slane %v2999, 3
      %v3816 = vmul.f32 %v3802, %v3814
      %v3817 = vmul.f32 %v3800, %v3815
      %v3818 = vmul.f32 %v3803, %v3814
      %v3819 = vmul.f32 %v3801, %v3815
      %v3820 = vadd.f32 %v3768, %v3816
      %v3821 = vadd.f32 %v3769, %v3817
      %v3822 = vadd.f32 %v3770, %v3818
      %v3823 = vadd.f32 %v3771, %v3819
      %v3824 = vperm.slane %v3102, 3
      %v3825 = vperm.slane %v3103, 3
      %v3826 = vmul.f32 %v3802, %v3824
      %v3827 = vmul.f32 %v3800, %v3825
      %v3828 = vmul.f32 %v3803, %v3824
      %v3829 = vmul.f32 %v3801, %v3825
      %v3830 = vadd.f32 %v3778, %v3826
      %v3831 = vadd.f32 %v3779, %v3827
      %v3832 = vadd.f32 %v3780, %v3828
      %v3833 = vadd.f32 %v3781, %v3829
      %v3834 = vperm.slane %v3206, 3
      %v3835 = vperm.slane %v3207, 3
      %v3836 = vmul.f32 %v3802, %v3834
      %v3837 = vmul.f32 %v3800, %v3835
      %v3838 = vmul.f32 %v3803, %v3834
      %v3839 = vmul.f32 %v3801, %v3835
      %v3840 = vadd.f32 %v3788, %v3836
      %v3841 = vadd.f32 %v3789, %v3837
      %v3842 = vadd.f32 %v3790, %v3838
      %v3843 = vadd.f32 %v3791, %v3839
      %v3844 = vperm.slane %v2894, 4
      %v3845 = vperm.slane %v2895, 4
      %v3846 = vmul.f32 %v280, %v3844
      %v3847 = vmul.f32 %v281, %v3845
      %v3848 = vmul.f32 %v282, %v3844
      %v3849 = vmul.f32 %v283, %v3845
      %v3850 = vadd.f32 %v3810, %v3846
      %v3851 = vadd.f32 %v3811, %v3847
      %v3852 = vadd.f32 %v3812, %v3848
      %v3853 = vadd.f32 %v3813, %v3849
      %v3854 = vperm.slane %v2998, 4
      %v3855 = vperm.slane %v2999, 4
      %v3856 = vmul.f32 %v280, %v3854
      %v3857 = vmul.f32 %v281, %v3855
      %v3858 = vmul.f32 %v282, %v3854
      %v3859 = vmul.f32 %v283, %v3855
      %v3860 = vadd.f32 %v3820, %v3856
      %v3861 = vadd.f32 %v3821, %v3857
      %v3862 = vadd.f32 %v3822, %v3858
      %v3863 = vadd.f32 %v3823, %v3859
      %v3864 = vperm.slane %v3102, 4
      %v3865 = vperm.slane %v3103, 4
      %v3866 = vmul.f32 %v280, %v3864
      %v3867 = vmul.f32 %v281, %v3865
      %v3868 = vmul.f32 %v282, %v3864
      %v3869 = vmul.f32 %v283, %v3865
      %v3870 = vadd.f32 %v3830, %v3866
      %v3871 = vadd.f32 %v3831, %v3867
      %v3872 = vadd.f32 %v3832, %v3868
      %v3873 = vadd.f32 %v3833, %v3869
      %v3874 = vperm.slane %v3206, 4
      %v3875 = vperm.slane %v3207, 4
      %v3876 = vmul.f32 %v280, %v3874
      %v3877 = vmul.f32 %v281, %v3875
      %v3878 = vmul.f32 %v282, %v3874
      %v3879 = vmul.f32 %v283, %v3875
      %v3880 = vadd.f32 %v3840, %v3876
      %v3881 = vadd.f32 %v3841, %v3877
      %v3882 = vadd.f32 %v3842, %v3878
      %v3883 = vadd.f32 %v3843, %v3879
      %3884 = vrot.lane.b32.xlu0 %v280, 127
      %v3885 = vpop.permute.xlu0 %3884
      %3886 = vrot.lane.b32.xlu0 %v282, 127
      %v3887 = vpop.permute.xlu0 %3886
      %3888 = vrot.lane.b32.xlu0 %v281, 127
      %v3889 = vpop.permute.xlu0 %3888
      %3890 = vrot.lane.b32.xlu0 %v283, 127
      %v3891 = vpop.permute.xlu0 %3890
      %v3892 = vsel %vm1177, %v3885, %v3889
      %v3893 = vsel %vm1177, %v3887, %v3891
      %v3894 = vsel %vm1177, %v3889, %v3885
      %v3895 = vsel %vm1177, %v3891, %v3887
      %v3896 = vperm.slane %v2894, 5
      %v3897 = vperm.slane %v2895, 5
      %v3898 = vmul.f32 %v3892, %v3896
      %v3899 = vmul.f32 %v3894, %v3897
      %v3900 = vmul.f32 %v3893, %v3896
      %v3901 = vmul.f32 %v3895, %v3897
      %v3902 = vadd.f32 %v3850, %v3898
      %v3903 = vadd.f32 %v3851, %v3899
      %v3904 = vadd.f32 %v3852, %v3900
      %v3905 = vadd.f32 %v3853, %v3901
      %v3906 = vperm.slane %v2998, 5
      %v3907 = vperm.slane %v2999, 5
      %v3908 = vmul.f32 %v3892, %v3906
      %v3909 = vmul.f32 %v3894, %v3907
      %v3910 = vmul.f32 %v3893, %v3906
      %v3911 = vmul.f32 %v3895, %v3907
      %v3912 = vadd.f32 %v3860, %v3908
      %v3913 = vadd.f32 %v3861, %v3909
      %v3914 = vadd.f32 %v3862, %v3910
      %v3915 = vadd.f32 %v3863, %v3911
      %v3916 = vperm.slane %v3102, 5
      %v3917 = vperm.slane %v3103, 5
      %v3918 = vmul.f32 %v3892, %v3916
      %v3919 = vmul.f32 %v3894, %v3917
      %v3920 = vmul.f32 %v3893, %v3916
      %v3921 = vmul.f32 %v3895, %v3917
      %v3922 = vadd.f32 %v3870, %v3918
      %v3923 = vadd.f32 %v3871, %v3919
      %v3924 = vadd.f32 %v3872, %v3920
      %v3925 = vadd.f32 %v3873, %v3921
      %v3926 = vperm.slane %v3206, 5
      %v3927 = vperm.slane %v3207, 5
      %v3928 = vmul.f32 %v3892, %v3926
      %v3929 = vmul.f32 %v3894, %v3927
      %v3930 = vmul.f32 %v3893, %v3926
      %v3931 = vmul.f32 %v3895, %v3927
      %v3932 = vadd.f32 %v3880, %v3928
      %v3933 = vadd.f32 %v3881, %v3929
      %v3934 = vadd.f32 %v3882, %v3930
      %v3935 = vadd.f32 %v3883, %v3931
      %3936 = vrot.lane.b32.xlu0 %v280, 126
      %v3937 = vpop.permute.xlu0 %3936
      %3938 = vrot.lane.b32.xlu0 %v282, 126
      %v3939 = vpop.permute.xlu0 %3938
      %3940 = vrot.lane.b32.xlu0 %v281, 126
      %v3941 = vpop.permute.xlu0 %3940
      %3942 = vrot.lane.b32.xlu0 %v283, 126
      %v3943 = vpop.permute.xlu0 %3942
      %vm3944 = vcmp.lt.s32.totalorder %v786, 126
      %v3945 = vsel %vm3944, %v3937, %v3941
      %v3946 = vsel %vm3944, %v3939, %v3943
      %v3947 = vsel %vm3944, %v3941, %v3937
      %v3948 = vsel %vm3944, %v3943, %v3939
      %v3949 = vperm.slane %v2894, 6
      %v3950 = vperm.slane %v2895, 6
      %v3951 = vmul.f32 %v3945, %v3949
      %v3952 = vmul.f32 %v3947, %v3950
      %v3953 = vmul.f32 %v3946, %v3949
      %v3954 = vmul.f32 %v3948, %v3950
      %v3955 = vadd.f32 %v3902, %v3951
      %v3956 = vadd.f32 %v3903, %v3952
      %v3957 = vadd.f32 %v3904, %v3953
      %v3958 = vadd.f32 %v3905, %v3954
      %v3959 = vperm.slane %v2998, 6
      %v3960 = vperm.slane %v2999, 6
      %v3961 = vmul.f32 %v3945, %v3959
      %v3962 = vmul.f32 %v3947, %v3960
      %v3963 = vmul.f32 %v3946, %v3959
      %v3964 = vmul.f32 %v3948, %v3960
      %v3965 = vadd.f32 %v3912, %v3961
      %v3966 = vadd.f32 %v3913, %v3962
      %v3967 = vadd.f32 %v3914, %v3963
      %v3968 = vadd.f32 %v3915, %v3964
      %v3969 = vperm.slane %v3102, 6
      %v3970 = vperm.slane %v3103, 6
      %v3971 = vmul.f32 %v3945, %v3969
      %v3972 = vmul.f32 %v3947, %v3970
      %v3973 = vmul.f32 %v3946, %v3969
      %v3974 = vmul.f32 %v3948, %v3970
      %v3975 = vadd.f32 %v3922, %v3971
      %v3976 = vadd.f32 %v3923, %v3972
      %v3977 = vadd.f32 %v3924, %v3973
      %v3978 = vadd.f32 %v3925, %v3974
      %v3979 = vperm.slane %v3206, 6
      %v3980 = vperm.slane %v3207, 6
      %v3981 = vmul.f32 %v3945, %v3979
      %v3982 = vmul.f32 %v3947, %v3980
      %v3983 = vmul.f32 %v3946, %v3979
      %v3984 = vmul.f32 %v3948, %v3980
      %v3985 = vadd.f32 %v3932, %v3981
      %v3986 = vadd.f32 %v3933, %v3982
      %v3987 = vadd.f32 %v3934, %v3983
      %v3988 = vadd.f32 %v3935, %v3984
      %3989 = vrot.lane.b32.xlu0 %v280, 114
      %v3990 = vpop.permute.xlu0 %3989
      %3991 = vrot.lane.b32.xlu0 %v282, 114
      %v3992 = vpop.permute.xlu0 %3991
      %3993 = vrot.lane.b32.xlu0 %v281, 114
      %v3994 = vpop.permute.xlu0 %3993
      %3995 = vrot.lane.b32.xlu0 %v283, 114
      %v3996 = vpop.permute.xlu0 %3995
      %vm3997 = vcmp.lt.s32.totalorder %v786, 114
      %v3998 = vsel %vm3997, %v3990, %v3994
      %v3999 = vsel %vm3997, %v3992, %v3996
      %v4000 = vsel %vm3997, %v3994, %v3990
      %v4001 = vsel %vm3997, %v3996, %v3992
      %v4002 = vperm.slane %v2894, 7
      %v4003 = vperm.slane %v2895, 7
      %v4004 = vmul.f32 %v3998, %v4002
      %v4005 = vmul.f32 %v4000, %v4003
      %v4006 = vmul.f32 %v3999, %v4002
      %v4007 = vmul.f32 %v4001, %v4003
      %v4008 = vadd.f32 %v3955, %v4004
      %v4009 = vadd.f32 %v3956, %v4005
      %v4010 = vadd.f32 %v3957, %v4006
      %v4011 = vadd.f32 %v3958, %v4007
      %v4012 = vperm.slane %v2998, 7
      %v4013 = vperm.slane %v2999, 7
      %v4014 = vmul.f32 %v3998, %v4012
      %v4015 = vmul.f32 %v4000, %v4013
      %v4016 = vmul.f32 %v3999, %v4012
      %v4017 = vmul.f32 %v4001, %v4013
      %v4018 = vadd.f32 %v3965, %v4014
      %v4019 = vadd.f32 %v3966, %v4015
      %v4020 = vadd.f32 %v3967, %v4016
      %v4021 = vadd.f32 %v3968, %v4017
      %v4022 = vperm.slane %v3102, 7
      %v4023 = vperm.slane %v3103, 7
      %v4024 = vmul.f32 %v3998, %v4022
      %v4025 = vmul.f32 %v4000, %v4023
      %v4026 = vmul.f32 %v3999, %v4022
      %v4027 = vmul.f32 %v4001, %v4023
      %v4028 = vadd.f32 %v3975, %v4024
      %v4029 = vadd.f32 %v3976, %v4025
      %v4030 = vadd.f32 %v3977, %v4026
      %v4031 = vadd.f32 %v3978, %v4027
      %v4032 = vperm.slane %v3206, 7
      %v4033 = vperm.slane %v3207, 7
      %v4034 = vmul.f32 %v3998, %v4032
      %v4035 = vmul.f32 %v4000, %v4033
      %v4036 = vmul.f32 %v3999, %v4032
      %v4037 = vmul.f32 %v4001, %v4033
      %v4038 = vadd.f32 %v3985, %v4034
      %v4039 = vadd.f32 %v3986, %v4035
      %v4040 = vadd.f32 %v3987, %v4036
      %v4041 = vadd.f32 %v3988, %v4037
      %4042 = vrot.lane.b32.xlu0 %v280, 113
      %v4043 = vpop.permute.xlu0 %4042
      %4044 = vrot.lane.b32.xlu0 %v282, 113
      %v4045 = vpop.permute.xlu0 %4044
      %4046 = vrot.lane.b32.xlu0 %v281, 113
      %v4047 = vpop.permute.xlu0 %4046
      %4048 = vrot.lane.b32.xlu0 %v283, 113
      %v4049 = vpop.permute.xlu0 %4048
      %v4050 = vsel %vm1265, %v4043, %v4047
      %v4051 = vsel %vm1265, %v4045, %v4049
      %v4052 = vsel %vm1265, %v4047, %v4043
      %v4053 = vsel %vm1265, %v4049, %v4045
      %v4054 = vperm.slane %v2896, 0
      %v4055 = vperm.slane %v2897, 0
      %v4056 = vmul.f32 %v4050, %v4054
      %v4057 = vmul.f32 %v4052, %v4055
      %v4058 = vmul.f32 %v4051, %v4054
      %v4059 = vmul.f32 %v4053, %v4055
      %v4060 = vadd.f32 %v4008, %v4056
      %v4061 = vadd.f32 %v4009, %v4057
      %v4062 = vadd.f32 %v4010, %v4058
      %v4063 = vadd.f32 %v4011, %v4059
      %v4064 = vperm.slane %v3000, 0
      %v4065 = vperm.slane %v3001, 0
      %v4066 = vmul.f32 %v4050, %v4064
      %v4067 = vmul.f32 %v4052, %v4065
      %v4068 = vmul.f32 %v4051, %v4064
      %v4069 = vmul.f32 %v4053, %v4065
      %v4070 = vadd.f32 %v4018, %v4066
      %v4071 = vadd.f32 %v4019, %v4067
      %v4072 = vadd.f32 %v4020, %v4068
      %v4073 = vadd.f32 %v4021, %v4069
      %v4074 = vperm.slane %v3104, 0
      %v4075 = vperm.slane %v3105, 0
      %v4076 = vmul.f32 %v4050, %v4074
      %v4077 = vmul.f32 %v4052, %v4075
      %v4078 = vmul.f32 %v4051, %v4074
      %v4079 = vmul.f32 %v4053, %v4075
      %v4080 = vadd.f32 %v4028, %v4076
      %v4081 = vadd.f32 %v4029, %v4077
      %v4082 = vadd.f32 %v4030, %v4078
      %v4083 = vadd.f32 %v4031, %v4079
      %v4084 = vperm.slane %v3208, 0
      %v4085 = vperm.slane %v3209, 0
      %v4086 = vmul.f32 %v4050, %v4084
      %v4087 = vmul.f32 %v4052, %v4085
      %v4088 = vmul.f32 %v4051, %v4084
      %v4089 = vmul.f32 %v4053, %v4085
      %v4090 = vadd.f32 %v4038, %v4086
      %v4091 = vadd.f32 %v4039, %v4087
      %v4092 = vadd.f32 %v4040, %v4088
      %v4093 = vadd.f32 %v4041, %v4089
      %4094 = vrot.lane.b32.xlu0 %v280, 112
      %v4095 = vpop.permute.xlu0 %4094
      %4096 = vrot.lane.b32.xlu0 %v282, 112
      %v4097 = vpop.permute.xlu0 %4096
      %4098 = vrot.lane.b32.xlu0 %v281, 112
      %v4099 = vpop.permute.xlu0 %4098
      %4100 = vrot.lane.b32.xlu0 %v283, 112
      %v4101 = vpop.permute.xlu0 %4100
      %v4102 = vsel %vm1353, %v4095, %v4099
      %v4103 = vsel %vm1353, %v4097, %v4101
      %v4104 = vsel %vm1353, %v4099, %v4095
      %v4105 = vsel %vm1353, %v4101, %v4097
      %v4106 = vperm.slane %v2896, 1
      %v4107 = vperm.slane %v2897, 1
      %v4108 = vmul.f32 %v4102, %v4106
      %v4109 = vmul.f32 %v4104, %v4107
      %v4110 = vmul.f32 %v4103, %v4106
      %v4111 = vmul.f32 %v4105, %v4107
      %v4112 = vadd.f32 %v4060, %v4108
      %v4113 = vadd.f32 %v4061, %v4109
      %v4114 = vadd.f32 %v4062, %v4110
      %v4115 = vadd.f32 %v4063, %v4111
      %v4116 = vperm.slane %v3000, 1
      %v4117 = vperm.slane %v3001, 1
      %v4118 = vmul.f32 %v4102, %v4116
      %v4119 = vmul.f32 %v4104, %v4117
      %v4120 = vmul.f32 %v4103, %v4116
      %v4121 = vmul.f32 %v4105, %v4117
      %v4122 = vadd.f32 %v4070, %v4118
      %v4123 = vadd.f32 %v4071, %v4119
      %v4124 = vadd.f32 %v4072, %v4120
      %v4125 = vadd.f32 %v4073, %v4121
      %v4126 = vperm.slane %v3104, 1
      %v4127 = vperm.slane %v3105, 1
      %v4128 = vmul.f32 %v4102, %v4126
      %v4129 = vmul.f32 %v4104, %v4127
      %v4130 = vmul.f32 %v4103, %v4126
      %v4131 = vmul.f32 %v4105, %v4127
      %v4132 = vadd.f32 %v4080, %v4128
      %v4133 = vadd.f32 %v4081, %v4129
      %v4134 = vadd.f32 %v4082, %v4130
      %v4135 = vadd.f32 %v4083, %v4131
      %v4136 = vperm.slane %v3208, 1
      %v4137 = vperm.slane %v3209, 1
      %v4138 = vmul.f32 %v4102, %v4136
      %v4139 = vmul.f32 %v4104, %v4137
      %v4140 = vmul.f32 %v4103, %v4136
      %v4141 = vmul.f32 %v4105, %v4137
      %v4142 = vadd.f32 %v4090, %v4138
      %v4143 = vadd.f32 %v4091, %v4139
      %v4144 = vadd.f32 %v4092, %v4140
      %v4145 = vadd.f32 %v4093, %v4141
      %4146 = vrot.lane.b32.xlu0 %v280, 111
      %v4147 = vpop.permute.xlu0 %4146
      %4148 = vrot.lane.b32.xlu0 %v282, 111
      %v4149 = vpop.permute.xlu0 %4148
      %4150 = vrot.lane.b32.xlu0 %v281, 111
      %v4151 = vpop.permute.xlu0 %4150
      %4152 = vrot.lane.b32.xlu0 %v283, 111
      %v4153 = vpop.permute.xlu0 %4152
      %v4154 = vsel %vm1441, %v4147, %v4151
      %v4155 = vsel %vm1441, %v4149, %v4153
      %v4156 = vsel %vm1441, %v4151, %v4147
      %v4157 = vsel %vm1441, %v4153, %v4149
      %v4158 = vperm.slane %v2896, 2
      %v4159 = vperm.slane %v2897, 2
      %v4160 = vmul.f32 %v4154, %v4158
      %v4161 = vmul.f32 %v4156, %v4159
      %v4162 = vmul.f32 %v4155, %v4158
      %v4163 = vmul.f32 %v4157, %v4159
      %v4164 = vadd.f32 %v4112, %v4160
      %v4165 = vadd.f32 %v4113, %v4161
      %v4166 = vadd.f32 %v4114, %v4162
      %v4167 = vadd.f32 %v4115, %v4163
      %v4168 = vperm.slane %v3000, 2
      %v4169 = vperm.slane %v3001, 2
      %v4170 = vmul.f32 %v4154, %v4168
      %v4171 = vmul.f32 %v4156, %v4169
      %v4172 = vmul.f32 %v4155, %v4168
      %v4173 = vmul.f32 %v4157, %v4169
      %v4174 = vadd.f32 %v4122, %v4170
      %v4175 = vadd.f32 %v4123, %v4171
      %v4176 = vadd.f32 %v4124, %v4172
      %v4177 = vadd.f32 %v4125, %v4173
      %v4178 = vperm.slane %v3104, 2
      %v4179 = vperm.slane %v3105, 2
      %v4180 = vmul.f32 %v4154, %v4178
      %v4181 = vmul.f32 %v4156, %v4179
      %v4182 = vmul.f32 %v4155, %v4178
      %v4183 = vmul.f32 %v4157, %v4179
      %v4184 = vadd.f32 %v4132, %v4180
      %v4185 = vadd.f32 %v4133, %v4181
      %v4186 = vadd.f32 %v4134, %v4182
      %v4187 = vadd.f32 %v4135, %v4183
      %v4188 = vperm.slane %v3208, 2
      %v4189 = vperm.slane %v3209, 2
      %v4190 = vmul.f32 %v4154, %v4188
      %v4191 = vmul.f32 %v4156, %v4189
      %v4192 = vmul.f32 %v4155, %v4188
      %v4193 = vmul.f32 %v4157, %v4189
      %v4194 = vadd.f32 %v4142, %v4190
      %v4195 = vadd.f32 %v4143, %v4191
      %v4196 = vadd.f32 %v4144, %v4192
      %v4197 = vadd.f32 %v4145, %v4193
      %4198 = vrot.lane.b32.xlu0 %v280, 110
      %v4199 = vpop.permute.xlu0 %4198
      %4200 = vrot.lane.b32.xlu0 %v282, 110
      %v4201 = vpop.permute.xlu0 %4200
      %4202 = vrot.lane.b32.xlu0 %v281, 110
      %v4203 = vpop.permute.xlu0 %4202
      %4204 = vrot.lane.b32.xlu0 %v283, 110
      %v4205 = vpop.permute.xlu0 %4204
      %vm4206 = vcmp.lt.s32.totalorder %v786, 110
      %v4207 = vsel %vm4206, %v4199, %v4203
      %v4208 = vsel %vm4206, %v4201, %v4205
      %v4209 = vsel %vm4206, %v4203, %v4199
      %v4210 = vsel %vm4206, %v4205, %v4201
      %v4211 = vperm.slane %v2896, 3
      %v4212 = vperm.slane %v2897, 3
      %v4213 = vmul.f32 %v4207, %v4211
      %v4214 = vmul.f32 %v4209, %v4212
      %v4215 = vmul.f32 %v4208, %v4211
      %v4216 = vmul.f32 %v4210, %v4212
      %v4217 = vadd.f32 %v4164, %v4213
      %v4218 = vadd.f32 %v4165, %v4214
      %v4219 = vadd.f32 %v4166, %v4215
      %v4220 = vadd.f32 %v4167, %v4216
      %v4221 = vperm.slane %v3000, 3
      %v4222 = vperm.slane %v3001, 3
      %v4223 = vmul.f32 %v4207, %v4221
      %v4224 = vmul.f32 %v4209, %v4222
      %v4225 = vmul.f32 %v4208, %v4221
      %v4226 = vmul.f32 %v4210, %v4222
      %v4227 = vadd.f32 %v4174, %v4223
      %v4228 = vadd.f32 %v4175, %v4224
      %v4229 = vadd.f32 %v4176, %v4225
      %v4230 = vadd.f32 %v4177, %v4226
      %v4231 = vperm.slane %v3104, 3
      %v4232 = vperm.slane %v3105, 3
      %v4233 = vmul.f32 %v4207, %v4231
      %v4234 = vmul.f32 %v4209, %v4232
      %v4235 = vmul.f32 %v4208, %v4231
      %v4236 = vmul.f32 %v4210, %v4232
      %v4237 = vadd.f32 %v4184, %v4233
      %v4238 = vadd.f32 %v4185, %v4234
      %v4239 = vadd.f32 %v4186, %v4235
      %v4240 = vadd.f32 %v4187, %v4236
      %v4241 = vperm.slane %v3208, 3
      %v4242 = vperm.slane %v3209, 3
      %v4243 = vmul.f32 %v4207, %v4241
      %v4244 = vmul.f32 %v4209, %v4242
      %v4245 = vmul.f32 %v4208, %v4241
      %v4246 = vmul.f32 %v4210, %v4242
      %v4247 = vadd.f32 %v4194, %v4243
      %v4248 = vadd.f32 %v4195, %v4244
      %v4249 = vadd.f32 %v4196, %v4245
      %v4250 = vadd.f32 %v4197, %v4246
      %4251 = vrot.lane.b32.xlu0 %v280, 98
      %v4252 = vpop.permute.xlu0 %4251
      %4253 = vrot.lane.b32.xlu0 %v282, 98
      %v4254 = vpop.permute.xlu0 %4253
      %4255 = vrot.lane.b32.xlu0 %v281, 98
      %v4256 = vpop.permute.xlu0 %4255
      %4257 = vrot.lane.b32.xlu0 %v283, 98
      %v4258 = vpop.permute.xlu0 %4257
      %vm4259 = vcmp.lt.s32.totalorder %v786, 98
      %v4260 = vsel %vm4259, %v4252, %v4256
      %v4261 = vsel %vm4259, %v4254, %v4258
      %v4262 = vsel %vm4259, %v4256, %v4252
      %v4263 = vsel %vm4259, %v4258, %v4254
      %v4264 = vperm.slane %v2896, 4
      %v4265 = vperm.slane %v2897, 4
      %v4266 = vmul.f32 %v4260, %v4264
      %v4267 = vmul.f32 %v4262, %v4265
      %v4268 = vmul.f32 %v4261, %v4264
      %v4269 = vmul.f32 %v4263, %v4265
      %v4270 = vadd.f32 %v4217, %v4266
      %v4271 = vadd.f32 %v4218, %v4267
      %v4272 = vadd.f32 %v4219, %v4268
      %v4273 = vadd.f32 %v4220, %v4269
      %v4274 = vperm.slane %v3000, 4
      %v4275 = vperm.slane %v3001, 4
      %v4276 = vmul.f32 %v4260, %v4274
      %v4277 = vmul.f32 %v4262, %v4275
      %v4278 = vmul.f32 %v4261, %v4274
      %v4279 = vmul.f32 %v4263, %v4275
      %v4280 = vadd.f32 %v4227, %v4276
      %v4281 = vadd.f32 %v4228, %v4277
      %v4282 = vadd.f32 %v4229, %v4278
      %v4283 = vadd.f32 %v4230, %v4279
      %v4284 = vperm.slane %v3104, 4
      %v4285 = vperm.slane %v3105, 4
      %v4286 = vmul.f32 %v4260, %v4284
      %v4287 = vmul.f32 %v4262, %v4285
      %v4288 = vmul.f32 %v4261, %v4284
      %v4289 = vmul.f32 %v4263, %v4285
      %v4290 = vadd.f32 %v4237, %v4286
      %v4291 = vadd.f32 %v4238, %v4287
      %v4292 = vadd.f32 %v4239, %v4288
      %v4293 = vadd.f32 %v4240, %v4289
      %v4294 = vperm.slane %v3208, 4
      %v4295 = vperm.slane %v3209, 4
      %v4296 = vmul.f32 %v4260, %v4294
      %v4297 = vmul.f32 %v4262, %v4295
      %v4298 = vmul.f32 %v4261, %v4294
      %v4299 = vmul.f32 %v4263, %v4295
      %v4300 = vadd.f32 %v4247, %v4296
      %v4301 = vadd.f32 %v4248, %v4297
      %v4302 = vadd.f32 %v4249, %v4298
      %v4303 = vadd.f32 %v4250, %v4299
      %4304 = vrot.lane.b32.xlu0 %v280, 97
      %v4305 = vpop.permute.xlu0 %4304
      %4306 = vrot.lane.b32.xlu0 %v282, 97
      %v4307 = vpop.permute.xlu0 %4306
      %4308 = vrot.lane.b32.xlu0 %v281, 97
      %v4309 = vpop.permute.xlu0 %4308
      %4310 = vrot.lane.b32.xlu0 %v283, 97
      %v4311 = vpop.permute.xlu0 %4310
      %vm4312 = vcmp.lt.s32.totalorder %v786, 97
      %v4313 = vsel %vm4312, %v4305, %v4309
      %v4314 = vsel %vm4312, %v4307, %v4311
      %v4315 = vsel %vm4312, %v4309, %v4305
      %v4316 = vsel %vm4312, %v4311, %v4307
      %v4317 = vperm.slane %v2896, 5
      %v4318 = vperm.slane %v2897, 5
      %v4319 = vmul.f32 %v4313, %v4317
      %v4320 = vmul.f32 %v4315, %v4318
      %v4321 = vmul.f32 %v4314, %v4317
      %v4322 = vmul.f32 %v4316, %v4318
      %v4323 = vadd.f32 %v4270, %v4319
      %v4324 = vadd.f32 %v4271, %v4320
      %v4325 = vadd.f32 %v4272, %v4321
      %v4326 = vadd.f32 %v4273, %v4322
      %v4327 = vperm.slane %v3000, 5
      %v4328 = vperm.slane %v3001, 5
      %v4329 = vmul.f32 %v4313, %v4327
      %v4330 = vmul.f32 %v4315, %v4328
      %v4331 = vmul.f32 %v4314, %v4327
      %v4332 = vmul.f32 %v4316, %v4328
      %v4333 = vadd.f32 %v4280, %v4329
      %v4334 = vadd.f32 %v4281, %v4330
      %v4335 = vadd.f32 %v4282, %v4331
      %v4336 = vadd.f32 %v4283, %v4332
      %v4337 = vperm.slane %v3104, 5
      %v4338 = vperm.slane %v3105, 5
      %v4339 = vmul.f32 %v4313, %v4337
      %v4340 = vmul.f32 %v4315, %v4338
      %v4341 = vmul.f32 %v4314, %v4337
      %v4342 = vmul.f32 %v4316, %v4338
      %v4343 = vadd.f32 %v4290, %v4339
      %v4344 = vadd.f32 %v4291, %v4340
      %v4345 = vadd.f32 %v4292, %v4341
      %v4346 = vadd.f32 %v4293, %v4342
      %v4347 = vperm.slane %v3208, 5
      %v4348 = vperm.slane %v3209, 5
      %v4349 = vmul.f32 %v4313, %v4347
      %v4350 = vmul.f32 %v4315, %v4348
      %v4351 = vmul.f32 %v4314, %v4347
      %v4352 = vmul.f32 %v4316, %v4348
      %v4353 = vadd.f32 %v4300, %v4349
      %v4354 = vadd.f32 %v4301, %v4350
      %v4355 = vadd.f32 %v4302, %v4351
      %v4356 = vadd.f32 %v4303, %v4352
      %4357 = vrot.lane.b32.xlu0 %v280, 96
      %v4358 = vpop.permute.xlu0 %4357
      %4359 = vrot.lane.b32.xlu0 %v282, 96
      %v4360 = vpop.permute.xlu0 %4359
      %4361 = vrot.lane.b32.xlu0 %v281, 96
      %v4362 = vpop.permute.xlu0 %4361
      %4363 = vrot.lane.b32.xlu0 %v283, 96
      %v4364 = vpop.permute.xlu0 %4363
      %vm4365 = vcmp.lt.s32.totalorder %v786, 96
      %v4366 = vsel %vm4365, %v4358, %v4362
      %v4367 = vsel %vm4365, %v4360, %v4364
      %v4368 = vsel %vm4365, %v4362, %v4358
      %v4369 = vsel %vm4365, %v4364, %v4360
      %v4370 = vperm.slane %v2896, 6
      %v4371 = vperm.slane %v2897, 6
      %v4372 = vmul.f32 %v4366, %v4370
      %v4373 = vmul.f32 %v4368, %v4371
      %v4374 = vmul.f32 %v4367, %v4370
      %v4375 = vmul.f32 %v4369, %v4371
      %v4376 = vadd.f32 %v4323, %v4372
      %v4377 = vadd.f32 %v4324, %v4373
      %v4378 = vadd.f32 %v4325, %v4374
      %v4379 = vadd.f32 %v4326, %v4375
      %v4380 = vperm.slane %v3000, 6
      %v4381 = vperm.slane %v3001, 6
      %v4382 = vmul.f32 %v4366, %v4380
      %v4383 = vmul.f32 %v4368, %v4381
      %v4384 = vmul.f32 %v4367, %v4380
      %v4385 = vmul.f32 %v4369, %v4381
      %v4386 = vadd.f32 %v4333, %v4382
      %v4387 = vadd.f32 %v4334, %v4383
      %v4388 = vadd.f32 %v4335, %v4384
      %v4389 = vadd.f32 %v4336, %v4385
      %v4390 = vperm.slane %v3104, 6
      %v4391 = vperm.slane %v3105, 6
      %v4392 = vmul.f32 %v4366, %v4390
      %v4393 = vmul.f32 %v4368, %v4391
      %v4394 = vmul.f32 %v4367, %v4390
      %v4395 = vmul.f32 %v4369, %v4391
      %v4396 = vadd.f32 %v4343, %v4392
      %v4397 = vadd.f32 %v4344, %v4393
      %v4398 = vadd.f32 %v4345, %v4394
      %v4399 = vadd.f32 %v4346, %v4395
      %v4400 = vperm.slane %v3208, 6
      %v4401 = vperm.slane %v3209, 6
      %v4402 = vmul.f32 %v4366, %v4400
      %v4403 = vmul.f32 %v4368, %v4401
      %v4404 = vmul.f32 %v4367, %v4400
      %v4405 = vmul.f32 %v4369, %v4401
      %v4406 = vadd.f32 %v4353, %v4402
      %v4407 = vadd.f32 %v4354, %v4403
      %v4408 = vadd.f32 %v4355, %v4404
      %v4409 = vadd.f32 %v4356, %v4405
      %4410 = vrot.lane.b32.xlu0 %v280, 95
      %v4411 = vpop.permute.xlu0 %4410
      %4412 = vrot.lane.b32.xlu0 %v282, 95
      %v4413 = vpop.permute.xlu0 %4412
      %4414 = vrot.lane.b32.xlu0 %v281, 95
      %v4415 = vpop.permute.xlu0 %4414
      %4416 = vrot.lane.b32.xlu0 %v283, 95
      %v4417 = vpop.permute.xlu0 %4416
      %vm4418 = vcmp.lt.s32.totalorder %v786, 95
      %v4419 = vsel %vm4418, %v4411, %v4415
      %v4420 = vsel %vm4418, %v4413, %v4417
      %v4421 = vsel %vm4418, %v4415, %v4411
      %v4422 = vsel %vm4418, %v4417, %v4413
      %v4423 = vperm.slane %v2896, 7
      %v4424 = vperm.slane %v2897, 7
      %v4425 = vmul.f32 %v4419, %v4423
      %v4426 = vmul.f32 %v4421, %v4424
      %v4427 = vmul.f32 %v4420, %v4423
      %v4428 = vmul.f32 %v4422, %v4424
      %v4429 = vadd.f32 %v4376, %v4425
      %v4430 = vadd.f32 %v4377, %v4426
      %v4431 = vadd.f32 %v4378, %v4427
      %v4432 = vadd.f32 %v4379, %v4428
      %v4433 = vperm.slane %v3000, 7
      %v4434 = vperm.slane %v3001, 7
      %v4435 = vmul.f32 %v4419, %v4433
      %v4436 = vmul.f32 %v4421, %v4434
      %v4437 = vmul.f32 %v4420, %v4433
      %v4438 = vmul.f32 %v4422, %v4434
      %v4439 = vadd.f32 %v4386, %v4435
      %v4440 = vadd.f32 %v4387, %v4436
      %v4441 = vadd.f32 %v4388, %v4437
      %v4442 = vadd.f32 %v4389, %v4438
      %v4443 = vperm.slane %v3104, 7
      %v4444 = vperm.slane %v3105, 7
      %v4445 = vmul.f32 %v4419, %v4443
      %v4446 = vmul.f32 %v4421, %v4444
      %v4447 = vmul.f32 %v4420, %v4443
      %v4448 = vmul.f32 %v4422, %v4444
      %v4449 = vadd.f32 %v4396, %v4445
      %v4450 = vadd.f32 %v4397, %v4446
      %v4451 = vadd.f32 %v4398, %v4447
      %v4452 = vadd.f32 %v4399, %v4448
      %v4453 = vperm.slane %v3208, 7
      %v4454 = vperm.slane %v3209, 7
      %v4455 = vmul.f32 %v4419, %v4453
      %v4456 = vmul.f32 %v4421, %v4454
      %v4457 = vmul.f32 %v4420, %v4453
      %v4458 = vmul.f32 %v4422, %v4454
      %v4459 = vadd.f32 %v4406, %v4455
      %v4460 = vadd.f32 %v4407, %v4456
      %v4461 = vadd.f32 %v4408, %v4457
      %v4462 = vadd.f32 %v4409, %v4458
      %4463 = vrot.lane.b32.xlu0 %v280, 94
      %v4464 = vpop.permute.xlu0 %4463
      %4465 = vrot.lane.b32.xlu0 %v282, 94
      %v4466 = vpop.permute.xlu0 %4465
      %4467 = vrot.lane.b32.xlu0 %v281, 94
      %v4468 = vpop.permute.xlu0 %4467
      %4469 = vrot.lane.b32.xlu0 %v283, 94
      %v4470 = vpop.permute.xlu0 %4469
      %vm4471 = vcmp.lt.s32.totalorder %v786, 94
      %v4472 = vsel %vm4471, %v4464, %v4468
      %v4473 = vsel %vm4471, %v4466, %v4470
      %v4474 = vsel %vm4471, %v4468, %v4464
      %v4475 = vsel %vm4471, %v4470, %v4466
      %v4476 = vperm.slane %v2898, 0
      %v4477 = vperm.slane %v2899, 0
      %v4478 = vmul.f32 %v4472, %v4476
      %v4479 = vmul.f32 %v4474, %v4477
      %v4480 = vmul.f32 %v4473, %v4476
      %v4481 = vmul.f32 %v4475, %v4477
      %v4482 = vadd.f32 %v4429, %v4478
      %v4483 = vadd.f32 %v4430, %v4479
      %v4484 = vadd.f32 %v4431, %v4480
      %v4485 = vadd.f32 %v4432, %v4481
      %v4486 = vperm.slane %v3002, 0
      %v4487 = vperm.slane %v3003, 0
      %v4488 = vmul.f32 %v4472, %v4486
      %v4489 = vmul.f32 %v4474, %v4487
      %v4490 = vmul.f32 %v4473, %v4486
      %v4491 = vmul.f32 %v4475, %v4487
      %v4492 = vadd.f32 %v4439, %v4488
      %v4493 = vadd.f32 %v4440, %v4489
      %v4494 = vadd.f32 %v4441, %v4490
      %v4495 = vadd.f32 %v4442, %v4491
      %v4496 = vperm.slane %v3106, 0
      %v4497 = vperm.slane %v3107, 0
      %v4498 = vmul.f32 %v4472, %v4496
      %v4499 = vmul.f32 %v4474, %v4497
      %v4500 = vmul.f32 %v4473, %v4496
      %v4501 = vmul.f32 %v4475, %v4497
      %v4502 = vadd.f32 %v4449, %v4498
      %v4503 = vadd.f32 %v4450, %v4499
      %v4504 = vadd.f32 %v4451, %v4500
      %v4505 = vadd.f32 %v4452, %v4501
      %v4506 = vperm.slane %v3210, 0
      %v4507 = vperm.slane %v3211, 0
      %v4508 = vmul.f32 %v4472, %v4506
      %v4509 = vmul.f32 %v4474, %v4507
      %v4510 = vmul.f32 %v4473, %v4506
      %v4511 = vmul.f32 %v4475, %v4507
      %v4512 = vadd.f32 %v4459, %v4508
      %v4513 = vadd.f32 %v4460, %v4509
      %v4514 = vadd.f32 %v4461, %v4510
      %v4515 = vadd.f32 %v4462, %v4511
      %4516 = vst [vmem:[%s278] sm:$0xff] %v4482
      %4517 = vst [vmem:[%s278 + $0x8] sm:$0xff] %v4483
      %4518 = vst [vmem:[%s278 + $0x10] sm:$0xff] %v4484
      %4519 = vst [vmem:[%s278 + $0x18] sm:$0xff] %v4485
      %s4520 = scalar_lea.vmem %s278, 32
      %4521 = vst [vmem:[%s4520] sm:$0xff] %v4492
      %4522 = vst [vmem:[%s4520 + $0x8] sm:$0xff] %v4493
      %4523 = vst [vmem:[%s4520 + $0x10] sm:$0xff] %v4494
      %4524 = vst [vmem:[%s4520 + $0x18] sm:$0xff] %v4495
      %s4525 = scalar_lea.vmem %s278, 64
      %4526 = vst [vmem:[%s4525] sm:$0xff] %v4502
      %4527 = vst [vmem:[%s4525 + $0x8] sm:$0xff] %v4503
      %4528 = vst [vmem:[%s4525 + $0x10] sm:$0xff] %v4504
      %4529 = vst [vmem:[%s4525 + $0x18] sm:$0xff] %v4505
      %s4530 = scalar_lea.vmem %s278, 96
      %4531 = vst [vmem:[%s4530] sm:$0xff] %v4512
      %4532 = vst [vmem:[%s4530 + $0x8] sm:$0xff] %v4513
      %4533 = vst [vmem:[%s4530 + $0x10] sm:$0xff] %v4514
      %4534 = vst [vmem:[%s4530 + $0x18] sm:$0xff] %v4515
      %p4535 = scmp.lt.s32.totalorder %s18, 1
      %s4536 = scalar_select %p4535, %s18, 1
      %s4537 = smul.addr %s4536, 16
      %s4538 = smul.addr %s4537, 8
      %s4539 = scalar_lea.vmem %s7, %s4538
      // Predicated region
      $region49: #{carafe_forward.1} parent=47 // pred_check
        %p4540 = pneg %p188
      $region50: #{carafe_forward.1} parent=47 // pred_check_branch
        %4542 = sbr.rel (%p4540) target = $region52
      $region51: #{carafe_forward.1} parent=47 // pred_region
        _
      $region52: #{carafe_forward.1} parent=47 // pred_fallthru
        _
    $region48: #{carafe_forward.1} parent=5 // pred_fallthru
      _
    %p4543 = scmp.le.s32.totalorder 2, %s13
    // Predicated region
    $region53: #{carafe_forward.1} parent=5 // pred_check
      %p4544 = pneg %p4543
    $region54: #{carafe_forward.1} parent=5 // pred_check_branch
      %4546 = sbr.rel (%p4544) target = $region56
    $region55: #{carafe_forward.1} parent=5 // pred_region
      %s4547 = ssub.s32 %s13, 2
      // Predicated region
      $region57: #{carafe_forward.1} parent=55 // pred_check
        %p4548 = pneg %p194
      $region58: #{carafe_forward.1} parent=55 // pred_check_branch
        %4550 = sbr.rel (%p4548) target = $region60
      $region59: #{carafe_forward.1} parent=55 // pred_region
        %p4551 = scmp.lt.s32.totalorder %s19, 1
        %s4552 = scalar_select %p4551, %s19, 1
        %s4553 = smul.addr %s4552, 16
        %s4554 = smul.addr %s4553, 8
        %s4555 = scalar_lea.vmem %s7, %s4554
      $region60: #{carafe_forward.1} parent=55 // pred_fallthru
        _
    $region56: #{carafe_forward.1} parent=5 // pred_fallthru
      _
  $region6: #{carafe_forward.1} parent=0 // loop_footer
    %s17 = sadd.s32 1, %s13
  $region7: #{carafe_forward.1} parent=0 // loop_footer_branch
    %12 = sbr.rel target = $region3
  $region8: #{carafe_forward.1} parent=0 // loop_exit
    _

</llo_original>
